<compile_context>
chip_gen: v7x
topology: tpu7x:2x2x1
jax: 0.10.0
libtpu: 0.0.40
codegen_flags: <defaults>
</compile_context>

<pallas_src>
import math

import jax
import jax.numpy as jnp
from jax.experimental import pallas as pl
from jax.experimental.pallas import tpu as pltpu


def _make_mlp_decoder_kernel(n_hidden):
    """Kernel: n_hidden (Linear+ReLU) layers followed by one Linear, per N tile."""

    def kernel(*refs):
        # refs = z, (w_h, b_h) * n_hidden, w_out, b_out, o_ref
        z_ref = refs[0]
        hidden_refs = refs[1:1 + 2 * n_hidden]
        w_out_ref = refs[1 + 2 * n_hidden]
        b_out_ref = refs[2 + 2 * n_hidden]
        o_ref = refs[3 + 2 * n_hidden]

        # Hidden stack -- recomputed every grid step. It is a tiny
        # (B_pad x z_dim) @ (z_dim x hidden) chain that hides under the
        # streamed (hidden x tn) final-weight DMA, and recomputing keeps the
        # grid axis safely "parallel" (2 TensorCores on v7x).
        h = z_ref[...]
        for l in range(n_hidden):
            w = hidden_refs[2 * l][...]
            b = hidden_refs[2 * l + 1][...]              # f32 [1, d] bias
            h = jnp.dot(h.astype(w.dtype), w,
                        preferred_element_type=jnp.float32)
            h = jnp.maximum(h + b, 0.0)                  # ReLU on VPU (f32)
        h = h.astype(w_out_ref.dtype)                    # bf16 for the MXU

        # Output layer: one lane-dense (B_pad, tn) tile per grid step.
        out = jnp.dot(h, w_out_ref[...], preferred_element_type=jnp.float32)
        o_ref[...] = (out + b_out_ref[...]).astype(o_ref.dtype)

    return kernel


def _round_up(x, m):
    return ((x + m - 1) // m) * m


def _vmem_budget_bytes():
    """~75% of this generation's physical per-core VMEM (headroom for Mosaic)."""
    try:
        cap = int(pltpu.get_tpu_info().vmem_capacity_bytes)
    except Exception:
        cap = 64 << 20            # conservative fallback (v7x-sized)
    return (cap * 3) // 4         # v5e/v6e ~96 MiB, v7x ~48 MiB


def mlp_decoder_forward(z, params, output_shape, *, max_tn=2048):
    """z: [B, z_dim] -> logits [B, *output_shape] (no sigmoid)."""
    assert len(params) >= 4 and len(params) % 2 == 0

    n_hidden = (len(params) - 2) // 2
    w_out, b_out = params[-2], params[-1]
    hidden_last, out_dim = w_out.shape
    compute_dtype = w_out.dtype
    cd_size = compute_dtype.itemsize

    B, z_dim = z.shape
    # Pad batch to a full sublane group (16 rows for packed bf16, else 8).
    sub = 16 if compute_dtype == jnp.bfloat16 else 8
    b_pad = max(sub, _round_up(B, sub))

    vmem_budget = _vmem_budget_bytes()

    # ---- choose the output tile width tn (biggest that fits the budget) ----
    out_128 = _round_up(out_dim, 128)
    resident_bytes = (b_pad * z_dim * cd_size
                      + sum(int(p.size) * p.dtype.itemsize for p in params[:-2]))

    def footprint(tn):
        # Resident inputs (count x2 in case the Buffered(1) request is not
        # honored) + double-buffered streamed tiles + headroom.
        streamed = 2 * (hidden_last * tn * cd_size    # w_out tile
                        + tn * b_out.dtype.itemsize   # b_out tile
                        + b_pad * tn * 4)             # f32 output tile
        return 2 * resident_bytes + streamed + (4 << 20)

    cands = []
    if out_128 <= max_tn:
        cands.append(out_128)                         # single grid step if possible
    cands += list(range((min(max_tn, out_128) // 256) * 256, 0, -256))
    cands.append(128)
    tn = next(t for t in cands if t == 128 or footprint(t) <= vmem_budget)

    out_pad = _round_up(out_dim, tn)
    n_tiles = out_pad // tn

    # ---- wrapper-side padding / dtype plumbing (sliced off afterwards) -----
    z_p = jnp.zeros((b_pad, z_dim), dtype=compute_dtype).at[:B].set(
        z.astype(compute_dtype))
    w_out_p = jnp.zeros((hidden_last, out_pad), dtype=compute_dtype).at[
        :, :out_dim].set(w_out)
    b_out_p = jnp.zeros((1, out_pad), dtype=b_out.dtype).at[:, :out_dim].set(b_out)

    out_spec = pl.BlockSpec((b_pad, tn), lambda j: (0, j))

    def run(single_buffer_resident):
        # Resident inputs (constant index_map, never re-fetched). Buffered(1)
        # halves their VMEM footprint on v7x's smaller VMEM.
        pm = ({"pipeline_mode": pl.Buffered(1)} if single_buffer_resident else {})
        in_specs = [pl.BlockSpec((b_pad, z_dim), lambda j: (0, 0), **pm)]
        for l in range(n_hidden):
            w, b = params[2 * l], params[2 * l + 1]
            in_specs.append(pl.BlockSpec(w.shape, lambda j: (0, 0), **pm))
            in_specs.append(pl.BlockSpec(b.shape, lambda j: (0, 0), **pm))
        # Streamed final layer: tiled along N and double-buffered by the pipeline.
        in_specs.append(pl.BlockSpec((hidden_last, tn), lambda j: (0, j)))
        in_specs.append(pl.BlockSpec((1, tn), lambda j: (0, j)))

        return pl.pallas_call(
            _make_mlp_decoder_kernel(n_hidden),
            out_shape=jax.ShapeDtypeStruct((b_pad, out_pad), jnp.float32),
            grid_spec=pltpu.PrefetchScalarGridSpec(
                num_scalar_prefetch=0,
                grid=(n_tiles,),
                in_specs=in_specs,
                out_specs=out_spec,
            ),
            compiler_params=pltpu.CompilerParams(
                # Safe now that h is recomputed per tile: output tiles are
                # independent, so the N sweep can shard across v7x's 2 cores.
                dimension_semantics=("parallel",),
                vmem_limit_bytes=int(vmem_budget),
            ),
        )(z_p, *params[:-2], w_out_p, b_out_p)

    try:
        flat = run(True)
    except Exception:
        # Fallback if this JAX version rejects Buffered(1) on resident inputs.
        flat = run(False)

    return flat[:B, :out_dim].reshape((B, *output_shape))


def init_params(key, z_dim, hidden_dims, output_shape,
                weight_dtype=jnp.bfloat16):
    """Kaiming-uniform-like init (nn.Linear default scheme).

    Weights stored [in, out] in `weight_dtype` (bf16 halves the streamed HBM
    bytes and hits the bf16-native MXU); biases kept f32.
    """
    dims = [z_dim] + list(hidden_dims) + [int(math.prod(output_shape))]
    keys = jax.random.split(key, 2 * (len(dims) - 1))
    params = []
    for l in range(len(dims) - 1):
        fan_in, fan_out = dims[l], dims[l + 1]
        bound = 1.0 / math.sqrt(fan_in)
        w = jax.random.uniform(keys[2 * l], (fan_in, fan_out),
                               minval=-bound, maxval=bound, dtype=jnp.float32)
        b = jax.random.uniform(keys[2 * l + 1], (1, fan_out),
                               minval=-bound, maxval=bound, dtype=jnp.float32)
        params.append(w.astype(weight_dtype))
        params.append(b)                       # biases stay f32
    return tuple(params)


def reference_forward(z, params, output_shape):
    """Pure-JAX reference mirroring the kernel's numerics (bf16 inputs, f32 acc)."""
    n_hidden = (len(params) - 2) // 2
    compute_dtype = params[0].dtype
    h = z.astype(compute_dtype)
    for l in range(n_hidden):
        w, b = params[2 * l], params[2 * l + 1]
        a = jnp.dot(h.astype(jnp.float32), w.astype(jnp.float32)) + b
        h = jnp.maximum(a, 0.0).astype(compute_dtype)
    w_out, b_out = params[-2], params[-1]
    out = jnp.dot(h.astype(jnp.float32), w_out.astype(jnp.float32)) + b_out
    return out.reshape((z.shape[0], *output_shape))


if __name__ == "__main__":
    # Module defaults: z_dim=20, hidden_dims=[512], output_shape=[1, 28, 28]
    B = 2
    z_dim = 20
    hidden_dims = [512]
    output_shape = (1, 28, 28)

    key = jax.random.PRNGKey(0)
    k_param, k_z = jax.random.split(key)

    params = init_params(k_param, z_dim, hidden_dims, output_shape)
    z = jax.random.normal(k_z, (B, z_dim), dtype=jnp.float32)

    out = mlp_decoder_forward(z, params, output_shape)
    out = jax.block_until_ready(out)

    assert out.shape == (B, *output_shape), out.shape

    ref = reference_forward(z, params, output_shape)
    assert jnp.allclose(out, ref, atol=2e-3, rtol=2e-3), "mismatch vs JAX reference"

    print("KERNEL_OK")
</pallas_src>

<mosaic_0001>
module attributes {stable_mosaic.version = 11 : i64} {
  func.func @kernel(%arg0: i32, %arg1: memref<16x20xbf16, #tpu.memory_space<vmem>>, %arg2: memref<20x512xbf16, #tpu.memory_space<vmem>>, %arg3: memref<1x512xf32, #tpu.memory_space<vmem>>, %arg4: memref<512x896xbf16, #tpu.memory_space<vmem>>, %arg5: memref<1x896xf32, #tpu.memory_space<vmem>>, %arg6: memref<16x896xf32, #tpu.memory_space<vmem>>) attributes {dimension_semantics = [#tpu.dimension_semantics<parallel>], iteration_bounds = array<i64: 1>, scalar_prefetch = 0 : i64, scratch_operands = 0 : i64, tpu.core_type = #tpu.core_type<tc>, window_params = [{pipeline_mode = #tpu.pipeline_mode<synchronous>, transform_indices = @transform_0, window_bounds = array<i64: 16, 20>}, {pipeline_mode = #tpu.pipeline_mode<synchronous>, transform_indices = @transform_1, window_bounds = array<i64: 20, 512>}, {pipeline_mode = #tpu.pipeline_mode<synchronous>, transform_indices = @transform_2, window_bounds = array<i64: 1, 512>}, {transform_indices = @transform_3, window_bounds = array<i64: 512, 896>}, {transform_indices = @transform_4, window_bounds = array<i64: 1, 896>}, {transform_indices = @transform_5, window_bounds = array<i64: 16, 896>}]} {
    %c0 = arith.constant 0 : index
    %c0_0 = arith.constant 0 : index
    %0 = vector.load %arg1[%c0, %c0_0] : memref<16x20xbf16, #tpu.memory_space<vmem>>, vector<16x20xbf16>
    %c0_1 = arith.constant 0 : index
    %c0_2 = arith.constant 0 : index
    %1 = vector.load %arg2[%c0_1, %c0_2] : memref<20x512xbf16, #tpu.memory_space<vmem>>, vector<20x512xbf16>
    %c0_3 = arith.constant 0 : index
    %c0_4 = arith.constant 0 : index
    %2 = vector.load %arg3[%c0_3, %c0_4] : memref<1x512xf32, #tpu.memory_space<vmem>>, vector<1x512xf32>
    %cst = arith.constant dense<0.000000e+00> : vector<16x512xf32>
    %3 = tpu.matmul %0, %1, %cst {dimension_numbers = #tpu.dot_dimension_numbers<[1], [0], [0], [1], [0, 0, 1, 1], [], []>} : vector<16x20xbf16>, vector<20x512xbf16>, vector<16x512xf32> -> vector<16x512xf32>
    %4 = vector.broadcast %2 : vector<1x512xf32> to vector<16x512xf32>
    %5 = arith.addf %3, %4 : vector<16x512xf32>
    %cst_5 = arith.constant 0.000000e+00 : f32
    %6 = vector.broadcast %cst_5 : f32 to vector<16x512xf32>
    %7 = arith.maximumf %5, %6 : vector<16x512xf32>
    %8 = arith.truncf %7 : vector<16x512xf32> to vector<16x512xbf16>
    %c0_6 = arith.constant 0 : index
    %c0_7 = arith.constant 0 : index
    %9 = vector.load %arg4[%c0_6, %c0_7] : memref<512x896xbf16, #tpu.memory_space<vmem>>, vector<512x896xbf16>
    %cst_8 = arith.constant dense<0.000000e+00> : vector<16x896xf32>
    %10 = tpu.matmul %8, %9, %cst_8 {dimension_numbers = #tpu.dot_dimension_numbers<[1], [0], [0], [1], [0, 0, 1, 1], [], []>} : vector<16x512xbf16>, vector<512x896xbf16>, vector<16x896xf32> -> vector<16x896xf32>
    %c0_9 = arith.constant 0 : index
    %c0_10 = arith.constant 0 : index
    %11 = vector.load %arg5[%c0_9, %c0_10] : memref<1x896xf32, #tpu.memory_space<vmem>>, vector<1x896xf32>
    %12 = vector.broadcast %11 : vector<1x896xf32> to vector<16x896xf32>
    %13 = arith.addf %10, %12 : vector<16x896xf32>
    %c0_11 = arith.constant 0 : index
    %c0_12 = arith.constant 0 : index
    %14 = vector.load %arg6[%c0_11, %c0_12] : memref<16x896xf32, #tpu.memory_space<vmem>>, vector<16x896xf32>
    tpu.vector_store %arg6[%c0_11, %c0_12], %13 {strides = array<i32>} : memref<16x896xf32, #tpu.memory_space<vmem>>, vector<16x896xf32>,
    return
  }
  func.func @transform_0(%arg0: i32) -> (i32, i32) {
    %c0_i32 = arith.constant 0 : i32
    %c0_i32_0 = arith.constant 0 : i32
    %c0_i32_1 = arith.constant 0 : i32
    return %c0_i32, %c0_i32_0 : i32, i32
  }
  func.func @transform_1(%arg0: i32) -> (i32, i32) {
    %c0_i32 = arith.constant 0 : i32
    %c0_i32_0 = arith.constant 0 : i32
    %c0_i32_1 = arith.constant 0 : i32
    return %c0_i32, %c0_i32_0 : i32, i32
  }
  func.func @transform_2(%arg0: i32) -> (i32, i32) {
    %c0_i32 = arith.constant 0 : i32
    %c0_i32_0 = arith.constant 0 : i32
    %c0_i32_1 = arith.constant 0 : i32
    return %c0_i32, %c0_i32_0 : i32, i32
  }
  func.func @transform_3(%arg0: i32) -> (i32, i32) {
    %c0_i32 = arith.constant 0 : i32
    %c0_i32_0 = arith.constant 0 : i32
    return %c0_i32, %arg0 : i32, i32
  }
  func.func @transform_4(%arg0: i32) -> (i32, i32) {
    %c0_i32 = arith.constant 0 : i32
    %c0_i32_0 = arith.constant 0 : i32
    return %c0_i32, %arg0 : i32, i32
  }
  func.func @transform_5(%arg0: i32) -> (i32, i32) {
    %c0_i32 = arith.constant 0 : i32
    %c0_i32_0 = arith.constant 0 : i32
    return %c0_i32, %arg0 : i32, i32
  }
}

module attributes {stable_mosaic.version = 11 : i64} {
  func.func @kernel(%arg0: i32, %arg1: memref<16x20xbf16, #tpu.memory_space<vmem>>, %arg2: memref<20x512xbf16, #tpu.memory_space<vmem>>, %arg3: memref<1x512xf32, #tpu.memory_space<vmem>>, %arg4: memref<512x896xbf16, #tpu.memory_space<vmem>>, %arg5: memref<1x896xf32, #tpu.memory_space<vmem>>, %arg6: memref<16x896xf32, #tpu.memory_space<vmem>>) attributes {dimension_semantics = [#tpu.dimension_semantics<parallel>], iteration_bounds = array<i64: 1>, scalar_prefetch = 0 : i64, scratch_operands = 0 : i64, tpu.core_type = #tpu.core_type<tc>, window_params = [{pipeline_mode = #tpu.pipeline_mode<synchronous>, transform_indices = @transform_0, window_bounds = array<i64: 16, 20>}, {pipeline_mode = #tpu.pipeline_mode<synchronous>, transform_indices = @transform_1, window_bounds = array<i64: 20, 512>}, {pipeline_mode = #tpu.pipeline_mode<synchronous>, transform_indices = @transform_2, window_bounds = array<i64: 1, 512>}, {transform_indices = @transform_3, window_bounds = array<i64: 512, 896>}, {transform_indices = @transform_4, window_bounds = array<i64: 1, 896>}, {transform_indices = @transform_5, window_bounds = array<i64: 16, 896>}]} {
    %c0 = arith.constant 0 : index
    %c0_0 = arith.constant 0 : index
    %0 = vector.load %arg1[%c0, %c0_0] : memref<16x20xbf16, #tpu.memory_space<vmem>>, vector<16x20xbf16>
    %c0_1 = arith.constant 0 : index
    %c0_2 = arith.constant 0 : index
    %1 = vector.load %arg2[%c0_1, %c0_2] : memref<20x512xbf16, #tpu.memory_space<vmem>>, vector<20x512xbf16>
    %c0_3 = arith.constant 0 : index
    %c0_4 = arith.constant 0 : index
    %2 = vector.load %arg3[%c0_3, %c0_4] : memref<1x512xf32, #tpu.memory_space<vmem>>, vector<1x512xf32>
    %cst = arith.constant dense<0.000000e+00> : vector<16x512xf32>
    %3 = tpu.matmul %0, %1, %cst {dimension_numbers = #tpu.dot_dimension_numbers<[1], [0], [0], [1], [0, 0, 1, 1], [], []>} : vector<16x20xbf16>, vector<20x512xbf16>, vector<16x512xf32> -> vector<16x512xf32>
    %4 = vector.broadcast %2 : vector<1x512xf32> to vector<16x512xf32>
    %5 = arith.addf %3, %4 : vector<16x512xf32>
    %cst_5 = arith.constant 0.000000e+00 : f32
    %6 = vector.broadcast %cst_5 : f32 to vector<16x512xf32>
    %7 = arith.maximumf %5, %6 : vector<16x512xf32>
    %8 = arith.truncf %7 : vector<16x512xf32> to vector<16x512xbf16>
    %c0_6 = arith.constant 0 : index
    %c0_7 = arith.constant 0 : index
    %9 = vector.load %arg4[%c0_6, %c0_7] : memref<512x896xbf16, #tpu.memory_space<vmem>>, vector<512x896xbf16>
    %cst_8 = arith.constant dense<0.000000e+00> : vector<16x896xf32>
    %10 = tpu.matmul %8, %9, %cst_8 {dimension_numbers = #tpu.dot_dimension_numbers<[1], [0], [0], [1], [0, 0, 1, 1], [], []>} : vector<16x512xbf16>, vector<512x896xbf16>, vector<16x896xf32> -> vector<16x896xf32>
    %c0_9 = arith.constant 0 : index
    %c0_10 = arith.constant 0 : index
    %11 = vector.load %arg5[%c0_9, %c0_10] : memref<1x896xf32, #tpu.memory_space<vmem>>, vector<1x896xf32>
    %12 = vector.broadcast %11 : vector<1x896xf32> to vector<16x896xf32>
    %13 = arith.addf %10, %12 : vector<16x896xf32>
    %c0_11 = arith.constant 0 : index
    %c0_12 = arith.constant 0 : index
    %14 = vector.load %arg6[%c0_11, %c0_12] : memref<16x896xf32, #tpu.memory_space<vmem>>, vector<16x896xf32>
    tpu.vector_store %arg6[%c0_11, %c0_12], %13 {strides = array<i32>} : memref<16x896xf32, #tpu.memory_space<vmem>>, vector<16x896xf32>,
    return
  }
  func.func @transform_0(%arg0: i32) -> (i32, i32) {
    %c0_i32 = arith.constant 0 : i32
    %c0_i32_0 = arith.constant 0 : i32
    %c0_i32_1 = arith.constant 0 : i32
    return %c0_i32, %c0_i32_0 : i32, i32
  }
  func.func @transform_1(%arg0: i32) -> (i32, i32) {
    %c0_i32 = arith.constant 0 : i32
    %c0_i32_0 = arith.constant 0 : i32
    %c0_i32_1 = arith.constant 0 : i32
    return %c0_i32, %c0_i32_0 : i32, i32
  }
  func.func @transform_2(%arg0: i32) -> (i32, i32) {
    %c0_i32 = arith.constant 0 : i32
    %c0_i32_0 = arith.constant 0 : i32
    %c0_i32_1 = arith.constant 0 : i32
    return %c0_i32, %c0_i32_0 : i32, i32
  }
  func.func @transform_3(%arg0: i32) -> (i32, i32) {
    %c0_i32 = arith.constant 0 : i32
    %c0_i32_0 = arith.constant 0 : i32
    return %c0_i32, %arg0 : i32, i32
  }
  func.func @transform_4(%arg0: i32) -> (i32, i32) {
    %c0_i32 = arith.constant 0 : i32
    %c0_i32_0 = arith.constant 0 : i32
    return %c0_i32, %arg0 : i32, i32
  }
  func.func @transform_5(%arg0: i32) -> (i32, i32) {
    %c0_i32 = arith.constant 0 : i32
    %c0_i32_0 = arith.constant 0 : i32
    return %c0_i32, %arg0 : i32, i32
  }
}

</mosaic_0001>

<llo_original>
// kernel: tpu_custom_call.1
$region0: #{tpu_custom_call.1}
  #allocation0 [shape = 'u32[]', space=smem, size = 0x4, offset = 0x4, fixed_abs, tag = 'smem constant byte address 0x4 - core index']
  #allocation1 [shape = 'u32[144,128]{1,0:T(1,128)}', space=vmem, size = 0x12000, scoped, tag = 'internal scratch']
  %s0 = inlined_call_operand.hbm [shape: bf16[16,20], index: 0, kind: input, shape index: {}]
  %s1 = inlined_call_operand.hbm [shape: bf16[20,512], index: 1, kind: input, shape index: {}]
  %s2 = inlined_call_operand.vmem [shape: f32[1,512], index: 2, kind: input, shape index: {}]
  %s3 = inlined_call_operand.hbm [shape: bf16[512,896], index: 3, kind: input, shape index: {}]
  %s4 = inlined_call_operand.vmem [shape: f32[1,896], index: 4, kind: input, shape index: {}]
  %s5 = inlined_call_operand.hbm [shape: f32[16,896], index: 5, kind: output, shape index: {}]
  %s6 = sld [smem:[#allocation0]]
  $region42: #{tpu_custom_call.1} parent=0
    _
  %s8 = ssub.s32 1, %s6
  %s9 = scalar_select 0, %s8, %s6
  $region1: #{tpu_custom_call.1} parent=0
    #allocation2 [shape = 'u8[4096]{0}', space=vmem, size = 0x1000, scoped, tag = 'input window, operand 0, single buffered']
    #allocation3 [shape = 's32[1]{0}', space=sflag, size = 0x4, scoped, tag = 'scoped memory for tpu_custom_call.1']
    #allocation4 [shape = 's32[1]{0}', space=sflag, size = 0x4, scoped, tag = 'scoped memory for tpu_custom_call.1']
    #allocation5 [shape = 'u8[24576]{0}', space=vmem, size = 0x6000, scoped, tag = 'input window, operand 1, single buffered']
    #allocation6 [shape = 's32[1]{0}', space=sflag, size = 0x4, scoped, tag = 'scoped memory for tpu_custom_call.1']
    #allocation7 [shape = 'u8[917504]{0}', space=vmem, size = 0xe0000, scoped, tag = 'input window, operand 3, single buffered']
    #allocation8 [shape = 'u8[57344]{0}', space=vmem, size = 0xe000, scoped, tag = 'output window, operand 0, single buffered']
    %10 = vsyncpa [#allocation3], 0
    %11 = vsyncpa [#allocation6], 0
    %12 = vsyncpa [#allocation4], 0
    // Predicated region
    $region2: #{tpu_custom_call.1} parent=1 // pred_check
      _
    $region3: #{tpu_custom_call.1} parent=1 // pred_check_branch
      %14 = sbr.rel (0) target = $region5
    $region4: #{tpu_custom_call.1} parent=1 // pred_region
      %s16 = ssub.s32 128, 128
      %17 = vsyncadd [#allocation3], %s16
      %s18 = sshll.u32 [#allocation2], 4
      %s19 = int_to_ptr.vmem [resolvable:$true] %s18
      %24 = dma.hbm_to_vmem [thread:$0]  %s0, 128, %s19, [#allocation3], 64, 64, 4
    $region5: #{tpu_custom_call.1} parent=1 // pred_fallthru
      _
    // Predicated region
    $region6: #{tpu_custom_call.1} parent=1 // pred_check
      _
    $region7: #{tpu_custom_call.1} parent=1 // pred_check_branch
      %26 = sbr.rel (0) target = $region9
    $region8: #{tpu_custom_call.1} parent=1 // pred_region
      %s28 = ssub.s32 768, 768
      %29 = vsyncadd [#allocation6], %s28
      %s30 = sshll.u32 [#allocation5], 4
      %s31 = int_to_ptr.vmem [resolvable:$true] %s30
      %36 = dma.hbm_to_vmem [thread:$0]  %s1, 768, %s31, [#allocation6], 256, 256, 16
    $region9: #{tpu_custom_call.1} parent=1 // pred_fallthru
      _
    // Predicated region
    $region10: #{tpu_custom_call.1} parent=1 // pred_check
      _
    $region11: #{tpu_custom_call.1} parent=1 // pred_check_branch
      %38 = sbr.rel (0) target = $region13
    $region12: #{tpu_custom_call.1} parent=1 // pred_region
      _
    $region13: #{tpu_custom_call.1} parent=1 // pred_fallthru
      _
    // Predicated region
    $region14: #{tpu_custom_call.1} parent=1 // pred_check
      _
    $region15: #{tpu_custom_call.1} parent=1 // pred_check_branch
      %40 = sbr.rel (0) target = $region17
    $region16: #{tpu_custom_call.1} parent=1 // pred_region
      %s42 = ssub.s32 28672, 28672
      %43 = vsyncadd [#allocation6], %s42
      %s44 = sshll.u32 [#allocation7], 4
      %s45 = int_to_ptr.vmem [resolvable:$true] %s44
      %50 = dma.hbm_to_vmem [thread:$0]  %s3, 28672, %s45, [#allocation6], 448, 448, 28
    $region17: #{tpu_custom_call.1} parent=1 // pred_fallthru
      _
    // Predicated region
    $region18: #{tpu_custom_call.1} parent=1 // pred_check
      _
    $region19: #{tpu_custom_call.1} parent=1 // pred_check_branch
      %52 = sbr.rel (0) target = $region21
    $region20: #{tpu_custom_call.1} parent=1 // pred_region
      _
    $region21: #{tpu_custom_call.1} parent=1 // pred_fallthru
      _
    // Predicated region
    $region22: #{tpu_custom_call.1} parent=1 // pred_check
      _
    $region23: #{tpu_custom_call.1} parent=1 // pred_check_branch
      %54 = sbr.rel (0) target = $region25
    $region24: #{tpu_custom_call.1} parent=1 // pred_region
      %55 = dma.done [#allocation3], 128
    $region25: #{tpu_custom_call.1} parent=1 // pred_fallthru
      _
    // Predicated region
    $region26: #{tpu_custom_call.1} parent=1 // pred_check
      _
    $region27: #{tpu_custom_call.1} parent=1 // pred_check_branch
      %57 = sbr.rel (0) target = $region29
    $region28: #{tpu_custom_call.1} parent=1 // pred_region
      %58 = dma.done [#allocation6], 768
    $region29: #{tpu_custom_call.1} parent=1 // pred_fallthru
      _
    // Predicated region
    $region30: #{tpu_custom_call.1} parent=1 // pred_check
      _
    $region31: #{tpu_custom_call.1} parent=1 // pred_check_branch
      %60 = sbr.rel (0) target = $region33
    $region32: #{tpu_custom_call.1} parent=1 // pred_region
      %61 = dma.done [#allocation6], 28672
    $region33: #{tpu_custom_call.1} parent=1 // pred_fallthru
      _
    %v63 = vld [vmem:[#allocation2] sm:$0xf]
    %v64 = vld [vmem:[#allocation2 + $0x4] sm:$0xf]
    %v65 = vld [vmem:[#allocation5] sm:$0xff]
    %v66 = vld [vmem:[#allocation5 + $0x8] sm:$0xff]
    %v67 = vld [vmem:[#allocation5 + $0x10] sm:$0xff]
    %v68 = vld [vmem:[#allocation5 + $0x18] sm:$0xff]
    %v69 = vld [vmem:[#allocation5 + $0x20] sm:$0x33]
    %v70 = vld [vmem:[#allocation5 + $0x28] sm:$0x33]
    %v71 = vld [vmem:[%s2] sm:$0xf]
    %v73 = vlaneseq
    %v74 = vshrl.u32 %v73, 7
    %v75 = vsub.s32 0, %v74
    %v76 = vrot.slane %v71, %v75
    %v77 = vlaneseq
    %v78 = vshrl.u32 %v77, 7
    %v79 = vsub.s32 1, %v78
    %v80 = vrot.slane %v71, %v79
    %v81 = vlaneseq
    %v82 = vshrl.u32 %v81, 7
    %v83 = vsub.s32 2, %v82
    %v84 = vrot.slane %v71, %v83
    %v85 = vlaneseq
    %v86 = vshrl.u32 %v85, 7
    %v87 = vsub.s32 3, %v86
    %v88 = vrot.slane %v71, %v87
    %v95 = vunpack.c.l.b16 %v63
    %v96 = vunpack.c.l.b16 %v64
    %v97 = vpack.c.b16 %v96, %v95
    %v104 = vunpack.c.l.b16 %v65
    %v105 = vunpack.c.h.b16 %v65
    %v106 = vunpack.c.l.b16 %v66
    %v107 = vunpack.c.h.b16 %v66
    %v108 = vunpack.c.l.b16 %v67
    %v109 = vunpack.c.h.b16 %v67
    %v110 = vunpack.c.l.b16 %v68
    %v111 = vunpack.c.h.b16 %v68
    %v112 = vunpack.c.l.b16 %v69
    %v113 = vunpack.c.h.b16 %v69
    %v114 = vunpack.c.l.b16 %v70
    %v115 = vunpack.c.h.b16 %v70
    %v116 = vpack.c.b16 %v108, %v104
    %v117 = vpack.c.b16 %v109, %v105
    %v118 = vpack.c.b16 %v110, %v106
    %v119 = vpack.c.b16 %v111, %v107
    %v120 = vpack.c.b16 %v112, %v112
    %v121 = vpack.c.b16 %v113, %v113
    %v122 = vpack.c.b16 %v114, %v114
    %v123 = vpack.c.b16 %v115, %v115
    %vm128 = vcmask 162816
    %v130 = vsel %vm128, %v97, 0
    %vm132 = vcmask 1041408
    %v134 = vsel %vm132, %v120, 0
    %v137 = vsel %vm132, %v121, 0
    %v140 = vsel %vm132, %v122, 0
    %v143 = vsel %vm132, %v123, 0
    %145 = vmatprep.subr.bf16.mxu0 %v117
    %146 = vmatpush1.bf16.msra.mxu0 %v116
    %147 = vmatprep.subr.bf16.mxu0 %v137
    %148 = vmatpush1.bf16.msra.mxu0 %v134
    %149 = vmatprep.subr.bf16.mxu0 0
    %150 = vmatpush1.bf16.msra.mxu0 0
    %151 = vmatprep.subr.bf16.mxu0 0
    %152 = vmatpush1.bf16.msra.mxu0 0
    %153 = vmatprep.subr.bf16.mxu0 0
    %154 = vmatpush1.bf16.msra.mxu0 0
    %155 = vmatprep.subr.bf16.mxu0 0
    %156 = vmatpush1.bf16.msra.mxu0 0
    %157 = vmatprep.subr.bf16.mxu0 0
    %158 = vmatpush1.bf16.msra.mxu0 0
    %159 = vmatprep.subr.bf16.mxu0 0
    %160 = vmatpush1.bf16.msra.mxu0 0
    %161 = vmatprep.subr.bf16.mxu0 0
    %162 = vmatpush1.bf16.msra.mxu0 0
    %163 = vmatprep.subr.bf16.mxu0 0
    %164 = vmatpush1.bf16.msra.mxu0 0
    %165 = vmatprep.subr.bf16.mxu0 0
    %166 = vmatpush1.bf16.msra.mxu0 0
    %167 = vmatprep.subr.bf16.mxu0 0
    %168 = vmatpush1.bf16.msra.mxu0 0
    %169 = vmatprep.subr.bf16.mxu0 0
    %170 = vmatpush1.bf16.msra.mxu0 0
    %171 = vmatprep.subr.bf16.mxu0 0
    %172 = vmatpush1.bf16.msra.mxu0 0
    %173 = vmatprep.subr.bf16.mxu0 0
    %174 = vmatpush1.bf16.msra.mxu0 0
    %175 = vmatprep.subr.bf16.mxu0 0
    %176 = vmatpush1.bf16.msra.mxu0 0
    %177 = vmatprep.mubr.bf16.mxu0 0
    %178 = vmatmul.mubr.bf16.gmra.mrb[0].mxu0 %v130
    %v179 = vpop.f32.mrb[0].mxu0
    %v180 = vadd.f32 %v76, %v179
    %v181 = vpop.f32.mrb[0].mxu0
    %v182 = vadd.f32 %v80, %v181
    %v183 = vpop.f32.mrb[0].mxu0
    %v184 = vadd.f32 %v76, %v183
    %v185 = vpop.f32.mrb[0].mxu0
    %v186 = vadd.f32 %v80, %v185
    %187 = vdwg.mxu0
    %188 = vmatprep.subr.bf16.mxu0 %v119
    %189 = vmatpush1.bf16.msra.mxu0 %v118
    %190 = vmatprep.subr.bf16.mxu0 %v143
    %191 = vmatpush1.bf16.msra.mxu0 %v140
    %192 = vmatprep.subr.bf16.mxu0 0
    %193 = vmatpush1.bf16.msra.mxu0 0
    %194 = vmatprep.subr.bf16.mxu0 0
    %195 = vmatpush1.bf16.msra.mxu0 0
    %196 = vmatprep.subr.bf16.mxu0 0
    %197 = vmatpush1.bf16.msra.mxu0 0
    %198 = vmatprep.subr.bf16.mxu0 0
    %199 = vmatpush1.bf16.msra.mxu0 0
    %200 = vmatprep.subr.bf16.mxu0 0
    %201 = vmatpush1.bf16.msra.mxu0 0
    %202 = vmatprep.subr.bf16.mxu0 0
    %203 = vmatpush1.bf16.msra.mxu0 0
    %204 = vmatprep.subr.bf16.mxu0 0
    %205 = vmatpush1.bf16.msra.mxu0 0
    %206 = vmatprep.subr.bf16.mxu0 0
    %207 = vmatpush1.bf16.msra.mxu0 0
    %208 = vmatprep.subr.bf16.mxu0 0
    %209 = vmatpush1.bf16.msra.mxu0 0
    %210 = vmatprep.subr.bf16.mxu0 0
    %211 = vmatpush1.bf16.msra.mxu0 0
    %212 = vmatprep.subr.bf16.mxu0 0
    %213 = vmatpush1.bf16.msra.mxu0 0
    %214 = vmatprep.subr.bf16.mxu0 0
    %215 = vmatpush1.bf16.msra.mxu0 0
    %216 = vmatprep.subr.bf16.mxu0 0
    %217 = vmatpush1.bf16.msra.mxu0 0
    %218 = vmatprep.subr.bf16.mxu0 0
    %219 = vmatpush1.bf16.msra.mxu0 0
    %220 = vmatprep.mubr.bf16.mxu0 0
    %221 = vmatmul.mubr.bf16.gmra.mrb[0].mxu0 %v130
    %v222 = vpop.f32.mrb[0].mxu0
    %v223 = vadd.f32 %v84, %v222
    %v224 = vpop.f32.mrb[0].mxu0
    %v225 = vadd.f32 %v88, %v224
    %v226 = vpop.f32.mrb[0].mxu0
    %v227 = vadd.f32 %v84, %v226
    %v228 = vpop.f32.mrb[0].mxu0
    %v229 = vadd.f32 %v88, %v228
    %230 = vdwg.mxu0
    %v231 = vmax.f32 %v180, 0.0
    %v232 = vmax.f32 %v182, 0.0
    %v233 = vmax.f32 %v223, 0.0
    %v234 = vmax.f32 %v225, 0.0
    %v235 = vmax.f32 %v184, 0.0
    %v236 = vmax.f32 %v186, 0.0
    %v237 = vmax.f32 %v227, 0.0
    %v238 = vmax.f32 %v229, 0.0
    %v239 = vpack.c.bf16 %v235, %v231
    %v240 = vpack.c.bf16 %v236, %v232
    %v241 = vpack.c.bf16 %v237, %v233
    %v242 = vpack.c.bf16 %v238, %v234
    %v243 = vld [vmem:[#allocation7] sm:$0xff]
    %v244 = vld [vmem:[#allocation7 + $0x8] sm:$0xff]
    %v245 = vld [vmem:[#allocation7 + $0x10] sm:$0xff]
    %v246 = vld [vmem:[#allocation7 + $0x18] sm:$0xf]
    %v247 = vld [vmem:[#allocation7 + $0x1c] sm:$0xff]
    %v248 = vld [vmem:[#allocation7 + $0x24] sm:$0xff]
    %v249 = vld [vmem:[#allocation7 + $0x2c] sm:$0xff]
    %v250 = vld [vmem:[#allocation7 + $0x34] sm:$0xf]
    %v251 = vld [vmem:[#allocation7 + $0x38] sm:$0xff]
    %v252 = vld [vmem:[#allocation7 + $0x40] sm:$0xff]
    %v253 = vld [vmem:[#allocation7 + $0x48] sm:$0xff]
    %v254 = vld [vmem:[#allocation7 + $0x50] sm:$0xf]
    %v255 = vld [vmem:[#allocation7 + $0x54] sm:$0xff]
    %v256 = vld [vmem:[#allocation7 + $0x5c] sm:$0xff]
    %v257 = vld [vmem:[#allocation7 + $0x64] sm:$0xff]
    %v258 = vld [vmem:[#allocation7 + $0x6c] sm:$0xf]
    %v259 = vld [vmem:[#allocation7 + $0x70] sm:$0xff]
    %v260 = vld [vmem:[#allocation7 + $0x78] sm:$0xff]
    %v261 = vld [vmem:[#allocation7 + $0x80] sm:$0xff]
    %v262 = vld [vmem:[#allocation7 + $0x88] sm:$0xf]
    %v263 = vld [vmem:[#allocation7 + $0x8c] sm:$0xff]
    %v264 = vld [vmem:[#allocation7 + $0x94] sm:$0xff]
    %v265 = vld [vmem:[#allocation7 + $0x9c] sm:$0xff]
    %v266 = vld [vmem:[#allocation7 + $0xa4] sm:$0xf]
    %v267 = vld [vmem:[#allocation7 + $0xa8] sm:$0xff]
    %v268 = vld [vmem:[#allocation7 + $0xb0] sm:$0xff]
    %v269 = vld [vmem:[#allocation7 + $0xb8] sm:$0xff]
    %v270 = vld [vmem:[#allocation7 + $0xc0] sm:$0xf]
    %v271 = vld [vmem:[#allocation7 + $0xc4] sm:$0xff]
    %v272 = vld [vmem:[#allocation7 + $0xcc] sm:$0xff]
    %v273 = vld [vmem:[#allocation7 + $0xd4] sm:$0xff]
    %v274 = vld [vmem:[#allocation7 + $0xdc] sm:$0xf]
    %v275 = vld [vmem:[#allocation7 + $0xe0] sm:$0xff]
    %v276 = vld [vmem:[#allocation7 + $0xe8] sm:$0xff]
    %v277 = vld [vmem:[#allocation7 + $0xf0] sm:$0xff]
    %v278 = vld [vmem:[#allocation7 + $0xf8] sm:$0xf]
    %v279 = vld [vmem:[#allocation7 + $0xfc] sm:$0xff]
    %v280 = vld [vmem:[#allocation7 + $0x104] sm:$0xff]
    %v281 = vld [vmem:[#allocation7 + $0x10c] sm:$0xff]
    %v282 = vld [vmem:[#allocation7 + $0x114] sm:$0xf]
    %v283 = vld [vmem:[#allocation7 + $0x118] sm:$0xff]
    %v284 = vld [vmem:[#allocation7 + $0x120] sm:$0xff]
    %v285 = vld [vmem:[#allocation7 + $0x128] sm:$0xff]
    %v286 = vld [vmem:[#allocation7 + $0x130] sm:$0xf]
    %v287 = vld [vmem:[#allocation7 + $0x134] sm:$0xff]
    %v288 = vld [vmem:[#allocation7 + $0x13c] sm:$0xff]
    %v289 = vld [vmem:[#allocation7 + $0x144] sm:$0xff]
    %v290 = vld [vmem:[#allocation7 + $0x14c] sm:$0xf]
    %v291 = vld [vmem:[#allocation7 + $0x150] sm:$0xff]
    %v292 = vld [vmem:[#allocation7 + $0x158] sm:$0xff]
    %v293 = vld [vmem:[#allocation7 + $0x160] sm:$0xff]
    %v294 = vld [vmem:[#allocation7 + $0x168] sm:$0xf]
    %v295 = vld [vmem:[#allocation7 + $0x16c] sm:$0xff]
    %v296 = vld [vmem:[#allocation7 + $0x174] sm:$0xff]
    %v297 = vld [vmem:[#allocation7 + $0x17c] sm:$0xff]
    %v298 = vld [vmem:[#allocation7 + $0x184] sm:$0xf]
    %v299 = vld [vmem:[#allocation7 + $0x188] sm:$0xff]
    %v300 = vld [vmem:[#allocation7 + $0x190] sm:$0xff]
    %v301 = vld [vmem:[#allocation7 + $0x198] sm:$0xff]
    %v302 = vld [vmem:[#allocation7 + $0x1a0] sm:$0xf]
    %v303 = vld [vmem:[#allocation7 + $0x1a4] sm:$0xff]
    %v304 = vld [vmem:[#allocation7 + $0x1ac] sm:$0xff]
    %v305 = vld [vmem:[#allocation7 + $0x1b4] sm:$0xff]
    %v306 = vld [vmem:[#allocation7 + $0x1bc] sm:$0xf]
    %v307 = vld [vmem:[#allocation7 + $0x1c0] sm:$0xff]
    %v308 = vld [vmem:[#allocation7 + $0x1c8] sm:$0xff]
    %v309 = vld [vmem:[#allocation7 + $0x1d0] sm:$0xff]
    %v310 = vld [vmem:[#allocation7 + $0x1d8] sm:$0xf]
    %v311 = vld [vmem:[#allocation7 + $0x1dc] sm:$0xff]
    %v312 = vld [vmem:[#allocation7 + $0x1e4] sm:$0xff]
    %v313 = vld [vmem:[#allocation7 + $0x1ec] sm:$0xff]
    %v314 = vld [vmem:[#allocation7 + $0x1f4] sm:$0xf]
    %v315 = vld [vmem:[#allocation7 + $0x1f8] sm:$0xff]
    %v316 = vld [vmem:[#allocation7 + $0x200] sm:$0xff]
    %v317 = vld [vmem:[#allocation7 + $0x208] sm:$0xff]
    %v318 = vld [vmem:[#allocation7 + $0x210] sm:$0xf]
    %v319 = vld [vmem:[#allocation7 + $0x214] sm:$0xff]
    %v320 = vld [vmem:[#allocation7 + $0x21c] sm:$0xff]
    %v321 = vld [vmem:[#allocation7 + $0x224] sm:$0xff]
    %v322 = vld [vmem:[#allocation7 + $0x22c] sm:$0xf]
    %v323 = vld [vmem:[#allocation7 + $0x230] sm:$0xff]
    %v324 = vld [vmem:[#allocation7 + $0x238] sm:$0xff]
    %v325 = vld [vmem:[#allocation7 + $0x240] sm:$0xff]
    %v326 = vld [vmem:[#allocation7 + $0x248] sm:$0xf]
    %v327 = vld [vmem:[#allocation7 + $0x24c] sm:$0xff]
    %v328 = vld [vmem:[#allocation7 + $0x254] sm:$0xff]
    %v329 = vld [vmem:[#allocation7 + $0x25c] sm:$0xff]
    %v330 = vld [vmem:[#allocation7 + $0x264] sm:$0xf]
    %v331 = vld [vmem:[#allocation7 + $0x268] sm:$0xff]
    %v332 = vld [vmem:[#allocation7 + $0x270] sm:$0xff]
    %v333 = vld [vmem:[#allocation7 + $0x278] sm:$0xff]
    %v334 = vld [vmem:[#allocation7 + $0x280] sm:$0xf]
    %v335 = vld [vmem:[#allocation7 + $0x284] sm:$0xff]
    %v336 = vld [vmem:[#allocation7 + $0x28c] sm:$0xff]
    %v337 = vld [vmem:[#allocation7 + $0x294] sm:$0xff]
    %v338 = vld [vmem:[#allocation7 + $0x29c] sm:$0xf]
    %v339 = vld [vmem:[#allocation7 + $0x2a0] sm:$0xff]
    %v340 = vld [vmem:[#allocation7 + $0x2a8] sm:$0xff]
    %v341 = vld [vmem:[#allocation7 + $0x2b0] sm:$0xff]
    %v342 = vld [vmem:[#allocation7 + $0x2b8] sm:$0xf]
    %v343 = vld [vmem:[#allocation7 + $0x2bc] sm:$0xff]
    %v344 = vld [vmem:[#allocation7 + $0x2c4] sm:$0xff]
    %v345 = vld [vmem:[#allocation7 + $0x2cc] sm:$0xff]
    %v346 = vld [vmem:[#allocation7 + $0x2d4] sm:$0xf]
    %v347 = vld [vmem:[#allocation7 + $0x2d8] sm:$0xff]
    %v348 = vld [vmem:[#allocation7 + $0x2e0] sm:$0xff]
    %v349 = vld [vmem:[#allocation7 + $0x2e8] sm:$0xff]
    %v350 = vld [vmem:[#allocation7 + $0x2f0] sm:$0xf]
    %v351 = vld [vmem:[#allocation7 + $0x2f4] sm:$0xff]
    %v352 = vld [vmem:[#allocation7 + $0x2fc] sm:$0xff]
    %v353 = vld [vmem:[#allocation7 + $0x304] sm:$0xff]
    %v354 = vld [vmem:[#allocation7 + $0x30c] sm:$0xf]
    %v355 = vld [vmem:[#allocation7 + $0x310] sm:$0xff]
    %v356 = vld [vmem:[#allocation7 + $0x318] sm:$0xff]
    %v357 = vld [vmem:[#allocation7 + $0x320] sm:$0xff]
    %v358 = vld [vmem:[#allocation7 + $0x328] sm:$0xf]
    %v359 = vld [vmem:[#allocation7 + $0x32c] sm:$0xff]
    %v360 = vld [vmem:[#allocation7 + $0x334] sm:$0xff]
    %v361 = vld [vmem:[#allocation7 + $0x33c] sm:$0xff]
    %v362 = vld [vmem:[#allocation7 + $0x344] sm:$0xf]
    %v363 = vld [vmem:[#allocation7 + $0x348] sm:$0xff]
    %v364 = vld [vmem:[#allocation7 + $0x350] sm:$0xff]
    %v365 = vld [vmem:[#allocation7 + $0x358] sm:$0xff]
    %v366 = vld [vmem:[#allocation7 + $0x360] sm:$0xf]
    %v367 = vld [vmem:[#allocation7 + $0x364] sm:$0xff]
    %v368 = vld [vmem:[#allocation7 + $0x36c] sm:$0xff]
    %v369 = vld [vmem:[#allocation7 + $0x374] sm:$0xff]
    %v370 = vld [vmem:[#allocation7 + $0x37c] sm:$0xf]
    %v371 = vld [vmem:[#allocation7 + $0x380] sm:$0xff]
    %v372 = vld [vmem:[#allocation7 + $0x388] sm:$0xff]
    %v373 = vld [vmem:[#allocation7 + $0x390] sm:$0xff]
    %v374 = vld [vmem:[#allocation7 + $0x398] sm:$0xf]
    %v375 = vld [vmem:[#allocation7 + $0x39c] sm:$0xff]
    %v376 = vld [vmem:[#allocation7 + $0x3a4] sm:$0xff]
    %v377 = vld [vmem:[#allocation7 + $0x3ac] sm:$0xff]
    %v378 = vld [vmem:[#allocation7 + $0x3b4] sm:$0xf]
    %v379 = vld [vmem:[#allocation7 + $0x3b8] sm:$0xff]
    %v380 = vld [vmem:[#allocation7 + $0x3c0] sm:$0xff]
    %v381 = vld [vmem:[#allocation7 + $0x3c8] sm:$0xff]
    %v382 = vld [vmem:[#allocation7 + $0x3d0] sm:$0xf]
    %v383 = vld [vmem:[#allocation7 + $0x3d4] sm:$0xff]
    %v384 = vld [vmem:[#allocation7 + $0x3dc] sm:$0xff]
    %v385 = vld [vmem:[#allocation7 + $0x3e4] sm:$0xff]
    %v386 = vld [vmem:[#allocation7 + $0x3ec] sm:$0xf]
    %v387 = vld [vmem:[#allocation7 + $0x3f0] sm:$0xff]
    %v388 = vld [vmem:[#allocation7 + $0x3f8] sm:$0xff]
    %v389 = vld [vmem:[#allocation7 + $0x400] sm:$0xff]
    %v390 = vld [vmem:[#allocation7 + $0x408] sm:$0xf]
    %v391 = vld [vmem:[#allocation7 + $0x40c] sm:$0xff]
    %v392 = vld [vmem:[#allocation7 + $0x414] sm:$0xff]
    %v393 = vld [vmem:[#allocation7 + $0x41c] sm:$0xff]
    %v394 = vld [vmem:[#allocation7 + $0x424] sm:$0xf]
    %v395 = vld [vmem:[#allocation7 + $0x428] sm:$0xff]
    %v396 = vld [vmem:[#allocation7 + $0x430] sm:$0xff]
    %v397 = vld [vmem:[#allocation7 + $0x438] sm:$0xff]
    %v398 = vld [vmem:[#allocation7 + $0x440] sm:$0xf]
    %v399 = vld [vmem:[#allocation7 + $0x444] sm:$0xff]
    %v400 = vld [vmem:[#allocation7 + $0x44c] sm:$0xff]
    %v401 = vld [vmem:[#allocation7 + $0x454] sm:$0xff]
    %v402 = vld [vmem:[#allocation7 + $0x45c] sm:$0xf]
    %v403 = vld [vmem:[#allocation7 + $0x460] sm:$0xff]
    %v404 = vld [vmem:[#allocation7 + $0x468] sm:$0xff]
    %v405 = vld [vmem:[#allocation7 + $0x470] sm:$0xff]
    %v406 = vld [vmem:[#allocation7 + $0x478] sm:$0xf]
    %v407 = vld [vmem:[#allocation7 + $0x47c] sm:$0xff]
    %v408 = vld [vmem:[#allocation7 + $0x484] sm:$0xff]
    %v409 = vld [vmem:[#allocation7 + $0x48c] sm:$0xff]
    %v410 = vld [vmem:[#allocation7 + $0x494] sm:$0xf]
    %v411 = vld [vmem:[#allocation7 + $0x498] sm:$0xff]
    %v412 = vld [vmem:[#allocation7 + $0x4a0] sm:$0xff]
    %v413 = vld [vmem:[#allocation7 + $0x4a8] sm:$0xff]
    %v414 = vld [vmem:[#allocation7 + $0x4b0] sm:$0xf]
    %v415 = vld [vmem:[#allocation7 + $0x4b4] sm:$0xff]
    %v416 = vld [vmem:[#allocation7 + $0x4bc] sm:$0xff]
    %v417 = vld [vmem:[#allocation7 + $0x4c4] sm:$0xff]
    %v418 = vld [vmem:[#allocation7 + $0x4cc] sm:$0xf]
    %v419 = vld [vmem:[#allocation7 + $0x4d0] sm:$0xff]
    %v420 = vld [vmem:[#allocation7 + $0x4d8] sm:$0xff]
    %v421 = vld [vmem:[#allocation7 + $0x4e0] sm:$0xff]
    %v422 = vld [vmem:[#allocation7 + $0x4e8] sm:$0xf]
    %v423 = vld [vmem:[#allocation7 + $0x4ec] sm:$0xff]
    %v424 = vld [vmem:[#allocation7 + $0x4f4] sm:$0xff]
    %v425 = vld [vmem:[#allocation7 + $0x4fc] sm:$0xff]
    %v426 = vld [vmem:[#allocation7 + $0x504] sm:$0xf]
    %v427 = vld [vmem:[#allocation7 + $0x508] sm:$0xff]
    %v428 = vld [vmem:[#allocation7 + $0x510] sm:$0xff]
    %v429 = vld [vmem:[#allocation7 + $0x518] sm:$0xff]
    %v430 = vld [vmem:[#allocation7 + $0x520] sm:$0xf]
    %v431 = vld [vmem:[#allocation7 + $0x524] sm:$0xff]
    %v432 = vld [vmem:[#allocation7 + $0x52c] sm:$0xff]
    %v433 = vld [vmem:[#allocation7 + $0x534] sm:$0xff]
    %v434 = vld [vmem:[#allocation7 + $0x53c] sm:$0xf]
    %v435 = vld [vmem:[#allocation7 + $0x540] sm:$0xff]
    %v436 = vld [vmem:[#allocation7 + $0x548] sm:$0xff]
    %v437 = vld [vmem:[#allocation7 + $0x550] sm:$0xff]
    %v438 = vld [vmem:[#allocation7 + $0x558] sm:$0xf]
    %v439 = vld [vmem:[#allocation7 + $0x55c] sm:$0xff]
    %v440 = vld [vmem:[#allocation7 + $0x564] sm:$0xff]
    %v441 = vld [vmem:[#allocation7 + $0x56c] sm:$0xff]
    %v442 = vld [vmem:[#allocation7 + $0x574] sm:$0xf]
    %v443 = vld [vmem:[#allocation7 + $0x578] sm:$0xff]
    %v444 = vld [vmem:[#allocation7 + $0x580] sm:$0xff]
    %v445 = vld [vmem:[#allocation7 + $0x588] sm:$0xff]
    %v446 = vld [vmem:[#allocation7 + $0x590] sm:$0xf]
    %v447 = vld [vmem:[#allocation7 + $0x594] sm:$0xff]
    %v448 = vld [vmem:[#allocation7 + $0x59c] sm:$0xff]
    %v449 = vld [vmem:[#allocation7 + $0x5a4] sm:$0xff]
    %v450 = vld [vmem:[#allocation7 + $0x5ac] sm:$0xf]
    %v451 = vld [vmem:[#allocation7 + $0x5b0] sm:$0xff]
    %v452 = vld [vmem:[#allocation7 + $0x5b8] sm:$0xff]
    %v453 = vld [vmem:[#allocation7 + $0x5c0] sm:$0xff]
    %v454 = vld [vmem:[#allocation7 + $0x5c8] sm:$0xf]
    %v455 = vld [vmem:[#allocation7 + $0x5cc] sm:$0xff]
    %v456 = vld [vmem:[#allocation7 + $0x5d4] sm:$0xff]
    %v457 = vld [vmem:[#allocation7 + $0x5dc] sm:$0xff]
    %v458 = vld [vmem:[#allocation7 + $0x5e4] sm:$0xf]
    %v459 = vld [vmem:[#allocation7 + $0x5e8] sm:$0xff]
    %v460 = vld [vmem:[#allocation7 + $0x5f0] sm:$0xff]
    %v461 = vld [vmem:[#allocation7 + $0x5f8] sm:$0xff]
    %v462 = vld [vmem:[#allocation7 + $0x600] sm:$0xf]
    %v463 = vld [vmem:[#allocation7 + $0x604] sm:$0xff]
    %v464 = vld [vmem:[#allocation7 + $0x60c] sm:$0xff]
    %v465 = vld [vmem:[#allocation7 + $0x614] sm:$0xff]
    %v466 = vld [vmem:[#allocation7 + $0x61c] sm:$0xf]
    %v467 = vld [vmem:[#allocation7 + $0x620] sm:$0xff]
    %v468 = vld [vmem:[#allocation7 + $0x628] sm:$0xff]
    %v469 = vld [vmem:[#allocation7 + $0x630] sm:$0xff]
    %v470 = vld [vmem:[#allocation7 + $0x638] sm:$0xf]
    %v471 = vld [vmem:[#allocation7 + $0x63c] sm:$0xff]
    %v472 = vld [vmem:[#allocation7 + $0x644] sm:$0xff]
    %v473 = vld [vmem:[#allocation7 + $0x64c] sm:$0xff]
    %v474 = vld [vmem:[#allocation7 + $0x654] sm:$0xf]
    %v475 = vld [vmem:[#allocation7 + $0x658] sm:$0xff]
    %v476 = vld [vmem:[#allocation7 + $0x660] sm:$0xff]
    %v477 = vld [vmem:[#allocation7 + $0x668] sm:$0xff]
    %v478 = vld [vmem:[#allocation7 + $0x670] sm:$0xf]
    %v479 = vld [vmem:[#allocation7 + $0x674] sm:$0xff]
    %v480 = vld [vmem:[#allocation7 + $0x67c] sm:$0xff]
    %v481 = vld [vmem:[#allocation7 + $0x684] sm:$0xff]
    %v482 = vld [vmem:[#allocation7 + $0x68c] sm:$0xf]
    %v483 = vld [vmem:[#allocation7 + $0x690] sm:$0xff]
    %v484 = vld [vmem:[#allocation7 + $0x698] sm:$0xff]
    %v485 = vld [vmem:[#allocation7 + $0x6a0] sm:$0xff]
    %v486 = vld [vmem:[#allocation7 + $0x6a8] sm:$0xf]
    %v487 = vld [vmem:[#allocation7 + $0x6ac] sm:$0xff]
    %v488 = vld [vmem:[#allocation7 + $0x6b4] sm:$0xff]
    %v489 = vld [vmem:[#allocation7 + $0x6bc] sm:$0xff]
    %v490 = vld [vmem:[#allocation7 + $0x6c4] sm:$0xf]
    %v491 = vld [vmem:[#allocation7 + $0x6c8] sm:$0xff]
    %v492 = vld [vmem:[#allocation7 + $0x6d0] sm:$0xff]
    %v493 = vld [vmem:[#allocation7 + $0x6d8] sm:$0xff]
    %v494 = vld [vmem:[#allocation7 + $0x6e0] sm:$0xf]
    %v495 = vld [vmem:[#allocation7 + $0x6e4] sm:$0xff]
    %v496 = vld [vmem:[#allocation7 + $0x6ec] sm:$0xff]
    %v497 = vld [vmem:[#allocation7 + $0x6f4] sm:$0xff]
    %v498 = vld [vmem:[#allocation7 + $0x6fc] sm:$0xf]
    %v499 = vld [vmem:[%s4] sm:$0xff]
    %v501 = vlaneseq
    %v502 = vshrl.u32 %v501, 7
    %v503 = vsub.s32 0, %v502
    %v504 = vrot.slane %v499, %v503
    %v505 = vlaneseq
    %v506 = vshrl.u32 %v505, 7
    %v507 = vsub.s32 1, %v506
    %v508 = vrot.slane %v499, %v507
    %v509 = vlaneseq
    %v510 = vshrl.u32 %v509, 7
    %v511 = vsub.s32 2, %v510
    %v512 = vrot.slane %v499, %v511
    %v513 = vlaneseq
    %v514 = vshrl.u32 %v513, 7
    %v515 = vsub.s32 3, %v514
    %v516 = vrot.slane %v499, %v515
    %v517 = vlaneseq
    %v518 = vshrl.u32 %v517, 7
    %v519 = vsub.s32 4, %v518
    %v520 = vrot.slane %v499, %v519
    %v521 = vlaneseq
    %v522 = vshrl.u32 %v521, 7
    %v523 = vsub.s32 5, %v522
    %v524 = vrot.slane %v499, %v523
    %v525 = vlaneseq
    %v526 = vshrl.u32 %v525, 7
    %v527 = vsub.s32 6, %v526
    %v528 = vrot.slane %v499, %v527
    %v792 = vunpack.c.l.b16 %v243
    %v793 = vunpack.c.h.b16 %v243
    %v794 = vunpack.c.l.b16 %v244
    %v795 = vunpack.c.h.b16 %v244
    %v796 = vunpack.c.l.b16 %v245
    %v797 = vunpack.c.h.b16 %v245
    %v798 = vunpack.c.l.b16 %v246
    %v799 = vunpack.c.l.b16 %v247
    %v800 = vunpack.c.h.b16 %v247
    %v801 = vunpack.c.l.b16 %v248
    %v802 = vunpack.c.h.b16 %v248
    %v803 = vunpack.c.l.b16 %v249
    %v804 = vunpack.c.h.b16 %v249
    %v805 = vunpack.c.l.b16 %v250
    %v806 = vunpack.c.l.b16 %v251
    %v807 = vunpack.c.h.b16 %v251
    %v808 = vunpack.c.l.b16 %v252
    %v809 = vunpack.c.h.b16 %v252
    %v810 = vunpack.c.l.b16 %v253
    %v811 = vunpack.c.h.b16 %v253
    %v812 = vunpack.c.l.b16 %v254
    %v813 = vunpack.c.l.b16 %v255
    %v814 = vunpack.c.h.b16 %v255
    %v815 = vunpack.c.l.b16 %v256
    %v816 = vunpack.c.h.b16 %v256
    %v817 = vunpack.c.l.b16 %v257
    %v818 = vunpack.c.h.b16 %v257
    %v819 = vunpack.c.l.b16 %v258
    %v820 = vunpack.c.l.b16 %v259
    %v821 = vunpack.c.h.b16 %v259
    %v822 = vunpack.c.l.b16 %v260
    %v823 = vunpack.c.h.b16 %v260
    %v824 = vunpack.c.l.b16 %v261
    %v825 = vunpack.c.h.b16 %v261
    %v826 = vunpack.c.l.b16 %v262
    %v827 = vunpack.c.l.b16 %v263
    %v828 = vunpack.c.h.b16 %v263
    %v829 = vunpack.c.l.b16 %v264
    %v830 = vunpack.c.h.b16 %v264
    %v831 = vunpack.c.l.b16 %v265
    %v832 = vunpack.c.h.b16 %v265
    %v833 = vunpack.c.l.b16 %v266
    %v834 = vunpack.c.l.b16 %v267
    %v835 = vunpack.c.h.b16 %v267
    %v836 = vunpack.c.l.b16 %v268
    %v837 = vunpack.c.h.b16 %v268
    %v838 = vunpack.c.l.b16 %v269
    %v839 = vunpack.c.h.b16 %v269
    %v840 = vunpack.c.l.b16 %v270
    %v841 = vunpack.c.l.b16 %v271
    %v842 = vunpack.c.h.b16 %v271
    %v843 = vunpack.c.l.b16 %v272
    %v844 = vunpack.c.h.b16 %v272
    %v845 = vunpack.c.l.b16 %v273
    %v846 = vunpack.c.h.b16 %v273
    %v847 = vunpack.c.l.b16 %v274
    %v848 = vunpack.c.l.b16 %v275
    %v849 = vunpack.c.h.b16 %v275
    %v850 = vunpack.c.l.b16 %v276
    %v851 = vunpack.c.h.b16 %v276
    %v852 = vunpack.c.l.b16 %v277
    %v853 = vunpack.c.h.b16 %v277
    %v854 = vunpack.c.l.b16 %v278
    %v855 = vunpack.c.l.b16 %v279
    %v856 = vunpack.c.h.b16 %v279
    %v857 = vunpack.c.l.b16 %v280
    %v858 = vunpack.c.h.b16 %v280
    %v859 = vunpack.c.l.b16 %v281
    %v860 = vunpack.c.h.b16 %v281
    %v861 = vunpack.c.l.b16 %v282
    %v862 = vunpack.c.l.b16 %v283
    %v863 = vunpack.c.h.b16 %v283
    %v864 = vunpack.c.l.b16 %v284
    %v865 = vunpack.c.h.b16 %v284
    %v866 = vunpack.c.l.b16 %v285
    %v867 = vunpack.c.h.b16 %v285
    %v868 = vunpack.c.l.b16 %v286
    %v869 = vunpack.c.l.b16 %v287
    %v870 = vunpack.c.h.b16 %v287
    %v871 = vunpack.c.l.b16 %v288
    %v872 = vunpack.c.h.b16 %v288
    %v873 = vunpack.c.l.b16 %v289
    %v874 = vunpack.c.h.b16 %v289
    %v875 = vunpack.c.l.b16 %v290
    %v876 = vunpack.c.l.b16 %v291
    %v877 = vunpack.c.h.b16 %v291
    %v878 = vunpack.c.l.b16 %v292
    %v879 = vunpack.c.h.b16 %v292
    %v880 = vunpack.c.l.b16 %v293
    %v881 = vunpack.c.h.b16 %v293
    %v882 = vunpack.c.l.b16 %v294
    %v883 = vunpack.c.l.b16 %v295
    %v884 = vunpack.c.h.b16 %v295
    %v885 = vunpack.c.l.b16 %v296
    %v886 = vunpack.c.h.b16 %v296
    %v887 = vunpack.c.l.b16 %v297
    %v888 = vunpack.c.h.b16 %v297
    %v889 = vunpack.c.l.b16 %v298
    %v890 = vunpack.c.l.b16 %v299
    %v891 = vunpack.c.h.b16 %v299
    %v892 = vunpack.c.l.b16 %v300
    %v893 = vunpack.c.h.b16 %v300
    %v894 = vunpack.c.l.b16 %v301
    %v895 = vunpack.c.h.b16 %v301
    %v896 = vunpack.c.l.b16 %v302
    %v897 = vunpack.c.l.b16 %v303
    %v898 = vunpack.c.h.b16 %v303
    %v899 = vunpack.c.l.b16 %v304
    %v900 = vunpack.c.h.b16 %v304
    %v901 = vunpack.c.l.b16 %v305
    %v902 = vunpack.c.h.b16 %v305
    %v903 = vunpack.c.l.b16 %v306
    %v904 = vunpack.c.l.b16 %v307
    %v905 = vunpack.c.h.b16 %v307
    %v906 = vunpack.c.l.b16 %v308
    %v907 = vunpack.c.h.b16 %v308
    %v908 = vunpack.c.l.b16 %v309
    %v909 = vunpack.c.h.b16 %v309
    %v910 = vunpack.c.l.b16 %v310
    %v911 = vunpack.c.l.b16 %v311
    %v912 = vunpack.c.h.b16 %v311
    %v913 = vunpack.c.l.b16 %v312
    %v914 = vunpack.c.h.b16 %v312
    %v915 = vunpack.c.l.b16 %v313
    %v916 = vunpack.c.h.b16 %v313
    %v917 = vunpack.c.l.b16 %v314
    %v918 = vunpack.c.l.b16 %v315
    %v919 = vunpack.c.h.b16 %v315
    %v920 = vunpack.c.l.b16 %v316
    %v921 = vunpack.c.h.b16 %v316
    %v922 = vunpack.c.l.b16 %v317
    %v923 = vunpack.c.h.b16 %v317
    %v924 = vunpack.c.l.b16 %v318
    %v925 = vunpack.c.l.b16 %v319
    %v926 = vunpack.c.h.b16 %v319
    %v927 = vunpack.c.l.b16 %v320
    %v928 = vunpack.c.h.b16 %v320
    %v929 = vunpack.c.l.b16 %v321
    %v930 = vunpack.c.h.b16 %v321
    %v931 = vunpack.c.l.b16 %v322
    %v932 = vunpack.c.l.b16 %v323
    %v933 = vunpack.c.h.b16 %v323
    %v934 = vunpack.c.l.b16 %v324
    %v935 = vunpack.c.h.b16 %v324
    %v936 = vunpack.c.l.b16 %v325
    %v937 = vunpack.c.h.b16 %v325
    %v938 = vunpack.c.l.b16 %v326
    %v939 = vunpack.c.l.b16 %v327
    %v940 = vunpack.c.h.b16 %v327
    %v941 = vunpack.c.l.b16 %v328
    %v942 = vunpack.c.h.b16 %v328
    %v943 = vunpack.c.l.b16 %v329
    %v944 = vunpack.c.h.b16 %v329
    %v945 = vunpack.c.l.b16 %v330
    %v946 = vunpack.c.l.b16 %v331
    %v947 = vunpack.c.h.b16 %v331
    %v948 = vunpack.c.l.b16 %v332
    %v949 = vunpack.c.h.b16 %v332
    %v950 = vunpack.c.l.b16 %v333
    %v951 = vunpack.c.h.b16 %v333
    %v952 = vunpack.c.l.b16 %v334
    %v953 = vunpack.c.l.b16 %v335
    %v954 = vunpack.c.h.b16 %v335
    %v955 = vunpack.c.l.b16 %v336
    %v956 = vunpack.c.h.b16 %v336
    %v957 = vunpack.c.l.b16 %v337
    %v958 = vunpack.c.h.b16 %v337
    %v959 = vunpack.c.l.b16 %v338
    %v960 = vunpack.c.l.b16 %v339
    %v961 = vunpack.c.h.b16 %v339
    %v962 = vunpack.c.l.b16 %v340
    %v963 = vunpack.c.h.b16 %v340
    %v964 = vunpack.c.l.b16 %v341
    %v965 = vunpack.c.h.b16 %v341
    %v966 = vunpack.c.l.b16 %v342
    %v967 = vunpack.c.l.b16 %v343
    %v968 = vunpack.c.h.b16 %v343
    %v969 = vunpack.c.l.b16 %v344
    %v970 = vunpack.c.h.b16 %v344
    %v971 = vunpack.c.l.b16 %v345
    %v972 = vunpack.c.h.b16 %v345
    %v973 = vunpack.c.l.b16 %v346
    %v974 = vunpack.c.l.b16 %v347
    %v975 = vunpack.c.h.b16 %v347
    %v976 = vunpack.c.l.b16 %v348
    %v977 = vunpack.c.h.b16 %v348
    %v978 = vunpack.c.l.b16 %v349
    %v979 = vunpack.c.h.b16 %v349
    %v980 = vunpack.c.l.b16 %v350
    %v981 = vunpack.c.l.b16 %v351
    %v982 = vunpack.c.h.b16 %v351
    %v983 = vunpack.c.l.b16 %v352
    %v984 = vunpack.c.h.b16 %v352
    %v985 = vunpack.c.l.b16 %v353
    %v986 = vunpack.c.h.b16 %v353
    %v987 = vunpack.c.l.b16 %v354
    %v988 = vunpack.c.l.b16 %v355
    %v989 = vunpack.c.h.b16 %v355
    %v990 = vunpack.c.l.b16 %v356
    %v991 = vunpack.c.h.b16 %v356
    %v992 = vunpack.c.l.b16 %v357
    %v993 = vunpack.c.h.b16 %v357
    %v994 = vunpack.c.l.b16 %v358
    %v995 = vunpack.c.l.b16 %v359
    %v996 = vunpack.c.h.b16 %v359
    %v997 = vunpack.c.l.b16 %v360
    %v998 = vunpack.c.h.b16 %v360
    %v999 = vunpack.c.l.b16 %v361
    %v1000 = vunpack.c.h.b16 %v361
    %v1001 = vunpack.c.l.b16 %v362
    %v1002 = vunpack.c.l.b16 %v363
    %v1003 = vunpack.c.h.b16 %v363
    %v1004 = vunpack.c.l.b16 %v364
    %v1005 = vunpack.c.h.b16 %v364
    %v1006 = vunpack.c.l.b16 %v365
    %v1007 = vunpack.c.h.b16 %v365
    %v1008 = vunpack.c.l.b16 %v366
    %v1009 = vunpack.c.l.b16 %v367
    %v1010 = vunpack.c.h.b16 %v367
    %v1011 = vunpack.c.l.b16 %v368
    %v1012 = vunpack.c.h.b16 %v368
    %v1013 = vunpack.c.l.b16 %v369
    %v1014 = vunpack.c.h.b16 %v369
    %v1015 = vunpack.c.l.b16 %v370
    %v1016 = vunpack.c.l.b16 %v371
    %v1017 = vunpack.c.h.b16 %v371
    %v1018 = vunpack.c.l.b16 %v372
    %v1019 = vunpack.c.h.b16 %v372
    %v1020 = vunpack.c.l.b16 %v373
    %v1021 = vunpack.c.h.b16 %v373
    %v1022 = vunpack.c.l.b16 %v374
    %v1023 = vunpack.c.l.b16 %v375
    %v1024 = vunpack.c.h.b16 %v375
    %v1025 = vunpack.c.l.b16 %v376
    %v1026 = vunpack.c.h.b16 %v376
    %v1027 = vunpack.c.l.b16 %v377
    %v1028 = vunpack.c.h.b16 %v377
    %v1029 = vunpack.c.l.b16 %v378
    %v1030 = vunpack.c.l.b16 %v379
    %v1031 = vunpack.c.h.b16 %v379
    %v1032 = vunpack.c.l.b16 %v380
    %v1033 = vunpack.c.h.b16 %v380
    %v1034 = vunpack.c.l.b16 %v381
    %v1035 = vunpack.c.h.b16 %v381
    %v1036 = vunpack.c.l.b16 %v382
    %v1037 = vunpack.c.l.b16 %v383
    %v1038 = vunpack.c.h.b16 %v383
    %v1039 = vunpack.c.l.b16 %v384
    %v1040 = vunpack.c.h.b16 %v384
    %v1041 = vunpack.c.l.b16 %v385
    %v1042 = vunpack.c.h.b16 %v385
    %v1043 = vunpack.c.l.b16 %v386
    %v1044 = vunpack.c.l.b16 %v387
    %v1045 = vunpack.c.h.b16 %v387
    %v1046 = vunpack.c.l.b16 %v388
    %v1047 = vunpack.c.h.b16 %v388
    %v1048 = vunpack.c.l.b16 %v389
    %v1049 = vunpack.c.h.b16 %v389
    %v1050 = vunpack.c.l.b16 %v390
    %v1051 = vunpack.c.l.b16 %v391
    %v1052 = vunpack.c.h.b16 %v391
    %v1053 = vunpack.c.l.b16 %v392
    %v1054 = vunpack.c.h.b16 %v392
    %v1055 = vunpack.c.l.b16 %v393
    %v1056 = vunpack.c.h.b16 %v393
    %v1057 = vunpack.c.l.b16 %v394
    %v1058 = vunpack.c.l.b16 %v395
    %v1059 = vunpack.c.h.b16 %v395
    %v1060 = vunpack.c.l.b16 %v396
    %v1061 = vunpack.c.h.b16 %v396
    %v1062 = vunpack.c.l.b16 %v397
    %v1063 = vunpack.c.h.b16 %v397
    %v1064 = vunpack.c.l.b16 %v398
    %v1065 = vunpack.c.l.b16 %v399
    %v1066 = vunpack.c.h.b16 %v399
    %v1067 = vunpack.c.l.b16 %v400
    %v1068 = vunpack.c.h.b16 %v400
    %v1069 = vunpack.c.l.b16 %v401
    %v1070 = vunpack.c.h.b16 %v401
    %v1071 = vunpack.c.l.b16 %v402
    %v1072 = vunpack.c.l.b16 %v403
    %v1073 = vunpack.c.h.b16 %v403
    %v1074 = vunpack.c.l.b16 %v404
    %v1075 = vunpack.c.h.b16 %v404
    %v1076 = vunpack.c.l.b16 %v405
    %v1077 = vunpack.c.h.b16 %v405
    %v1078 = vunpack.c.l.b16 %v406
    %v1079 = vunpack.c.l.b16 %v407
    %v1080 = vunpack.c.h.b16 %v407
    %v1081 = vunpack.c.l.b16 %v408
    %v1082 = vunpack.c.h.b16 %v408
    %v1083 = vunpack.c.l.b16 %v409
    %v1084 = vunpack.c.h.b16 %v409
    %v1085 = vunpack.c.l.b16 %v410
    %v1086 = vunpack.c.l.b16 %v411
    %v1087 = vunpack.c.h.b16 %v411
    %v1088 = vunpack.c.l.b16 %v412
    %v1089 = vunpack.c.h.b16 %v412
    %v1090 = vunpack.c.l.b16 %v413
    %v1091 = vunpack.c.h.b16 %v413
    %v1092 = vunpack.c.l.b16 %v414
    %v1093 = vunpack.c.l.b16 %v415
    %v1094 = vunpack.c.h.b16 %v415
    %v1095 = vunpack.c.l.b16 %v416
    %v1096 = vunpack.c.h.b16 %v416
    %v1097 = vunpack.c.l.b16 %v417
    %v1098 = vunpack.c.h.b16 %v417
    %v1099 = vunpack.c.l.b16 %v418
    %v1100 = vunpack.c.l.b16 %v419
    %v1101 = vunpack.c.h.b16 %v419
    %v1102 = vunpack.c.l.b16 %v420
    %v1103 = vunpack.c.h.b16 %v420
    %v1104 = vunpack.c.l.b16 %v421
    %v1105 = vunpack.c.h.b16 %v421
    %v1106 = vunpack.c.l.b16 %v422
    %v1107 = vunpack.c.l.b16 %v423
    %v1108 = vunpack.c.h.b16 %v423
    %v1109 = vunpack.c.l.b16 %v424
    %v1110 = vunpack.c.h.b16 %v424
    %v1111 = vunpack.c.l.b16 %v425
    %v1112 = vunpack.c.h.b16 %v425
    %v1113 = vunpack.c.l.b16 %v426
    %v1114 = vunpack.c.l.b16 %v427
    %v1115 = vunpack.c.h.b16 %v427
    %v1116 = vunpack.c.l.b16 %v428
    %v1117 = vunpack.c.h.b16 %v428
    %v1118 = vunpack.c.l.b16 %v429
    %v1119 = vunpack.c.h.b16 %v429
    %v1120 = vunpack.c.l.b16 %v430
    %v1121 = vunpack.c.l.b16 %v431
    %v1122 = vunpack.c.h.b16 %v431
    %v1123 = vunpack.c.l.b16 %v432
    %v1124 = vunpack.c.h.b16 %v432
    %v1125 = vunpack.c.l.b16 %v433
    %v1126 = vunpack.c.h.b16 %v433
    %v1127 = vunpack.c.l.b16 %v434
    %v1128 = vunpack.c.l.b16 %v435
    %v1129 = vunpack.c.h.b16 %v435
    %v1130 = vunpack.c.l.b16 %v436
    %v1131 = vunpack.c.h.b16 %v436
    %v1132 = vunpack.c.l.b16 %v437
    %v1133 = vunpack.c.h.b16 %v437
    %v1134 = vunpack.c.l.b16 %v438
    %v1135 = vunpack.c.l.b16 %v439
    %v1136 = vunpack.c.h.b16 %v439
    %v1137 = vunpack.c.l.b16 %v440
    %v1138 = vunpack.c.h.b16 %v440
    %v1139 = vunpack.c.l.b16 %v441
    %v1140 = vunpack.c.h.b16 %v441
    %v1141 = vunpack.c.l.b16 %v442
    %v1142 = vunpack.c.l.b16 %v443
    %v1143 = vunpack.c.h.b16 %v443
    %v1144 = vunpack.c.l.b16 %v444
    %v1145 = vunpack.c.h.b16 %v444
    %v1146 = vunpack.c.l.b16 %v445
    %v1147 = vunpack.c.h.b16 %v445
    %v1148 = vunpack.c.l.b16 %v446
    %v1149 = vunpack.c.l.b16 %v447
    %v1150 = vunpack.c.h.b16 %v447
    %v1151 = vunpack.c.l.b16 %v448
    %v1152 = vunpack.c.h.b16 %v448
    %v1153 = vunpack.c.l.b16 %v449
    %v1154 = vunpack.c.h.b16 %v449
    %v1155 = vunpack.c.l.b16 %v450
    %v1156 = vunpack.c.l.b16 %v451
    %v1157 = vunpack.c.h.b16 %v451
    %v1158 = vunpack.c.l.b16 %v452
    %v1159 = vunpack.c.h.b16 %v452
    %v1160 = vunpack.c.l.b16 %v453
    %v1161 = vunpack.c.h.b16 %v453
    %v1162 = vunpack.c.l.b16 %v454
    %v1163 = vunpack.c.l.b16 %v455
    %v1164 = vunpack.c.h.b16 %v455
    %v1165 = vunpack.c.l.b16 %v456
    %v1166 = vunpack.c.h.b16 %v456
    %v1167 = vunpack.c.l.b16 %v457
    %v1168 = vunpack.c.h.b16 %v457
    %v1169 = vunpack.c.l.b16 %v458
    %v1170 = vunpack.c.l.b16 %v459
    %v1171 = vunpack.c.h.b16 %v459
    %v1172 = vunpack.c.l.b16 %v460
    %v1173 = vunpack.c.h.b16 %v460
    %v1174 = vunpack.c.l.b16 %v461
    %v1175 = vunpack.c.h.b16 %v461
    %v1176 = vunpack.c.l.b16 %v462
    %v1177 = vunpack.c.l.b16 %v463
    %v1178 = vunpack.c.h.b16 %v463
    %v1179 = vunpack.c.l.b16 %v464
    %v1180 = vunpack.c.h.b16 %v464
    %v1181 = vunpack.c.l.b16 %v465
    %v1182 = vunpack.c.h.b16 %v465
    %v1183 = vunpack.c.l.b16 %v466
    %v1184 = vunpack.c.l.b16 %v467
    %v1185 = vunpack.c.h.b16 %v467
    %v1186 = vunpack.c.l.b16 %v468
    %v1187 = vunpack.c.h.b16 %v468
    %v1188 = vunpack.c.l.b16 %v469
    %v1189 = vunpack.c.h.b16 %v469
    %v1190 = vunpack.c.l.b16 %v470
    %v1191 = vunpack.c.l.b16 %v471
    %v1192 = vunpack.c.h.b16 %v471
    %v1193 = vunpack.c.l.b16 %v472
    %v1194 = vunpack.c.h.b16 %v472
    %v1195 = vunpack.c.l.b16 %v473
    %v1196 = vunpack.c.h.b16 %v473
    %v1197 = vunpack.c.l.b16 %v474
    %v1198 = vunpack.c.l.b16 %v475
    %v1199 = vunpack.c.h.b16 %v475
    %v1200 = vunpack.c.l.b16 %v476
    %v1201 = vunpack.c.h.b16 %v476
    %v1202 = vunpack.c.l.b16 %v477
    %v1203 = vunpack.c.h.b16 %v477
    %v1204 = vunpack.c.l.b16 %v478
    %v1205 = vunpack.c.l.b16 %v479
    %v1206 = vunpack.c.h.b16 %v479
    %v1207 = vunpack.c.l.b16 %v480
    %v1208 = vunpack.c.h.b16 %v480
    %v1209 = vunpack.c.l.b16 %v481
    %v1210 = vunpack.c.h.b16 %v481
    %v1211 = vunpack.c.l.b16 %v482
    %v1212 = vunpack.c.l.b16 %v483
    %v1213 = vunpack.c.h.b16 %v483
    %v1214 = vunpack.c.l.b16 %v484
    %v1215 = vunpack.c.h.b16 %v484
    %v1216 = vunpack.c.l.b16 %v485
    %v1217 = vunpack.c.h.b16 %v485
    %v1218 = vunpack.c.l.b16 %v486
    %v1219 = vunpack.c.l.b16 %v487
    %v1220 = vunpack.c.h.b16 %v487
    %v1221 = vunpack.c.l.b16 %v488
    %v1222 = vunpack.c.h.b16 %v488
    %v1223 = vunpack.c.l.b16 %v489
    %v1224 = vunpack.c.h.b16 %v489
    %v1225 = vunpack.c.l.b16 %v490
    %v1226 = vunpack.c.l.b16 %v491
    %v1227 = vunpack.c.h.b16 %v491
    %v1228 = vunpack.c.l.b16 %v492
    %v1229 = vunpack.c.h.b16 %v492
    %v1230 = vunpack.c.l.b16 %v493
    %v1231 = vunpack.c.h.b16 %v493
    %v1232 = vunpack.c.l.b16 %v494
    %v1233 = vunpack.c.l.b16 %v495
    %v1234 = vunpack.c.h.b16 %v495
    %v1235 = vunpack.c.l.b16 %v496
    %v1236 = vunpack.c.h.b16 %v496
    %v1237 = vunpack.c.l.b16 %v497
    %v1238 = vunpack.c.h.b16 %v497
    %v1239 = vunpack.c.l.b16 %v498
    %v1240 = vpack.c.b16 %v799, %v792
    %v1241 = vpack.c.b16 %v800, %v793
    %v1242 = vpack.c.b16 %v801, %v794
    %v1243 = vpack.c.b16 %v802, %v795
    %v1244 = vpack.c.b16 %v803, %v796
    %v1245 = vpack.c.b16 %v804, %v797
    %v1246 = vpack.c.b16 %v805, %v798
    %v1247 = vpack.c.b16 %v813, %v806
    %v1248 = vpack.c.b16 %v814, %v807
    %v1249 = vpack.c.b16 %v815, %v808
    %v1250 = vpack.c.b16 %v816, %v809
    %v1251 = vpack.c.b16 %v817, %v810
    %v1252 = vpack.c.b16 %v818, %v811
    %v1253 = vpack.c.b16 %v819, %v812
    %v1254 = vpack.c.b16 %v827, %v820
    %v1255 = vpack.c.b16 %v828, %v821
    %v1256 = vpack.c.b16 %v829, %v822
    %v1257 = vpack.c.b16 %v830, %v823
    %v1258 = vpack.c.b16 %v831, %v824
    %v1259 = vpack.c.b16 %v832, %v825
    %v1260 = vpack.c.b16 %v833, %v826
    %v1261 = vpack.c.b16 %v841, %v834
    %v1262 = vpack.c.b16 %v842, %v835
    %v1263 = vpack.c.b16 %v843, %v836
    %v1264 = vpack.c.b16 %v844, %v837
    %v1265 = vpack.c.b16 %v845, %v838
    %v1266 = vpack.c.b16 %v846, %v839
    %v1267 = vpack.c.b16 %v847, %v840
    %v1268 = vpack.c.b16 %v855, %v848
    %v1269 = vpack.c.b16 %v856, %v849
    %v1270 = vpack.c.b16 %v857, %v850
    %v1271 = vpack.c.b16 %v858, %v851
    %v1272 = vpack.c.b16 %v859, %v852
    %v1273 = vpack.c.b16 %v860, %v853
    %v1274 = vpack.c.b16 %v861, %v854
    %v1275 = vpack.c.b16 %v869, %v862
    %v1276 = vpack.c.b16 %v870, %v863
    %v1277 = vpack.c.b16 %v871, %v864
    %v1278 = vpack.c.b16 %v872, %v865
    %v1279 = vpack.c.b16 %v873, %v866
    %v1280 = vpack.c.b16 %v874, %v867
    %v1281 = vpack.c.b16 %v875, %v868
    %v1282 = vpack.c.b16 %v883, %v876
    %v1283 = vpack.c.b16 %v884, %v877
    %v1284 = vpack.c.b16 %v885, %v878
    %v1285 = vpack.c.b16 %v886, %v879
    %v1286 = vpack.c.b16 %v887, %v880
    %v1287 = vpack.c.b16 %v888, %v881
    %v1288 = vpack.c.b16 %v889, %v882
    %v1289 = vpack.c.b16 %v897, %v890
    %v1290 = vpack.c.b16 %v898, %v891
    %v1291 = vpack.c.b16 %v899, %v892
    %v1292 = vpack.c.b16 %v900, %v893
    %v1293 = vpack.c.b16 %v901, %v894
    %v1294 = vpack.c.b16 %v902, %v895
    %v1295 = vpack.c.b16 %v903, %v896
    %v1296 = vpack.c.b16 %v911, %v904
    %v1297 = vpack.c.b16 %v912, %v905
    %v1298 = vpack.c.b16 %v913, %v906
    %v1299 = vpack.c.b16 %v914, %v907
    %v1300 = vpack.c.b16 %v915, %v908
    %v1301 = vpack.c.b16 %v916, %v909
    %v1302 = vpack.c.b16 %v917, %v910
    %v1303 = vpack.c.b16 %v925, %v918
    %v1304 = vpack.c.b16 %v926, %v919
    %v1305 = vpack.c.b16 %v927, %v920
    %v1306 = vpack.c.b16 %v928, %v921
    %v1307 = vpack.c.b16 %v929, %v922
    %v1308 = vpack.c.b16 %v930, %v923
    %v1309 = vpack.c.b16 %v931, %v924
    %v1310 = vpack.c.b16 %v939, %v932
    %v1311 = vpack.c.b16 %v940, %v933
    %v1312 = vpack.c.b16 %v941, %v934
    %v1313 = vpack.c.b16 %v942, %v935
    %v1314 = vpack.c.b16 %v943, %v936
    %v1315 = vpack.c.b16 %v944, %v937
    %v1316 = vpack.c.b16 %v945, %v938
    %v1317 = vpack.c.b16 %v953, %v946
    %v1318 = vpack.c.b16 %v954, %v947
    %v1319 = vpack.c.b16 %v955, %v948
    %v1320 = vpack.c.b16 %v956, %v949
    %v1321 = vpack.c.b16 %v957, %v950
    %v1322 = vpack.c.b16 %v958, %v951
    %v1323 = vpack.c.b16 %v959, %v952
    %v1324 = vpack.c.b16 %v967, %v960
    %v1325 = vpack.c.b16 %v968, %v961
    %v1326 = vpack.c.b16 %v969, %v962
    %v1327 = vpack.c.b16 %v970, %v963
    %v1328 = vpack.c.b16 %v971, %v964
    %v1329 = vpack.c.b16 %v972, %v965
    %v1330 = vpack.c.b16 %v973, %v966
    %v1331 = vpack.c.b16 %v981, %v974
    %v1332 = vpack.c.b16 %v982, %v975
    %v1333 = vpack.c.b16 %v983, %v976
    %v1334 = vpack.c.b16 %v984, %v977
    %v1335 = vpack.c.b16 %v985, %v978
    %v1336 = vpack.c.b16 %v986, %v979
    %v1337 = vpack.c.b16 %v987, %v980
    %v1338 = vpack.c.b16 %v995, %v988
    %v1339 = vpack.c.b16 %v996, %v989
    %v1340 = vpack.c.b16 %v997, %v990
    %v1341 = vpack.c.b16 %v998, %v991
    %v1342 = vpack.c.b16 %v999, %v992
    %v1343 = vpack.c.b16 %v1000, %v993
    %v1344 = vpack.c.b16 %v1001, %v994
    %v1345 = vpack.c.b16 %v1009, %v1002
    %v1346 = vpack.c.b16 %v1010, %v1003
    %v1347 = vpack.c.b16 %v1011, %v1004
    %v1348 = vpack.c.b16 %v1012, %v1005
    %v1349 = vpack.c.b16 %v1013, %v1006
    %v1350 = vpack.c.b16 %v1014, %v1007
    %v1351 = vpack.c.b16 %v1015, %v1008
    %v1352 = vpack.c.b16 %v1023, %v1016
    %v1353 = vpack.c.b16 %v1024, %v1017
    %v1354 = vpack.c.b16 %v1025, %v1018
    %v1355 = vpack.c.b16 %v1026, %v1019
    %v1356 = vpack.c.b16 %v1027, %v1020
    %v1357 = vpack.c.b16 %v1028, %v1021
    %v1358 = vpack.c.b16 %v1029, %v1022
    %v1359 = vpack.c.b16 %v1037, %v1030
    %v1360 = vpack.c.b16 %v1038, %v1031
    %v1361 = vpack.c.b16 %v1039, %v1032
    %v1362 = vpack.c.b16 %v1040, %v1033
    %v1363 = vpack.c.b16 %v1041, %v1034
    %v1364 = vpack.c.b16 %v1042, %v1035
    %v1365 = vpack.c.b16 %v1043, %v1036
    %v1366 = vpack.c.b16 %v1051, %v1044
    %v1367 = vpack.c.b16 %v1052, %v1045
    %v1368 = vpack.c.b16 %v1053, %v1046
    %v1369 = vpack.c.b16 %v1054, %v1047
    %v1370 = vpack.c.b16 %v1055, %v1048
    %v1371 = vpack.c.b16 %v1056, %v1049
    %v1372 = vpack.c.b16 %v1057, %v1050
    %v1373 = vpack.c.b16 %v1065, %v1058
    %v1374 = vpack.c.b16 %v1066, %v1059
    %v1375 = vpack.c.b16 %v1067, %v1060
    %v1376 = vpack.c.b16 %v1068, %v1061
    %v1377 = vpack.c.b16 %v1069, %v1062
    %v1378 = vpack.c.b16 %v1070, %v1063
    %v1379 = vpack.c.b16 %v1071, %v1064
    %v1380 = vpack.c.b16 %v1079, %v1072
    %v1381 = vpack.c.b16 %v1080, %v1073
    %v1382 = vpack.c.b16 %v1081, %v1074
    %v1383 = vpack.c.b16 %v1082, %v1075
    %v1384 = vpack.c.b16 %v1083, %v1076
    %v1385 = vpack.c.b16 %v1084, %v1077
    %v1386 = vpack.c.b16 %v1085, %v1078
    %v1387 = vpack.c.b16 %v1093, %v1086
    %v1388 = vpack.c.b16 %v1094, %v1087
    %v1389 = vpack.c.b16 %v1095, %v1088
    %v1390 = vpack.c.b16 %v1096, %v1089
    %v1391 = vpack.c.b16 %v1097, %v1090
    %v1392 = vpack.c.b16 %v1098, %v1091
    %v1393 = vpack.c.b16 %v1099, %v1092
    %v1394 = vpack.c.b16 %v1107, %v1100
    %v1395 = vpack.c.b16 %v1108, %v1101
    %v1396 = vpack.c.b16 %v1109, %v1102
    %v1397 = vpack.c.b16 %v1110, %v1103
    %v1398 = vpack.c.b16 %v1111, %v1104
    %v1399 = vpack.c.b16 %v1112, %v1105
    %v1400 = vpack.c.b16 %v1113, %v1106
    %v1401 = vpack.c.b16 %v1121, %v1114
    %v1402 = vpack.c.b16 %v1122, %v1115
    %v1403 = vpack.c.b16 %v1123, %v1116
    %v1404 = vpack.c.b16 %v1124, %v1117
    %v1405 = vpack.c.b16 %v1125, %v1118
    %v1406 = vpack.c.b16 %v1126, %v1119
    %v1407 = vpack.c.b16 %v1127, %v1120
    %v1408 = vpack.c.b16 %v1135, %v1128
    %v1409 = vpack.c.b16 %v1136, %v1129
    %v1410 = vpack.c.b16 %v1137, %v1130
    %v1411 = vpack.c.b16 %v1138, %v1131
    %v1412 = vpack.c.b16 %v1139, %v1132
    %v1413 = vpack.c.b16 %v1140, %v1133
    %v1414 = vpack.c.b16 %v1141, %v1134
    %v1415 = vpack.c.b16 %v1149, %v1142
    %v1416 = vpack.c.b16 %v1150, %v1143
    %v1417 = vpack.c.b16 %v1151, %v1144
    %v1418 = vpack.c.b16 %v1152, %v1145
    %v1419 = vpack.c.b16 %v1153, %v1146
    %v1420 = vpack.c.b16 %v1154, %v1147
    %v1421 = vpack.c.b16 %v1155, %v1148
    %v1422 = vpack.c.b16 %v1163, %v1156
    %v1423 = vpack.c.b16 %v1164, %v1157
    %v1424 = vpack.c.b16 %v1165, %v1158
    %v1425 = vpack.c.b16 %v1166, %v1159
    %v1426 = vpack.c.b16 %v1167, %v1160
    %v1427 = vpack.c.b16 %v1168, %v1161
    %v1428 = vpack.c.b16 %v1169, %v1162
    %v1429 = vpack.c.b16 %v1177, %v1170
    %v1430 = vpack.c.b16 %v1178, %v1171
    %v1431 = vpack.c.b16 %v1179, %v1172
    %v1432 = vpack.c.b16 %v1180, %v1173
    %v1433 = vpack.c.b16 %v1181, %v1174
    %v1434 = vpack.c.b16 %v1182, %v1175
    %v1435 = vpack.c.b16 %v1183, %v1176
    %v1436 = vpack.c.b16 %v1191, %v1184
    %v1437 = vpack.c.b16 %v1192, %v1185
    %v1438 = vpack.c.b16 %v1193, %v1186
    %v1439 = vpack.c.b16 %v1194, %v1187
    %v1440 = vpack.c.b16 %v1195, %v1188
    %v1441 = vpack.c.b16 %v1196, %v1189
    %v1442 = vpack.c.b16 %v1197, %v1190
    %v1443 = vpack.c.b16 %v1205, %v1198
    %v1444 = vpack.c.b16 %v1206, %v1199
    %v1445 = vpack.c.b16 %v1207, %v1200
    %v1446 = vpack.c.b16 %v1208, %v1201
    %v1447 = vpack.c.b16 %v1209, %v1202
    %v1448 = vpack.c.b16 %v1210, %v1203
    %v1449 = vpack.c.b16 %v1211, %v1204
    %v1450 = vpack.c.b16 %v1219, %v1212
    %v1451 = vpack.c.b16 %v1220, %v1213
    %v1452 = vpack.c.b16 %v1221, %v1214
    %v1453 = vpack.c.b16 %v1222, %v1215
    %v1454 = vpack.c.b16 %v1223, %v1216
    %v1455 = vpack.c.b16 %v1224, %v1217
    %v1456 = vpack.c.b16 %v1225, %v1218
    %v1457 = vpack.c.b16 %v1233, %v1226
    %v1458 = vpack.c.b16 %v1234, %v1227
    %v1459 = vpack.c.b16 %v1235, %v1228
    %v1460 = vpack.c.b16 %v1236, %v1229
    %v1461 = vpack.c.b16 %v1237, %v1230
    %v1462 = vpack.c.b16 %v1238, %v1231
    %v1463 = vpack.c.b16 %v1239, %v1232
    %1688 = vmatprep.subr.bf16.mxu0 %v1241
    %1689 = vmatpush1.bf16.msra.mxu0 %v1240
    %1690 = vmatprep.subr.bf16.mxu0 %v1248
    %1691 = vmatpush1.bf16.msra.mxu0 %v1247
    %1692 = vmatprep.subr.bf16.mxu0 %v1255
    %1693 = vmatpush1.bf16.msra.mxu0 %v1254
    %1694 = vmatprep.subr.bf16.mxu0 %v1262
    %1695 = vmatpush1.bf16.msra.mxu0 %v1261
    %1696 = vmatprep.subr.bf16.mxu0 %v1269
    %1697 = vmatpush1.bf16.msra.mxu0 %v1268
    %1698 = vmatprep.subr.bf16.mxu0 %v1276
    %1699 = vmatpush1.bf16.msra.mxu0 %v1275
    %1700 = vmatprep.subr.bf16.mxu0 %v1283
    %1701 = vmatpush1.bf16.msra.mxu0 %v1282
    %1702 = vmatprep.subr.bf16.mxu0 %v1290
    %1703 = vmatpush1.bf16.msra.mxu0 %v1289
    %1704 = vmatprep.subr.bf16.mxu0 %v1297
    %1705 = vmatpush1.bf16.msra.mxu0 %v1296
    %1706 = vmatprep.subr.bf16.mxu0 %v1304
    %1707 = vmatpush1.bf16.msra.mxu0 %v1303
    %1708 = vmatprep.subr.bf16.mxu0 %v1311
    %1709 = vmatpush1.bf16.msra.mxu0 %v1310
    %1710 = vmatprep.subr.bf16.mxu0 %v1318
    %1711 = vmatpush1.bf16.msra.mxu0 %v1317
    %1712 = vmatprep.subr.bf16.mxu0 %v1325
    %1713 = vmatpush1.bf16.msra.mxu0 %v1324
    %1714 = vmatprep.subr.bf16.mxu0 %v1332
    %1715 = vmatpush1.bf16.msra.mxu0 %v1331
    %1716 = vmatprep.subr.bf16.mxu0 %v1339
    %1717 = vmatpush1.bf16.msra.mxu0 %v1338
    %1718 = vmatprep.subr.bf16.mxu0 %v1346
    %1719 = vmatpush1.bf16.msra.mxu0 %v1345
    %1720 = vmatprep.mubr.bf16.mxu0 %v240
    %1721 = vmatmul.mubr.bf16.gmra.mrb[0].mxu0 %v239
    %v1722 = vpop.f32.mrb[0].mxu0
    %v1723 = vadd.f32 %v504, %v1722
    %v1724 = vpop.f32.mrb[0].mxu0
    %v1725 = vadd.f32 %v508, %v1724
    %v1726 = vpop.f32.mrb[0].mxu0
    %v1727 = vadd.f32 %v504, %v1726
    %v1728 = vpop.f32.mrb[0].mxu0
    %v1729 = vadd.f32 %v508, %v1728
    %1730 = vdwg.mxu0
    %1731 = vmatprep.subr.bf16.mxu0 %v1353
    %1732 = vmatpush1.bf16.msra.mxu0 %v1352
    %1733 = vmatprep.subr.bf16.mxu0 %v1360
    %1734 = vmatpush1.bf16.msra.mxu0 %v1359
    %1735 = vmatprep.subr.bf16.mxu0 %v1367
    %1736 = vmatpush1.bf16.msra.mxu0 %v1366
    %1737 = vmatprep.subr.bf16.mxu0 %v1374
    %1738 = vmatpush1.bf16.msra.mxu0 %v1373
    %1739 = vmatprep.subr.bf16.mxu0 %v1381
    %1740 = vmatpush1.bf16.msra.mxu0 %v1380
    %1741 = vmatprep.subr.bf16.mxu0 %v1388
    %1742 = vmatpush1.bf16.msra.mxu0 %v1387
    %1743 = vmatprep.subr.bf16.mxu0 %v1395
    %1744 = vmatpush1.bf16.msra.mxu0 %v1394
    %1745 = vmatprep.subr.bf16.mxu0 %v1402
    %1746 = vmatpush1.bf16.msra.mxu0 %v1401
    %1747 = vmatprep.subr.bf16.mxu0 %v1409
    %1748 = vmatpush1.bf16.msra.mxu0 %v1408
    %1749 = vmatprep.subr.bf16.mxu0 %v1416
    %1750 = vmatpush1.bf16.msra.mxu0 %v1415
    %1751 = vmatprep.subr.bf16.mxu0 %v1423
    %1752 = vmatpush1.bf16.msra.mxu0 %v1422
    %1753 = vmatprep.subr.bf16.mxu0 %v1430
    %1754 = vmatpush1.bf16.msra.mxu0 %v1429
    %1755 = vmatprep.subr.bf16.mxu0 %v1437
    %1756 = vmatpush1.bf16.msra.mxu0 %v1436
    %1757 = vmatprep.subr.bf16.mxu0 %v1444
    %1758 = vmatpush1.bf16.msra.mxu0 %v1443
    %1759 = vmatprep.subr.bf16.mxu0 %v1451
    %1760 = vmatpush1.bf16.msra.mxu0 %v1450
    %1761 = vmatprep.subr.bf16.mxu0 %v1458
    %1762 = vmatpush1.bf16.msra.mxu0 %v1457
    %1763 = vmatprep.mubr.bf16.mxu0 %v242
    %1764 = vmatmul.mubr.bf16.gmra.mrb[0].mxu0 %v241
    %v1765 = vpop.f32.mrb[0].mxu0
    %v1766 = vadd.f32 %v1723, %v1765
    %v1767 = vpop.f32.mrb[0].mxu0
    %v1768 = vadd.f32 %v1725, %v1767
    %v1769 = vpop.f32.mrb[0].mxu0
    %v1770 = vadd.f32 %v1727, %v1769
    %v1771 = vpop.f32.mrb[0].mxu0
    %v1772 = vadd.f32 %v1729, %v1771
    %1773 = vdwg.mxu0
    %1774 = vmatprep.subr.bf16.mxu0 %v1243
    %1775 = vmatpush1.bf16.msra.mxu0 %v1242
    %1776 = vmatprep.subr.bf16.mxu0 %v1250
    %1777 = vmatpush1.bf16.msra.mxu0 %v1249
    %1778 = vmatprep.subr.bf16.mxu0 %v1257
    %1779 = vmatpush1.bf16.msra.mxu0 %v1256
    %1780 = vmatprep.subr.bf16.mxu0 %v1264
    %1781 = vmatpush1.bf16.msra.mxu0 %v1263
    %1782 = vmatprep.subr.bf16.mxu0 %v1271
    %1783 = vmatpush1.bf16.msra.mxu0 %v1270
    %1784 = vmatprep.subr.bf16.mxu0 %v1278
    %1785 = vmatpush1.bf16.msra.mxu0 %v1277
    %1786 = vmatprep.subr.bf16.mxu0 %v1285
    %1787 = vmatpush1.bf16.msra.mxu0 %v1284
    %1788 = vmatprep.subr.bf16.mxu0 %v1292
    %1789 = vmatpush1.bf16.msra.mxu0 %v1291
    %1790 = vmatprep.subr.bf16.mxu0 %v1299
    %1791 = vmatpush1.bf16.msra.mxu0 %v1298
    %1792 = vmatprep.subr.bf16.mxu0 %v1306
    %1793 = vmatpush1.bf16.msra.mxu0 %v1305
    %1794 = vmatprep.subr.bf16.mxu0 %v1313
    %1795 = vmatpush1.bf16.msra.mxu0 %v1312
    %1796 = vmatprep.subr.bf16.mxu0 %v1320
    %1797 = vmatpush1.bf16.msra.mxu0 %v1319
    %1798 = vmatprep.subr.bf16.mxu0 %v1327
    %1799 = vmatpush1.bf16.msra.mxu0 %v1326
    %1800 = vmatprep.subr.bf16.mxu0 %v1334
    %1801 = vmatpush1.bf16.msra.mxu0 %v1333
    %1802 = vmatprep.subr.bf16.mxu0 %v1341
    %1803 = vmatpush1.bf16.msra.mxu0 %v1340
    %1804 = vmatprep.subr.bf16.mxu0 %v1348
    %1805 = vmatpush1.bf16.msra.mxu0 %v1347
    %1806 = vmatprep.mubr.bf16.mxu0 %v240
    %1807 = vmatmul.mubr.bf16.gmra.mrb[0].mxu0 %v239
    %v1808 = vpop.f32.mrb[0].mxu0
    %v1809 = vadd.f32 %v512, %v1808
    %v1810 = vpop.f32.mrb[0].mxu0
    %v1811 = vadd.f32 %v516, %v1810
    %v1812 = vpop.f32.mrb[0].mxu0
    %v1813 = vadd.f32 %v512, %v1812
    %v1814 = vpop.f32.mrb[0].mxu0
    %v1815 = vadd.f32 %v516, %v1814
    %1816 = vdwg.mxu0
    %1817 = vmatprep.subr.bf16.mxu0 %v1355
    %1818 = vmatpush1.bf16.msra.mxu0 %v1354
    %1819 = vmatprep.subr.bf16.mxu0 %v1362
    %1820 = vmatpush1.bf16.msra.mxu0 %v1361
    %1821 = vmatprep.subr.bf16.mxu0 %v1369
    %1822 = vmatpush1.bf16.msra.mxu0 %v1368
    %1823 = vmatprep.subr.bf16.mxu0 %v1376
    %1824 = vmatpush1.bf16.msra.mxu0 %v1375
    %1825 = vmatprep.subr.bf16.mxu0 %v1383
    %1826 = vmatpush1.bf16.msra.mxu0 %v1382
    %1827 = vmatprep.subr.bf16.mxu0 %v1390
    %1828 = vmatpush1.bf16.msra.mxu0 %v1389
    %1829 = vmatprep.subr.bf16.mxu0 %v1397
    %1830 = vmatpush1.bf16.msra.mxu0 %v1396
    %1831 = vmatprep.subr.bf16.mxu0 %v1404
    %1832 = vmatpush1.bf16.msra.mxu0 %v1403
    %1833 = vmatprep.subr.bf16.mxu0 %v1411
    %1834 = vmatpush1.bf16.msra.mxu0 %v1410
    %1835 = vmatprep.subr.bf16.mxu0 %v1418
    %1836 = vmatpush1.bf16.msra.mxu0 %v1417
    %1837 = vmatprep.subr.bf16.mxu0 %v1425
    %1838 = vmatpush1.bf16.msra.mxu0 %v1424
    %1839 = vmatprep.subr.bf16.mxu0 %v1432
    %1840 = vmatpush1.bf16.msra.mxu0 %v1431
    %1841 = vmatprep.subr.bf16.mxu0 %v1439
    %1842 = vmatpush1.bf16.msra.mxu0 %v1438
    %1843 = vmatprep.subr.bf16.mxu0 %v1446
    %1844 = vmatpush1.bf16.msra.mxu0 %v1445
    %1845 = vmatprep.subr.bf16.mxu0 %v1453
    %1846 = vmatpush1.bf16.msra.mxu0 %v1452
    %1847 = vmatprep.subr.bf16.mxu0 %v1460
    %1848 = vmatpush1.bf16.msra.mxu0 %v1459
    %1849 = vmatprep.mubr.bf16.mxu0 %v242
    %1850 = vmatmul.mubr.bf16.gmra.mrb[0].mxu0 %v241
    %v1851 = vpop.f32.mrb[0].mxu0
    %v1852 = vadd.f32 %v1809, %v1851
    %v1853 = vpop.f32.mrb[0].mxu0
    %v1854 = vadd.f32 %v1811, %v1853
    %v1855 = vpop.f32.mrb[0].mxu0
    %v1856 = vadd.f32 %v1813, %v1855
    %v1857 = vpop.f32.mrb[0].mxu0
    %v1858 = vadd.f32 %v1815, %v1857
    %1859 = vdwg.mxu0
    %1860 = vmatprep.subr.bf16.mxu0 %v1245
    %1861 = vmatpush1.bf16.msra.mxu0 %v1244
    %1862 = vmatprep.subr.bf16.mxu0 %v1252
    %1863 = vmatpush1.bf16.msra.mxu0 %v1251
    %1864 = vmatprep.subr.bf16.mxu0 %v1259
    %1865 = vmatpush1.bf16.msra.mxu0 %v1258
    %1866 = vmatprep.subr.bf16.mxu0 %v1266
    %1867 = vmatpush1.bf16.msra.mxu0 %v1265
    %1868 = vmatprep.subr.bf16.mxu0 %v1273
    %1869 = vmatpush1.bf16.msra.mxu0 %v1272
    %1870 = vmatprep.subr.bf16.mxu0 %v1280
    %1871 = vmatpush1.bf16.msra.mxu0 %v1279
    %1872 = vmatprep.subr.bf16.mxu0 %v1287
    %1873 = vmatpush1.bf16.msra.mxu0 %v1286
    %1874 = vmatprep.subr.bf16.mxu0 %v1294
    %1875 = vmatpush1.bf16.msra.mxu0 %v1293
    %1876 = vmatprep.subr.bf16.mxu0 %v1301
    %1877 = vmatpush1.bf16.msra.mxu0 %v1300
    %1878 = vmatprep.subr.bf16.mxu0 %v1308
    %1879 = vmatpush1.bf16.msra.mxu0 %v1307
    %1880 = vmatprep.subr.bf16.mxu0 %v1315
    %1881 = vmatpush1.bf16.msra.mxu0 %v1314
    %1882 = vmatprep.subr.bf16.mxu0 %v1322
    %1883 = vmatpush1.bf16.msra.mxu0 %v1321
    %1884 = vmatprep.subr.bf16.mxu0 %v1329
    %1885 = vmatpush1.bf16.msra.mxu0 %v1328
    %1886 = vmatprep.subr.bf16.mxu0 %v1336
    %1887 = vmatpush1.bf16.msra.mxu0 %v1335
    %1888 = vmatprep.subr.bf16.mxu0 %v1343
    %1889 = vmatpush1.bf16.msra.mxu0 %v1342
    %1890 = vmatprep.subr.bf16.mxu0 %v1350
    %1891 = vmatpush1.bf16.msra.mxu0 %v1349
    %1892 = vmatprep.mubr.bf16.mxu0 %v240
    %1893 = vmatmul.mubr.bf16.gmra.mrb[0].mxu0 %v239
    %v1894 = vpop.f32.mrb[0].mxu0
    %v1895 = vadd.f32 %v520, %v1894
    %v1896 = vpop.f32.mrb[0].mxu0
    %v1897 = vadd.f32 %v524, %v1896
    %v1898 = vpop.f32.mrb[0].mxu0
    %v1899 = vadd.f32 %v520, %v1898
    %v1900 = vpop.f32.mrb[0].mxu0
    %v1901 = vadd.f32 %v524, %v1900
    %1902 = vdwg.mxu0
    %1903 = vmatprep.subr.bf16.mxu0 %v1357
    %1904 = vmatpush1.bf16.msra.mxu0 %v1356
    %1905 = vmatprep.subr.bf16.mxu0 %v1364
    %1906 = vmatpush1.bf16.msra.mxu0 %v1363
    %1907 = vmatprep.subr.bf16.mxu0 %v1371
    %1908 = vmatpush1.bf16.msra.mxu0 %v1370
    %1909 = vmatprep.subr.bf16.mxu0 %v1378
    %1910 = vmatpush1.bf16.msra.mxu0 %v1377
    %1911 = vmatprep.subr.bf16.mxu0 %v1385
    %1912 = vmatpush1.bf16.msra.mxu0 %v1384
    %1913 = vmatprep.subr.bf16.mxu0 %v1392
    %1914 = vmatpush1.bf16.msra.mxu0 %v1391
    %1915 = vmatprep.subr.bf16.mxu0 %v1399
    %1916 = vmatpush1.bf16.msra.mxu0 %v1398
    %1917 = vmatprep.subr.bf16.mxu0 %v1406
    %1918 = vmatpush1.bf16.msra.mxu0 %v1405
    %1919 = vmatprep.subr.bf16.mxu0 %v1413
    %1920 = vmatpush1.bf16.msra.mxu0 %v1412
    %1921 = vmatprep.subr.bf16.mxu0 %v1420
    %1922 = vmatpush1.bf16.msra.mxu0 %v1419
    %1923 = vmatprep.subr.bf16.mxu0 %v1427
    %1924 = vmatpush1.bf16.msra.mxu0 %v1426
    %1925 = vmatprep.subr.bf16.mxu0 %v1434
    %1926 = vmatpush1.bf16.msra.mxu0 %v1433
    %1927 = vmatprep.subr.bf16.mxu0 %v1441
    %1928 = vmatpush1.bf16.msra.mxu0 %v1440
    %1929 = vmatprep.subr.bf16.mxu0 %v1448
    %1930 = vmatpush1.bf16.msra.mxu0 %v1447
    %1931 = vmatprep.subr.bf16.mxu0 %v1455
    %1932 = vmatpush1.bf16.msra.mxu0 %v1454
    %1933 = vmatprep.subr.bf16.mxu0 %v1462
    %1934 = vmatpush1.bf16.msra.mxu0 %v1461
    %1935 = vmatprep.mubr.bf16.mxu0 %v242
    %1936 = vmatmul.mubr.bf16.gmra.mrb[0].mxu0 %v241
    %v1937 = vpop.f32.mrb[0].mxu0
    %v1938 = vadd.f32 %v1895, %v1937
    %v1939 = vpop.f32.mrb[0].mxu0
    %v1940 = vadd.f32 %v1897, %v1939
    %v1941 = vpop.f32.mrb[0].mxu0
    %v1942 = vadd.f32 %v1899, %v1941
    %v1943 = vpop.f32.mrb[0].mxu0
    %v1944 = vadd.f32 %v1901, %v1943
    %1945 = vdwg.mxu0
    %1946 = vmatprep.subr.bf16.mxu0 0
    %1947 = vmatpush1.bf16.msra.mxu0 %v1246
    %1948 = vmatprep.subr.bf16.mxu0 0
    %1949 = vmatpush1.bf16.msra.mxu0 %v1253
    %1950 = vmatprep.subr.bf16.mxu0 0
    %1951 = vmatpush1.bf16.msra.mxu0 %v1260
    %1952 = vmatprep.subr.bf16.mxu0 0
    %1953 = vmatpush1.bf16.msra.mxu0 %v1267
    %1954 = vmatprep.subr.bf16.mxu0 0
    %1955 = vmatpush1.bf16.msra.mxu0 %v1274
    %1956 = vmatprep.subr.bf16.mxu0 0
    %1957 = vmatpush1.bf16.msra.mxu0 %v1281
    %1958 = vmatprep.subr.bf16.mxu0 0
    %1959 = vmatpush1.bf16.msra.mxu0 %v1288
    %1960 = vmatprep.subr.bf16.mxu0 0
    %1961 = vmatpush1.bf16.msra.mxu0 %v1295
    %1962 = vmatprep.subr.bf16.mxu0 0
    %1963 = vmatpush1.bf16.msra.mxu0 %v1302
    %1964 = vmatprep.subr.bf16.mxu0 0
    %1965 = vmatpush1.bf16.msra.mxu0 %v1309
    %1966 = vmatprep.subr.bf16.mxu0 0
    %1967 = vmatpush1.bf16.msra.mxu0 %v1316
    %1968 = vmatprep.subr.bf16.mxu0 0
    %1969 = vmatpush1.bf16.msra.mxu0 %v1323
    %1970 = vmatprep.subr.bf16.mxu0 0
    %1971 = vmatpush1.bf16.msra.mxu0 %v1330
    %1972 = vmatprep.subr.bf16.mxu0 0
    %1973 = vmatpush1.bf16.msra.mxu0 %v1337
    %1974 = vmatprep.subr.bf16.mxu0 0
    %1975 = vmatpush1.bf16.msra.mxu0 %v1344
    %1976 = vmatprep.subr.bf16.mxu0 0
    %1977 = vmatpush1.bf16.msra.mxu0 %v1351
    %1978 = vmatprep.mubr.bf16.mxu0 %v240
    %1979 = vmatmul.mubr.bf16.gmra.mrb[0].mxu0 %v239
    %v1980 = vpop.f32.mrb[0].mxu0
    %v1981 = vadd.f32 %v528, %v1980
    %v1982 = vpop.f32.mrb[0].mxu0
    %v1983 = vpop.f32.mrb[0].mxu0
    %v1984 = vadd.f32 %v528, %v1983
    %v1985 = vpop.f32.mrb[0].mxu0
    %1986 = vdwg.mxu0
    %1987 = vmatprep.subr.bf16.mxu0 0
    %1988 = vmatpush1.bf16.msra.mxu0 %v1358
    %1989 = vmatprep.subr.bf16.mxu0 0
    %1990 = vmatpush1.bf16.msra.mxu0 %v1365
    %1991 = vmatprep.subr.bf16.mxu0 0
    %1992 = vmatpush1.bf16.msra.mxu0 %v1372
    %1993 = vmatprep.subr.bf16.mxu0 0
    %1994 = vmatpush1.bf16.msra.mxu0 %v1379
    %1995 = vmatprep.subr.bf16.mxu0 0
    %1996 = vmatpush1.bf16.msra.mxu0 %v1386
    %1997 = vmatprep.subr.bf16.mxu0 0
    %1998 = vmatpush1.bf16.msra.mxu0 %v1393
    %1999 = vmatprep.subr.bf16.mxu0 0
    %2000 = vmatpush1.bf16.msra.mxu0 %v1400
    %2001 = vmatprep.subr.bf16.mxu0 0
    %2002 = vmatpush1.bf16.msra.mxu0 %v1407
    %2003 = vmatprep.subr.bf16.mxu0 0
    %2004 = vmatpush1.bf16.msra.mxu0 %v1414
    %2005 = vmatprep.subr.bf16.mxu0 0
    %2006 = vmatpush1.bf16.msra.mxu0 %v1421
    %2007 = vmatprep.subr.bf16.mxu0 0
    %2008 = vmatpush1.bf16.msra.mxu0 %v1428
    %2009 = vmatprep.subr.bf16.mxu0 0
    %2010 = vmatpush1.bf16.msra.mxu0 %v1435
    %2011 = vmatprep.subr.bf16.mxu0 0
    %2012 = vmatpush1.bf16.msra.mxu0 %v1442
    %2013 = vmatprep.subr.bf16.mxu0 0
    %2014 = vmatpush1.bf16.msra.mxu0 %v1449
    %2015 = vmatprep.subr.bf16.mxu0 0
    %2016 = vmatpush1.bf16.msra.mxu0 %v1456
    %2017 = vmatprep.subr.bf16.mxu0 0
    %2018 = vmatpush1.bf16.msra.mxu0 %v1463
    %2019 = vmatprep.mubr.bf16.mxu0 %v242
    %2020 = vmatmul.mubr.bf16.gmra.mrb[0].mxu0 %v241
    %v2021 = vpop.f32.mrb[0].mxu0
    %v2022 = vadd.f32 %v1981, %v2021
    %v2023 = vpop.f32.mrb[0].mxu0
    %v2024 = vpop.f32.mrb[0].mxu0
    %v2025 = vadd.f32 %v1984, %v2024
    %v2026 = vpop.f32.mrb[0].mxu0
    %2027 = vdwg.mxu0
    %2028 = vst [vmem:[#allocation8] sm:$0xff] %v1766
    %2029 = vst [vmem:[#allocation8 + $0x8] sm:$0xff] %v1768
    %2030 = vst [vmem:[#allocation8 + $0x10] sm:$0xff] %v1852
    %2031 = vst [vmem:[#allocation8 + $0x18] sm:$0xff] %v1854
    %2032 = vst [vmem:[#allocation8 + $0x20] sm:$0xff] %v1938
    %2033 = vst [vmem:[#allocation8 + $0x28] sm:$0xff] %v1940
    %2034 = vst [vmem:[#allocation8 + $0x30] sm:$0xff] %v2022
    %2035 = vst [vmem:[#allocation8 + $0x38] sm:$0xff] %v1770
    %2036 = vst [vmem:[#allocation8 + $0x40] sm:$0xff] %v1772
    %2037 = vst [vmem:[#allocation8 + $0x48] sm:$0xff] %v1856
    %2038 = vst [vmem:[#allocation8 + $0x50] sm:$0xff] %v1858
    %2039 = vst [vmem:[#allocation8 + $0x58] sm:$0xff] %v1942
    %2040 = vst [vmem:[#allocation8 + $0x60] sm:$0xff] %v1944
    %2041 = vst [vmem:[#allocation8 + $0x68] sm:$0xff] %v2025
    // Predicated region
    $region34: #{tpu_custom_call.1} parent=1 // pred_check
      _
    $region35: #{tpu_custom_call.1} parent=1 // pred_check_branch
      %2043 = sbr.rel (0) target = $region37
    $region36: #{tpu_custom_call.1} parent=1 // pred_region
      %s2045 = ssub.s32 1792, 1792
      %2046 = vsyncadd [#allocation4], %s2045
      %s2047 = sshll.u32 [#allocation8], 4
      %s2048 = int_to_ptr.vmem [resolvable:$true] %s2047
      %2053 = dma.vmem_to_hbm [thread:$0]  %s2048, 1792, %s5, [#allocation4], 896, 896, 56
    $region37: #{tpu_custom_call.1} parent=1 // pred_fallthru
      _
    // Predicated region
    $region38: #{tpu_custom_call.1} parent=1 // pred_check
      _
    $region39: #{tpu_custom_call.1} parent=1 // pred_check_branch
      %2055 = sbr.rel (0) target = $region41
    $region40: #{tpu_custom_call.1} parent=1 // pred_region
      %2056 = dma.done [#allocation4], 1792
    $region41: #{tpu_custom_call.1} parent=1 // pred_fallthru
      _
    %2057 = vsyncpa [#allocation3], 1
    %2058 = vsyncpa [#allocation6], 1
    %2059 = vsyncpa [#allocation4], 1

// kernel: tpu_custom_call.1
$region0: #{tpu_custom_call.1}
  #allocation0 [shape = 'u32[]', space=smem, size = 0x4, offset = 0x4, fixed_abs, tag = 'smem constant byte address 0x4 - core index']
  #allocation1 [shape = 'u32[144,128]{1,0:T(1,128)}', space=vmem, size = 0x12000, scoped, tag = 'internal scratch']
  %s0 = inlined_call_operand.hbm [shape: bf16[16,20], index: 0, kind: input, shape index: {}]
  %s1 = inlined_call_operand.hbm [shape: bf16[20,512], index: 1, kind: input, shape index: {}]
  %s2 = inlined_call_operand.vmem [shape: f32[1,512], index: 2, kind: input, shape index: {}]
  %s3 = inlined_call_operand.hbm [shape: bf16[512,896], index: 3, kind: input, shape index: {}]
  %s4 = inlined_call_operand.vmem [shape: f32[1,896], index: 4, kind: input, shape index: {}]
  %s5 = inlined_call_operand.hbm [shape: f32[16,896], index: 5, kind: output, shape index: {}]
  %s6 = sld [smem:[#allocation0]]
  $region42: #{tpu_custom_call.1} parent=0
    _
  %s8 = ssub.s32 1, %s6
  %s9 = scalar_select 0, %s8, %s6
  $region1: #{tpu_custom_call.1} parent=0
    #allocation2 [shape = 'u8[4096]{0}', space=vmem, size = 0x1000, scoped, tag = 'input window, operand 0, single buffered']
    #allocation3 [shape = 's32[1]{0}', space=sflag, size = 0x4, scoped, tag = 'scoped memory for tpu_custom_call.1']
    #allocation4 [shape = 's32[1]{0}', space=sflag, size = 0x4, scoped, tag = 'scoped memory for tpu_custom_call.1']
    #allocation5 [shape = 'u8[24576]{0}', space=vmem, size = 0x6000, scoped, tag = 'input window, operand 1, single buffered']
    #allocation6 [shape = 's32[1]{0}', space=sflag, size = 0x4, scoped, tag = 'scoped memory for tpu_custom_call.1']
    #allocation7 [shape = 'u8[917504]{0}', space=vmem, size = 0xe0000, scoped, tag = 'input window, operand 3, single buffered']
    #allocation8 [shape = 'u8[57344]{0}', space=vmem, size = 0xe000, scoped, tag = 'output window, operand 0, single buffered']
    %10 = vsyncpa [#allocation3], 0
    %11 = vsyncpa [#allocation6], 0
    %12 = vsyncpa [#allocation4], 0
    // Predicated region
    $region2: #{tpu_custom_call.1} parent=1 // pred_check
      _
    $region3: #{tpu_custom_call.1} parent=1 // pred_check_branch
      %14 = sbr.rel (0) target = $region5
    $region4: #{tpu_custom_call.1} parent=1 // pred_region
      %s16 = ssub.s32 128, 128
      %17 = vsyncadd [#allocation3], %s16
      %s18 = sshll.u32 [#allocation2], 4
      %s19 = int_to_ptr.vmem [resolvable:$true] %s18
      %24 = dma.hbm_to_vmem [thread:$0]  %s0, 128, %s19, [#allocation3], 64, 64, 4
    $region5: #{tpu_custom_call.1} parent=1 // pred_fallthru
      _
    // Predicated region
    $region6: #{tpu_custom_call.1} parent=1 // pred_check
      _
    $region7: #{tpu_custom_call.1} parent=1 // pred_check_branch
      %26 = sbr.rel (0) target = $region9
    $region8: #{tpu_custom_call.1} parent=1 // pred_region
      %s28 = ssub.s32 768, 768
      %29 = vsyncadd [#allocation6], %s28
      %s30 = sshll.u32 [#allocation5], 4
      %s31 = int_to_ptr.vmem [resolvable:$true] %s30
      %36 = dma.hbm_to_vmem [thread:$0]  %s1, 768, %s31, [#allocation6], 256, 256, 16
    $region9: #{tpu_custom_call.1} parent=1 // pred_fallthru
      _
    // Predicated region
    $region10: #{tpu_custom_call.1} parent=1 // pred_check
      _
    $region11: #{tpu_custom_call.1} parent=1 // pred_check_branch
      %38 = sbr.rel (0) target = $region13
    $region12: #{tpu_custom_call.1} parent=1 // pred_region
      _
    $region13: #{tpu_custom_call.1} parent=1 // pred_fallthru
      _
    // Predicated region
    $region14: #{tpu_custom_call.1} parent=1 // pred_check
      _
    $region15: #{tpu_custom_call.1} parent=1 // pred_check_branch
      %40 = sbr.rel (0) target = $region17
    $region16: #{tpu_custom_call.1} parent=1 // pred_region
      %s42 = ssub.s32 28672, 28672
      %43 = vsyncadd [#allocation6], %s42
      %s44 = sshll.u32 [#allocation7], 4
      %s45 = int_to_ptr.vmem [resolvable:$true] %s44
      %50 = dma.hbm_to_vmem [thread:$0]  %s3, 28672, %s45, [#allocation6], 448, 448, 28
    $region17: #{tpu_custom_call.1} parent=1 // pred_fallthru
      _
    // Predicated region
    $region18: #{tpu_custom_call.1} parent=1 // pred_check
      _
    $region19: #{tpu_custom_call.1} parent=1 // pred_check_branch
      %52 = sbr.rel (0) target = $region21
    $region20: #{tpu_custom_call.1} parent=1 // pred_region
      _
    $region21: #{tpu_custom_call.1} parent=1 // pred_fallthru
      _
    // Predicated region
    $region22: #{tpu_custom_call.1} parent=1 // pred_check
      _
    $region23: #{tpu_custom_call.1} parent=1 // pred_check_branch
      %54 = sbr.rel (0) target = $region25
    $region24: #{tpu_custom_call.1} parent=1 // pred_region
      %55 = dma.done [#allocation3], 128
    $region25: #{tpu_custom_call.1} parent=1 // pred_fallthru
      _
    // Predicated region
    $region26: #{tpu_custom_call.1} parent=1 // pred_check
      _
    $region27: #{tpu_custom_call.1} parent=1 // pred_check_branch
      %57 = sbr.rel (0) target = $region29
    $region28: #{tpu_custom_call.1} parent=1 // pred_region
      %58 = dma.done [#allocation6], 768
    $region29: #{tpu_custom_call.1} parent=1 // pred_fallthru
      _
    // Predicated region
    $region30: #{tpu_custom_call.1} parent=1 // pred_check
      _
    $region31: #{tpu_custom_call.1} parent=1 // pred_check_branch
      %60 = sbr.rel (0) target = $region33
    $region32: #{tpu_custom_call.1} parent=1 // pred_region
      %61 = dma.done [#allocation6], 28672
    $region33: #{tpu_custom_call.1} parent=1 // pred_fallthru
      _
    %v63 = vld [vmem:[#allocation2] sm:$0xf]
    %v64 = vld [vmem:[#allocation2 + $0x4] sm:$0xf]
    %v65 = vld [vmem:[#allocation5] sm:$0xff]
    %v66 = vld [vmem:[#allocation5 + $0x8] sm:$0xff]
    %v67 = vld [vmem:[#allocation5 + $0x10] sm:$0xff]
    %v68 = vld [vmem:[#allocation5 + $0x18] sm:$0xff]
    %v69 = vld [vmem:[#allocation5 + $0x20] sm:$0x33]
    %v70 = vld [vmem:[#allocation5 + $0x28] sm:$0x33]
    %v71 = vld [vmem:[%s2] sm:$0xf]
    %v73 = vlaneseq
    %v74 = vshrl.u32 %v73, 7
    %v75 = vsub.s32 0, %v74
    %v76 = vrot.slane %v71, %v75
    %v77 = vlaneseq
    %v78 = vshrl.u32 %v77, 7
    %v79 = vsub.s32 1, %v78
    %v80 = vrot.slane %v71, %v79
    %v81 = vlaneseq
    %v82 = vshrl.u32 %v81, 7
    %v83 = vsub.s32 2, %v82
    %v84 = vrot.slane %v71, %v83
    %v85 = vlaneseq
    %v86 = vshrl.u32 %v85, 7
    %v87 = vsub.s32 3, %v86
    %v88 = vrot.slane %v71, %v87
    %v95 = vunpack.c.l.b16 %v63
    %v96 = vunpack.c.l.b16 %v64
    %v97 = vpack.c.b16 %v96, %v95
    %v104 = vunpack.c.l.b16 %v65
    %v105 = vunpack.c.h.b16 %v65
    %v106 = vunpack.c.l.b16 %v66
    %v107 = vunpack.c.h.b16 %v66
    %v108 = vunpack.c.l.b16 %v67
    %v109 = vunpack.c.h.b16 %v67
    %v110 = vunpack.c.l.b16 %v68
    %v111 = vunpack.c.h.b16 %v68
    %v112 = vunpack.c.l.b16 %v69
    %v113 = vunpack.c.h.b16 %v69
    %v114 = vunpack.c.l.b16 %v70
    %v115 = vunpack.c.h.b16 %v70
    %v116 = vpack.c.b16 %v108, %v104
    %v117 = vpack.c.b16 %v109, %v105
    %v118 = vpack.c.b16 %v110, %v106
    %v119 = vpack.c.b16 %v111, %v107
    %v120 = vpack.c.b16 %v112, %v112
    %v121 = vpack.c.b16 %v113, %v113
    %v122 = vpack.c.b16 %v114, %v114
    %v123 = vpack.c.b16 %v115, %v115
    %vm128 = vcmask 162816
    %v130 = vsel %vm128, %v97, 0
    %vm132 = vcmask 1041408
    %v134 = vsel %vm132, %v120, 0
    %v137 = vsel %vm132, %v121, 0
    %v140 = vsel %vm132, %v122, 0
    %v143 = vsel %vm132, %v123, 0
    %145 = vmatprep.subr.bf16.mxu0 %v117
    %146 = vmatpush1.bf16.msra.mxu0 %v116
    %147 = vmatprep.subr.bf16.mxu0 %v137
    %148 = vmatpush1.bf16.msra.mxu0 %v134
    %149 = vmatprep.subr.bf16.mxu0 0
    %150 = vmatpush1.bf16.msra.mxu0 0
    %151 = vmatprep.subr.bf16.mxu0 0
    %152 = vmatpush1.bf16.msra.mxu0 0
    %153 = vmatprep.subr.bf16.mxu0 0
    %154 = vmatpush1.bf16.msra.mxu0 0
    %155 = vmatprep.subr.bf16.mxu0 0
    %156 = vmatpush1.bf16.msra.mxu0 0
    %157 = vmatprep.subr.bf16.mxu0 0
    %158 = vmatpush1.bf16.msra.mxu0 0
    %159 = vmatprep.subr.bf16.mxu0 0
    %160 = vmatpush1.bf16.msra.mxu0 0
    %161 = vmatprep.subr.bf16.mxu0 0
    %162 = vmatpush1.bf16.msra.mxu0 0
    %163 = vmatprep.subr.bf16.mxu0 0
    %164 = vmatpush1.bf16.msra.mxu0 0
    %165 = vmatprep.subr.bf16.mxu0 0
    %166 = vmatpush1.bf16.msra.mxu0 0
    %167 = vmatprep.subr.bf16.mxu0 0
    %168 = vmatpush1.bf16.msra.mxu0 0
    %169 = vmatprep.subr.bf16.mxu0 0
    %170 = vmatpush1.bf16.msra.mxu0 0
    %171 = vmatprep.subr.bf16.mxu0 0
    %172 = vmatpush1.bf16.msra.mxu0 0
    %173 = vmatprep.subr.bf16.mxu0 0
    %174 = vmatpush1.bf16.msra.mxu0 0
    %175 = vmatprep.subr.bf16.mxu0 0
    %176 = vmatpush1.bf16.msra.mxu0 0
    %177 = vmatprep.mubr.bf16.mxu0 0
    %178 = vmatmul.mubr.bf16.gmra.mrb[0].mxu0 %v130
    %v179 = vpop.f32.mrb[0].mxu0
    %v180 = vadd.f32 %v76, %v179
    %v181 = vpop.f32.mrb[0].mxu0
    %v182 = vadd.f32 %v80, %v181
    %v183 = vpop.f32.mrb[0].mxu0
    %v184 = vadd.f32 %v76, %v183
    %v185 = vpop.f32.mrb[0].mxu0
    %v186 = vadd.f32 %v80, %v185
    %187 = vdwg.mxu0
    %188 = vmatprep.subr.bf16.mxu0 %v119
    %189 = vmatpush1.bf16.msra.mxu0 %v118
    %190 = vmatprep.subr.bf16.mxu0 %v143
    %191 = vmatpush1.bf16.msra.mxu0 %v140
    %192 = vmatprep.subr.bf16.mxu0 0
    %193 = vmatpush1.bf16.msra.mxu0 0
    %194 = vmatprep.subr.bf16.mxu0 0
    %195 = vmatpush1.bf16.msra.mxu0 0
    %196 = vmatprep.subr.bf16.mxu0 0
    %197 = vmatpush1.bf16.msra.mxu0 0
    %198 = vmatprep.subr.bf16.mxu0 0
    %199 = vmatpush1.bf16.msra.mxu0 0
    %200 = vmatprep.subr.bf16.mxu0 0
    %201 = vmatpush1.bf16.msra.mxu0 0
    %202 = vmatprep.subr.bf16.mxu0 0
    %203 = vmatpush1.bf16.msra.mxu0 0
    %204 = vmatprep.subr.bf16.mxu0 0
    %205 = vmatpush1.bf16.msra.mxu0 0
    %206 = vmatprep.subr.bf16.mxu0 0
    %207 = vmatpush1.bf16.msra.mxu0 0
    %208 = vmatprep.subr.bf16.mxu0 0
    %209 = vmatpush1.bf16.msra.mxu0 0
    %210 = vmatprep.subr.bf16.mxu0 0
    %211 = vmatpush1.bf16.msra.mxu0 0
    %212 = vmatprep.subr.bf16.mxu0 0
    %213 = vmatpush1.bf16.msra.mxu0 0
    %214 = vmatprep.subr.bf16.mxu0 0
    %215 = vmatpush1.bf16.msra.mxu0 0
    %216 = vmatprep.subr.bf16.mxu0 0
    %217 = vmatpush1.bf16.msra.mxu0 0
    %218 = vmatprep.subr.bf16.mxu0 0
    %219 = vmatpush1.bf16.msra.mxu0 0
    %220 = vmatprep.mubr.bf16.mxu0 0
    %221 = vmatmul.mubr.bf16.gmra.mrb[0].mxu0 %v130
    %v222 = vpop.f32.mrb[0].mxu0
    %v223 = vadd.f32 %v84, %v222
    %v224 = vpop.f32.mrb[0].mxu0
    %v225 = vadd.f32 %v88, %v224
    %v226 = vpop.f32.mrb[0].mxu0
    %v227 = vadd.f32 %v84, %v226
    %v228 = vpop.f32.mrb[0].mxu0
    %v229 = vadd.f32 %v88, %v228
    %230 = vdwg.mxu0
    %v231 = vmax.f32 %v180, 0.0
    %v232 = vmax.f32 %v182, 0.0
    %v233 = vmax.f32 %v223, 0.0
    %v234 = vmax.f32 %v225, 0.0
    %v235 = vmax.f32 %v184, 0.0
    %v236 = vmax.f32 %v186, 0.0
    %v237 = vmax.f32 %v227, 0.0
    %v238 = vmax.f32 %v229, 0.0
    %v239 = vpack.c.bf16 %v235, %v231
    %v240 = vpack.c.bf16 %v236, %v232
    %v241 = vpack.c.bf16 %v237, %v233
    %v242 = vpack.c.bf16 %v238, %v234
    %v243 = vld [vmem:[#allocation7] sm:$0xff]
    %v244 = vld [vmem:[#allocation7 + $0x8] sm:$0xff]
    %v245 = vld [vmem:[#allocation7 + $0x10] sm:$0xff]
    %v246 = vld [vmem:[#allocation7 + $0x18] sm:$0xf]
    %v247 = vld [vmem:[#allocation7 + $0x1c] sm:$0xff]
    %v248 = vld [vmem:[#allocation7 + $0x24] sm:$0xff]
    %v249 = vld [vmem:[#allocation7 + $0x2c] sm:$0xff]
    %v250 = vld [vmem:[#allocation7 + $0x34] sm:$0xf]
    %v251 = vld [vmem:[#allocation7 + $0x38] sm:$0xff]
    %v252 = vld [vmem:[#allocation7 + $0x40] sm:$0xff]
    %v253 = vld [vmem:[#allocation7 + $0x48] sm:$0xff]
    %v254 = vld [vmem:[#allocation7 + $0x50] sm:$0xf]
    %v255 = vld [vmem:[#allocation7 + $0x54] sm:$0xff]
    %v256 = vld [vmem:[#allocation7 + $0x5c] sm:$0xff]
    %v257 = vld [vmem:[#allocation7 + $0x64] sm:$0xff]
    %v258 = vld [vmem:[#allocation7 + $0x6c] sm:$0xf]
    %v259 = vld [vmem:[#allocation7 + $0x70] sm:$0xff]
    %v260 = vld [vmem:[#allocation7 + $0x78] sm:$0xff]
    %v261 = vld [vmem:[#allocation7 + $0x80] sm:$0xff]
    %v262 = vld [vmem:[#allocation7 + $0x88] sm:$0xf]
    %v263 = vld [vmem:[#allocation7 + $0x8c] sm:$0xff]
    %v264 = vld [vmem:[#allocation7 + $0x94] sm:$0xff]
    %v265 = vld [vmem:[#allocation7 + $0x9c] sm:$0xff]
    %v266 = vld [vmem:[#allocation7 + $0xa4] sm:$0xf]
    %v267 = vld [vmem:[#allocation7 + $0xa8] sm:$0xff]
    %v268 = vld [vmem:[#allocation7 + $0xb0] sm:$0xff]
    %v269 = vld [vmem:[#allocation7 + $0xb8] sm:$0xff]
    %v270 = vld [vmem:[#allocation7 + $0xc0] sm:$0xf]
    %v271 = vld [vmem:[#allocation7 + $0xc4] sm:$0xff]
    %v272 = vld [vmem:[#allocation7 + $0xcc] sm:$0xff]
    %v273 = vld [vmem:[#allocation7 + $0xd4] sm:$0xff]
    %v274 = vld [vmem:[#allocation7 + $0xdc] sm:$0xf]
    %v275 = vld [vmem:[#allocation7 + $0xe0] sm:$0xff]
    %v276 = vld [vmem:[#allocation7 + $0xe8] sm:$0xff]
    %v277 = vld [vmem:[#allocation7 + $0xf0] sm:$0xff]
    %v278 = vld [vmem:[#allocation7 + $0xf8] sm:$0xf]
    %v279 = vld [vmem:[#allocation7 + $0xfc] sm:$0xff]
    %v280 = vld [vmem:[#allocation7 + $0x104] sm:$0xff]
    %v281 = vld [vmem:[#allocation7 + $0x10c] sm:$0xff]
    %v282 = vld [vmem:[#allocation7 + $0x114] sm:$0xf]
    %v283 = vld [vmem:[#allocation7 + $0x118] sm:$0xff]
    %v284 = vld [vmem:[#allocation7 + $0x120] sm:$0xff]
    %v285 = vld [vmem:[#allocation7 + $0x128] sm:$0xff]
    %v286 = vld [vmem:[#allocation7 + $0x130] sm:$0xf]
    %v287 = vld [vmem:[#allocation7 + $0x134] sm:$0xff]
    %v288 = vld [vmem:[#allocation7 + $0x13c] sm:$0xff]
    %v289 = vld [vmem:[#allocation7 + $0x144] sm:$0xff]
    %v290 = vld [vmem:[#allocation7 + $0x14c] sm:$0xf]
    %v291 = vld [vmem:[#allocation7 + $0x150] sm:$0xff]
    %v292 = vld [vmem:[#allocation7 + $0x158] sm:$0xff]
    %v293 = vld [vmem:[#allocation7 + $0x160] sm:$0xff]
    %v294 = vld [vmem:[#allocation7 + $0x168] sm:$0xf]
    %v295 = vld [vmem:[#allocation7 + $0x16c] sm:$0xff]
    %v296 = vld [vmem:[#allocation7 + $0x174] sm:$0xff]
    %v297 = vld [vmem:[#allocation7 + $0x17c] sm:$0xff]
    %v298 = vld [vmem:[#allocation7 + $0x184] sm:$0xf]
    %v299 = vld [vmem:[#allocation7 + $0x188] sm:$0xff]
    %v300 = vld [vmem:[#allocation7 + $0x190] sm:$0xff]
    %v301 = vld [vmem:[#allocation7 + $0x198] sm:$0xff]
    %v302 = vld [vmem:[#allocation7 + $0x1a0] sm:$0xf]
    %v303 = vld [vmem:[#allocation7 + $0x1a4] sm:$0xff]
    %v304 = vld [vmem:[#allocation7 + $0x1ac] sm:$0xff]
    %v305 = vld [vmem:[#allocation7 + $0x1b4] sm:$0xff]
    %v306 = vld [vmem:[#allocation7 + $0x1bc] sm:$0xf]
    %v307 = vld [vmem:[#allocation7 + $0x1c0] sm:$0xff]
    %v308 = vld [vmem:[#allocation7 + $0x1c8] sm:$0xff]
    %v309 = vld [vmem:[#allocation7 + $0x1d0] sm:$0xff]
    %v310 = vld [vmem:[#allocation7 + $0x1d8] sm:$0xf]
    %v311 = vld [vmem:[#allocation7 + $0x1dc] sm:$0xff]
    %v312 = vld [vmem:[#allocation7 + $0x1e4] sm:$0xff]
    %v313 = vld [vmem:[#allocation7 + $0x1ec] sm:$0xff]
    %v314 = vld [vmem:[#allocation7 + $0x1f4] sm:$0xf]
    %v315 = vld [vmem:[#allocation7 + $0x1f8] sm:$0xff]
    %v316 = vld [vmem:[#allocation7 + $0x200] sm:$0xff]
    %v317 = vld [vmem:[#allocation7 + $0x208] sm:$0xff]
    %v318 = vld [vmem:[#allocation7 + $0x210] sm:$0xf]
    %v319 = vld [vmem:[#allocation7 + $0x214] sm:$0xff]
    %v320 = vld [vmem:[#allocation7 + $0x21c] sm:$0xff]
    %v321 = vld [vmem:[#allocation7 + $0x224] sm:$0xff]
    %v322 = vld [vmem:[#allocation7 + $0x22c] sm:$0xf]
    %v323 = vld [vmem:[#allocation7 + $0x230] sm:$0xff]
    %v324 = vld [vmem:[#allocation7 + $0x238] sm:$0xff]
    %v325 = vld [vmem:[#allocation7 + $0x240] sm:$0xff]
    %v326 = vld [vmem:[#allocation7 + $0x248] sm:$0xf]
    %v327 = vld [vmem:[#allocation7 + $0x24c] sm:$0xff]
    %v328 = vld [vmem:[#allocation7 + $0x254] sm:$0xff]
    %v329 = vld [vmem:[#allocation7 + $0x25c] sm:$0xff]
    %v330 = vld [vmem:[#allocation7 + $0x264] sm:$0xf]
    %v331 = vld [vmem:[#allocation7 + $0x268] sm:$0xff]
    %v332 = vld [vmem:[#allocation7 + $0x270] sm:$0xff]
    %v333 = vld [vmem:[#allocation7 + $0x278] sm:$0xff]
    %v334 = vld [vmem:[#allocation7 + $0x280] sm:$0xf]
    %v335 = vld [vmem:[#allocation7 + $0x284] sm:$0xff]
    %v336 = vld [vmem:[#allocation7 + $0x28c] sm:$0xff]
    %v337 = vld [vmem:[#allocation7 + $0x294] sm:$0xff]
    %v338 = vld [vmem:[#allocation7 + $0x29c] sm:$0xf]
    %v339 = vld [vmem:[#allocation7 + $0x2a0] sm:$0xff]
    %v340 = vld [vmem:[#allocation7 + $0x2a8] sm:$0xff]
    %v341 = vld [vmem:[#allocation7 + $0x2b0] sm:$0xff]
    %v342 = vld [vmem:[#allocation7 + $0x2b8] sm:$0xf]
    %v343 = vld [vmem:[#allocation7 + $0x2bc] sm:$0xff]
    %v344 = vld [vmem:[#allocation7 + $0x2c4] sm:$0xff]
    %v345 = vld [vmem:[#allocation7 + $0x2cc] sm:$0xff]
    %v346 = vld [vmem:[#allocation7 + $0x2d4] sm:$0xf]
    %v347 = vld [vmem:[#allocation7 + $0x2d8] sm:$0xff]
    %v348 = vld [vmem:[#allocation7 + $0x2e0] sm:$0xff]
    %v349 = vld [vmem:[#allocation7 + $0x2e8] sm:$0xff]
    %v350 = vld [vmem:[#allocation7 + $0x2f0] sm:$0xf]
    %v351 = vld [vmem:[#allocation7 + $0x2f4] sm:$0xff]
    %v352 = vld [vmem:[#allocation7 + $0x2fc] sm:$0xff]
    %v353 = vld [vmem:[#allocation7 + $0x304] sm:$0xff]
    %v354 = vld [vmem:[#allocation7 + $0x30c] sm:$0xf]
    %v355 = vld [vmem:[#allocation7 + $0x310] sm:$0xff]
    %v356 = vld [vmem:[#allocation7 + $0x318] sm:$0xff]
    %v357 = vld [vmem:[#allocation7 + $0x320] sm:$0xff]
    %v358 = vld [vmem:[#allocation7 + $0x328] sm:$0xf]
    %v359 = vld [vmem:[#allocation7 + $0x32c] sm:$0xff]
    %v360 = vld [vmem:[#allocation7 + $0x334] sm:$0xff]
    %v361 = vld [vmem:[#allocation7 + $0x33c] sm:$0xff]
    %v362 = vld [vmem:[#allocation7 + $0x344] sm:$0xf]
    %v363 = vld [vmem:[#allocation7 + $0x348] sm:$0xff]
    %v364 = vld [vmem:[#allocation7 + $0x350] sm:$0xff]
    %v365 = vld [vmem:[#allocation7 + $0x358] sm:$0xff]
    %v366 = vld [vmem:[#allocation7 + $0x360] sm:$0xf]
    %v367 = vld [vmem:[#allocation7 + $0x364] sm:$0xff]
    %v368 = vld [vmem:[#allocation7 + $0x36c] sm:$0xff]
    %v369 = vld [vmem:[#allocation7 + $0x374] sm:$0xff]
    %v370 = vld [vmem:[#allocation7 + $0x37c] sm:$0xf]
    %v371 = vld [vmem:[#allocation7 + $0x380] sm:$0xff]
    %v372 = vld [vmem:[#allocation7 + $0x388] sm:$0xff]
    %v373 = vld [vmem:[#allocation7 + $0x390] sm:$0xff]
    %v374 = vld [vmem:[#allocation7 + $0x398] sm:$0xf]
    %v375 = vld [vmem:[#allocation7 + $0x39c] sm:$0xff]
    %v376 = vld [vmem:[#allocation7 + $0x3a4] sm:$0xff]
    %v377 = vld [vmem:[#allocation7 + $0x3ac] sm:$0xff]
    %v378 = vld [vmem:[#allocation7 + $0x3b4] sm:$0xf]
    %v379 = vld [vmem:[#allocation7 + $0x3b8] sm:$0xff]
    %v380 = vld [vmem:[#allocation7 + $0x3c0] sm:$0xff]
    %v381 = vld [vmem:[#allocation7 + $0x3c8] sm:$0xff]
    %v382 = vld [vmem:[#allocation7 + $0x3d0] sm:$0xf]
    %v383 = vld [vmem:[#allocation7 + $0x3d4] sm:$0xff]
    %v384 = vld [vmem:[#allocation7 + $0x3dc] sm:$0xff]
    %v385 = vld [vmem:[#allocation7 + $0x3e4] sm:$0xff]
    %v386 = vld [vmem:[#allocation7 + $0x3ec] sm:$0xf]
    %v387 = vld [vmem:[#allocation7 + $0x3f0] sm:$0xff]
    %v388 = vld [vmem:[#allocation7 + $0x3f8] sm:$0xff]
    %v389 = vld [vmem:[#allocation7 + $0x400] sm:$0xff]
    %v390 = vld [vmem:[#allocation7 + $0x408] sm:$0xf]
    %v391 = vld [vmem:[#allocation7 + $0x40c] sm:$0xff]
    %v392 = vld [vmem:[#allocation7 + $0x414] sm:$0xff]
    %v393 = vld [vmem:[#allocation7 + $0x41c] sm:$0xff]
    %v394 = vld [vmem:[#allocation7 + $0x424] sm:$0xf]
    %v395 = vld [vmem:[#allocation7 + $0x428] sm:$0xff]
    %v396 = vld [vmem:[#allocation7 + $0x430] sm:$0xff]
    %v397 = vld [vmem:[#allocation7 + $0x438] sm:$0xff]
    %v398 = vld [vmem:[#allocation7 + $0x440] sm:$0xf]
    %v399 = vld [vmem:[#allocation7 + $0x444] sm:$0xff]
    %v400 = vld [vmem:[#allocation7 + $0x44c] sm:$0xff]
    %v401 = vld [vmem:[#allocation7 + $0x454] sm:$0xff]
    %v402 = vld [vmem:[#allocation7 + $0x45c] sm:$0xf]
    %v403 = vld [vmem:[#allocation7 + $0x460] sm:$0xff]
    %v404 = vld [vmem:[#allocation7 + $0x468] sm:$0xff]
    %v405 = vld [vmem:[#allocation7 + $0x470] sm:$0xff]
    %v406 = vld [vmem:[#allocation7 + $0x478] sm:$0xf]
    %v407 = vld [vmem:[#allocation7 + $0x47c] sm:$0xff]
    %v408 = vld [vmem:[#allocation7 + $0x484] sm:$0xff]
    %v409 = vld [vmem:[#allocation7 + $0x48c] sm:$0xff]
    %v410 = vld [vmem:[#allocation7 + $0x494] sm:$0xf]
    %v411 = vld [vmem:[#allocation7 + $0x498] sm:$0xff]
    %v412 = vld [vmem:[#allocation7 + $0x4a0] sm:$0xff]
    %v413 = vld [vmem:[#allocation7 + $0x4a8] sm:$0xff]
    %v414 = vld [vmem:[#allocation7 + $0x4b0] sm:$0xf]
    %v415 = vld [vmem:[#allocation7 + $0x4b4] sm:$0xff]
    %v416 = vld [vmem:[#allocation7 + $0x4bc] sm:$0xff]
    %v417 = vld [vmem:[#allocation7 + $0x4c4] sm:$0xff]
    %v418 = vld [vmem:[#allocation7 + $0x4cc] sm:$0xf]
    %v419 = vld [vmem:[#allocation7 + $0x4d0] sm:$0xff]
    %v420 = vld [vmem:[#allocation7 + $0x4d8] sm:$0xff]
    %v421 = vld [vmem:[#allocation7 + $0x4e0] sm:$0xff]
    %v422 = vld [vmem:[#allocation7 + $0x4e8] sm:$0xf]
    %v423 = vld [vmem:[#allocation7 + $0x4ec] sm:$0xff]
    %v424 = vld [vmem:[#allocation7 + $0x4f4] sm:$0xff]
    %v425 = vld [vmem:[#allocation7 + $0x4fc] sm:$0xff]
    %v426 = vld [vmem:[#allocation7 + $0x504] sm:$0xf]
    %v427 = vld [vmem:[#allocation7 + $0x508] sm:$0xff]
    %v428 = vld [vmem:[#allocation7 + $0x510] sm:$0xff]
    %v429 = vld [vmem:[#allocation7 + $0x518] sm:$0xff]
    %v430 = vld [vmem:[#allocation7 + $0x520] sm:$0xf]
    %v431 = vld [vmem:[#allocation7 + $0x524] sm:$0xff]
    %v432 = vld [vmem:[#allocation7 + $0x52c] sm:$0xff]
    %v433 = vld [vmem:[#allocation7 + $0x534] sm:$0xff]
    %v434 = vld [vmem:[#allocation7 + $0x53c] sm:$0xf]
    %v435 = vld [vmem:[#allocation7 + $0x540] sm:$0xff]
    %v436 = vld [vmem:[#allocation7 + $0x548] sm:$0xff]
    %v437 = vld [vmem:[#allocation7 + $0x550] sm:$0xff]
    %v438 = vld [vmem:[#allocation7 + $0x558] sm:$0xf]
    %v439 = vld [vmem:[#allocation7 + $0x55c] sm:$0xff]
    %v440 = vld [vmem:[#allocation7 + $0x564] sm:$0xff]
    %v441 = vld [vmem:[#allocation7 + $0x56c] sm:$0xff]
    %v442 = vld [vmem:[#allocation7 + $0x574] sm:$0xf]
    %v443 = vld [vmem:[#allocation7 + $0x578] sm:$0xff]
    %v444 = vld [vmem:[#allocation7 + $0x580] sm:$0xff]
    %v445 = vld [vmem:[#allocation7 + $0x588] sm:$0xff]
    %v446 = vld [vmem:[#allocation7 + $0x590] sm:$0xf]
    %v447 = vld [vmem:[#allocation7 + $0x594] sm:$0xff]
    %v448 = vld [vmem:[#allocation7 + $0x59c] sm:$0xff]
    %v449 = vld [vmem:[#allocation7 + $0x5a4] sm:$0xff]
    %v450 = vld [vmem:[#allocation7 + $0x5ac] sm:$0xf]
    %v451 = vld [vmem:[#allocation7 + $0x5b0] sm:$0xff]
    %v452 = vld [vmem:[#allocation7 + $0x5b8] sm:$0xff]
    %v453 = vld [vmem:[#allocation7 + $0x5c0] sm:$0xff]
    %v454 = vld [vmem:[#allocation7 + $0x5c8] sm:$0xf]
    %v455 = vld [vmem:[#allocation7 + $0x5cc] sm:$0xff]
    %v456 = vld [vmem:[#allocation7 + $0x5d4] sm:$0xff]
    %v457 = vld [vmem:[#allocation7 + $0x5dc] sm:$0xff]
    %v458 = vld [vmem:[#allocation7 + $0x5e4] sm:$0xf]
    %v459 = vld [vmem:[#allocation7 + $0x5e8] sm:$0xff]
    %v460 = vld [vmem:[#allocation7 + $0x5f0] sm:$0xff]
    %v461 = vld [vmem:[#allocation7 + $0x5f8] sm:$0xff]
    %v462 = vld [vmem:[#allocation7 + $0x600] sm:$0xf]
    %v463 = vld [vmem:[#allocation7 + $0x604] sm:$0xff]
    %v464 = vld [vmem:[#allocation7 + $0x60c] sm:$0xff]
    %v465 = vld [vmem:[#allocation7 + $0x614] sm:$0xff]
    %v466 = vld [vmem:[#allocation7 + $0x61c] sm:$0xf]
    %v467 = vld [vmem:[#allocation7 + $0x620] sm:$0xff]
    %v468 = vld [vmem:[#allocation7 + $0x628] sm:$0xff]
    %v469 = vld [vmem:[#allocation7 + $0x630] sm:$0xff]
    %v470 = vld [vmem:[#allocation7 + $0x638] sm:$0xf]
    %v471 = vld [vmem:[#allocation7 + $0x63c] sm:$0xff]
    %v472 = vld [vmem:[#allocation7 + $0x644] sm:$0xff]
    %v473 = vld [vmem:[#allocation7 + $0x64c] sm:$0xff]
    %v474 = vld [vmem:[#allocation7 + $0x654] sm:$0xf]
    %v475 = vld [vmem:[#allocation7 + $0x658] sm:$0xff]
    %v476 = vld [vmem:[#allocation7 + $0x660] sm:$0xff]
    %v477 = vld [vmem:[#allocation7 + $0x668] sm:$0xff]
    %v478 = vld [vmem:[#allocation7 + $0x670] sm:$0xf]
    %v479 = vld [vmem:[#allocation7 + $0x674] sm:$0xff]
    %v480 = vld [vmem:[#allocation7 + $0x67c] sm:$0xff]
    %v481 = vld [vmem:[#allocation7 + $0x684] sm:$0xff]
    %v482 = vld [vmem:[#allocation7 + $0x68c] sm:$0xf]
    %v483 = vld [vmem:[#allocation7 + $0x690] sm:$0xff]
    %v484 = vld [vmem:[#allocation7 + $0x698] sm:$0xff]
    %v485 = vld [vmem:[#allocation7 + $0x6a0] sm:$0xff]
    %v486 = vld [vmem:[#allocation7 + $0x6a8] sm:$0xf]
    %v487 = vld [vmem:[#allocation7 + $0x6ac] sm:$0xff]
    %v488 = vld [vmem:[#allocation7 + $0x6b4] sm:$0xff]
    %v489 = vld [vmem:[#allocation7 + $0x6bc] sm:$0xff]
    %v490 = vld [vmem:[#allocation7 + $0x6c4] sm:$0xf]
    %v491 = vld [vmem:[#allocation7 + $0x6c8] sm:$0xff]
    %v492 = vld [vmem:[#allocation7 + $0x6d0] sm:$0xff]
    %v493 = vld [vmem:[#allocation7 + $0x6d8] sm:$0xff]
    %v494 = vld [vmem:[#allocation7 + $0x6e0] sm:$0xf]
    %v495 = vld [vmem:[#allocation7 + $0x6e4] sm:$0xff]
    %v496 = vld [vmem:[#allocation7 + $0x6ec] sm:$0xff]
    %v497 = vld [vmem:[#allocation7 + $0x6f4] sm:$0xff]
    %v498 = vld [vmem:[#allocation7 + $0x6fc] sm:$0xf]
    %v499 = vld [vmem:[%s4] sm:$0xff]
    %v501 = vlaneseq
    %v502 = vshrl.u32 %v501, 7
    %v503 = vsub.s32 0, %v502
    %v504 = vrot.slane %v499, %v503
    %v505 = vlaneseq
    %v506 = vshrl.u32 %v505, 7
    %v507 = vsub.s32 1, %v506
    %v508 = vrot.slane %v499, %v507
    %v509 = vlaneseq
    %v510 = vshrl.u32 %v509, 7
    %v511 = vsub.s32 2, %v510
    %v512 = vrot.slane %v499, %v511
    %v513 = vlaneseq
    %v514 = vshrl.u32 %v513, 7
    %v515 = vsub.s32 3, %v514
    %v516 = vrot.slane %v499, %v515
    %v517 = vlaneseq
    %v518 = vshrl.u32 %v517, 7
    %v519 = vsub.s32 4, %v518
    %v520 = vrot.slane %v499, %v519
    %v521 = vlaneseq
    %v522 = vshrl.u32 %v521, 7
    %v523 = vsub.s32 5, %v522
    %v524 = vrot.slane %v499, %v523
    %v525 = vlaneseq
    %v526 = vshrl.u32 %v525, 7
    %v527 = vsub.s32 6, %v526
    %v528 = vrot.slane %v499, %v527
    %v792 = vunpack.c.l.b16 %v243
    %v793 = vunpack.c.h.b16 %v243
    %v794 = vunpack.c.l.b16 %v244
    %v795 = vunpack.c.h.b16 %v244
    %v796 = vunpack.c.l.b16 %v245
    %v797 = vunpack.c.h.b16 %v245
    %v798 = vunpack.c.l.b16 %v246
    %v799 = vunpack.c.l.b16 %v247
    %v800 = vunpack.c.h.b16 %v247
    %v801 = vunpack.c.l.b16 %v248
    %v802 = vunpack.c.h.b16 %v248
    %v803 = vunpack.c.l.b16 %v249
    %v804 = vunpack.c.h.b16 %v249
    %v805 = vunpack.c.l.b16 %v250
    %v806 = vunpack.c.l.b16 %v251
    %v807 = vunpack.c.h.b16 %v251
    %v808 = vunpack.c.l.b16 %v252
    %v809 = vunpack.c.h.b16 %v252
    %v810 = vunpack.c.l.b16 %v253
    %v811 = vunpack.c.h.b16 %v253
    %v812 = vunpack.c.l.b16 %v254
    %v813 = vunpack.c.l.b16 %v255
    %v814 = vunpack.c.h.b16 %v255
    %v815 = vunpack.c.l.b16 %v256
    %v816 = vunpack.c.h.b16 %v256
    %v817 = vunpack.c.l.b16 %v257
    %v818 = vunpack.c.h.b16 %v257
    %v819 = vunpack.c.l.b16 %v258
    %v820 = vunpack.c.l.b16 %v259
    %v821 = vunpack.c.h.b16 %v259
    %v822 = vunpack.c.l.b16 %v260
    %v823 = vunpack.c.h.b16 %v260
    %v824 = vunpack.c.l.b16 %v261
    %v825 = vunpack.c.h.b16 %v261
    %v826 = vunpack.c.l.b16 %v262
    %v827 = vunpack.c.l.b16 %v263
    %v828 = vunpack.c.h.b16 %v263
    %v829 = vunpack.c.l.b16 %v264
    %v830 = vunpack.c.h.b16 %v264
    %v831 = vunpack.c.l.b16 %v265
    %v832 = vunpack.c.h.b16 %v265
    %v833 = vunpack.c.l.b16 %v266
    %v834 = vunpack.c.l.b16 %v267
    %v835 = vunpack.c.h.b16 %v267
    %v836 = vunpack.c.l.b16 %v268
    %v837 = vunpack.c.h.b16 %v268
    %v838 = vunpack.c.l.b16 %v269
    %v839 = vunpack.c.h.b16 %v269
    %v840 = vunpack.c.l.b16 %v270
    %v841 = vunpack.c.l.b16 %v271
    %v842 = vunpack.c.h.b16 %v271
    %v843 = vunpack.c.l.b16 %v272
    %v844 = vunpack.c.h.b16 %v272
    %v845 = vunpack.c.l.b16 %v273
    %v846 = vunpack.c.h.b16 %v273
    %v847 = vunpack.c.l.b16 %v274
    %v848 = vunpack.c.l.b16 %v275
    %v849 = vunpack.c.h.b16 %v275
    %v850 = vunpack.c.l.b16 %v276
    %v851 = vunpack.c.h.b16 %v276
    %v852 = vunpack.c.l.b16 %v277
    %v853 = vunpack.c.h.b16 %v277
    %v854 = vunpack.c.l.b16 %v278
    %v855 = vunpack.c.l.b16 %v279
    %v856 = vunpack.c.h.b16 %v279
    %v857 = vunpack.c.l.b16 %v280
    %v858 = vunpack.c.h.b16 %v280
    %v859 = vunpack.c.l.b16 %v281
    %v860 = vunpack.c.h.b16 %v281
    %v861 = vunpack.c.l.b16 %v282
    %v862 = vunpack.c.l.b16 %v283
    %v863 = vunpack.c.h.b16 %v283
    %v864 = vunpack.c.l.b16 %v284
    %v865 = vunpack.c.h.b16 %v284
    %v866 = vunpack.c.l.b16 %v285
    %v867 = vunpack.c.h.b16 %v285
    %v868 = vunpack.c.l.b16 %v286
    %v869 = vunpack.c.l.b16 %v287
    %v870 = vunpack.c.h.b16 %v287
    %v871 = vunpack.c.l.b16 %v288
    %v872 = vunpack.c.h.b16 %v288
    %v873 = vunpack.c.l.b16 %v289
    %v874 = vunpack.c.h.b16 %v289
    %v875 = vunpack.c.l.b16 %v290
    %v876 = vunpack.c.l.b16 %v291
    %v877 = vunpack.c.h.b16 %v291
    %v878 = vunpack.c.l.b16 %v292
    %v879 = vunpack.c.h.b16 %v292
    %v880 = vunpack.c.l.b16 %v293
    %v881 = vunpack.c.h.b16 %v293
    %v882 = vunpack.c.l.b16 %v294
    %v883 = vunpack.c.l.b16 %v295
    %v884 = vunpack.c.h.b16 %v295
    %v885 = vunpack.c.l.b16 %v296
    %v886 = vunpack.c.h.b16 %v296
    %v887 = vunpack.c.l.b16 %v297
    %v888 = vunpack.c.h.b16 %v297
    %v889 = vunpack.c.l.b16 %v298
    %v890 = vunpack.c.l.b16 %v299
    %v891 = vunpack.c.h.b16 %v299
    %v892 = vunpack.c.l.b16 %v300
    %v893 = vunpack.c.h.b16 %v300
    %v894 = vunpack.c.l.b16 %v301
    %v895 = vunpack.c.h.b16 %v301
    %v896 = vunpack.c.l.b16 %v302
    %v897 = vunpack.c.l.b16 %v303
    %v898 = vunpack.c.h.b16 %v303
    %v899 = vunpack.c.l.b16 %v304
    %v900 = vunpack.c.h.b16 %v304
    %v901 = vunpack.c.l.b16 %v305
    %v902 = vunpack.c.h.b16 %v305
    %v903 = vunpack.c.l.b16 %v306
    %v904 = vunpack.c.l.b16 %v307
    %v905 = vunpack.c.h.b16 %v307
    %v906 = vunpack.c.l.b16 %v308
    %v907 = vunpack.c.h.b16 %v308
    %v908 = vunpack.c.l.b16 %v309
    %v909 = vunpack.c.h.b16 %v309
    %v910 = vunpack.c.l.b16 %v310
    %v911 = vunpack.c.l.b16 %v311
    %v912 = vunpack.c.h.b16 %v311
    %v913 = vunpack.c.l.b16 %v312
    %v914 = vunpack.c.h.b16 %v312
    %v915 = vunpack.c.l.b16 %v313
    %v916 = vunpack.c.h.b16 %v313
    %v917 = vunpack.c.l.b16 %v314
    %v918 = vunpack.c.l.b16 %v315
    %v919 = vunpack.c.h.b16 %v315
    %v920 = vunpack.c.l.b16 %v316
    %v921 = vunpack.c.h.b16 %v316
    %v922 = vunpack.c.l.b16 %v317
    %v923 = vunpack.c.h.b16 %v317
    %v924 = vunpack.c.l.b16 %v318
    %v925 = vunpack.c.l.b16 %v319
    %v926 = vunpack.c.h.b16 %v319
    %v927 = vunpack.c.l.b16 %v320
    %v928 = vunpack.c.h.b16 %v320
    %v929 = vunpack.c.l.b16 %v321
    %v930 = vunpack.c.h.b16 %v321
    %v931 = vunpack.c.l.b16 %v322
    %v932 = vunpack.c.l.b16 %v323
    %v933 = vunpack.c.h.b16 %v323
    %v934 = vunpack.c.l.b16 %v324
    %v935 = vunpack.c.h.b16 %v324
    %v936 = vunpack.c.l.b16 %v325
    %v937 = vunpack.c.h.b16 %v325
    %v938 = vunpack.c.l.b16 %v326
    %v939 = vunpack.c.l.b16 %v327
    %v940 = vunpack.c.h.b16 %v327
    %v941 = vunpack.c.l.b16 %v328
    %v942 = vunpack.c.h.b16 %v328
    %v943 = vunpack.c.l.b16 %v329
    %v944 = vunpack.c.h.b16 %v329
    %v945 = vunpack.c.l.b16 %v330
    %v946 = vunpack.c.l.b16 %v331
    %v947 = vunpack.c.h.b16 %v331
    %v948 = vunpack.c.l.b16 %v332
    %v949 = vunpack.c.h.b16 %v332
    %v950 = vunpack.c.l.b16 %v333
    %v951 = vunpack.c.h.b16 %v333
    %v952 = vunpack.c.l.b16 %v334
    %v953 = vunpack.c.l.b16 %v335
    %v954 = vunpack.c.h.b16 %v335
    %v955 = vunpack.c.l.b16 %v336
    %v956 = vunpack.c.h.b16 %v336
    %v957 = vunpack.c.l.b16 %v337
    %v958 = vunpack.c.h.b16 %v337
    %v959 = vunpack.c.l.b16 %v338
    %v960 = vunpack.c.l.b16 %v339
    %v961 = vunpack.c.h.b16 %v339
    %v962 = vunpack.c.l.b16 %v340
    %v963 = vunpack.c.h.b16 %v340
    %v964 = vunpack.c.l.b16 %v341
    %v965 = vunpack.c.h.b16 %v341
    %v966 = vunpack.c.l.b16 %v342
    %v967 = vunpack.c.l.b16 %v343
    %v968 = vunpack.c.h.b16 %v343
    %v969 = vunpack.c.l.b16 %v344
    %v970 = vunpack.c.h.b16 %v344
    %v971 = vunpack.c.l.b16 %v345
    %v972 = vunpack.c.h.b16 %v345
    %v973 = vunpack.c.l.b16 %v346
    %v974 = vunpack.c.l.b16 %v347
    %v975 = vunpack.c.h.b16 %v347
    %v976 = vunpack.c.l.b16 %v348
    %v977 = vunpack.c.h.b16 %v348
    %v978 = vunpack.c.l.b16 %v349
    %v979 = vunpack.c.h.b16 %v349
    %v980 = vunpack.c.l.b16 %v350
    %v981 = vunpack.c.l.b16 %v351
    %v982 = vunpack.c.h.b16 %v351
    %v983 = vunpack.c.l.b16 %v352
    %v984 = vunpack.c.h.b16 %v352
    %v985 = vunpack.c.l.b16 %v353
    %v986 = vunpack.c.h.b16 %v353
    %v987 = vunpack.c.l.b16 %v354
    %v988 = vunpack.c.l.b16 %v355
    %v989 = vunpack.c.h.b16 %v355
    %v990 = vunpack.c.l.b16 %v356
    %v991 = vunpack.c.h.b16 %v356
    %v992 = vunpack.c.l.b16 %v357
    %v993 = vunpack.c.h.b16 %v357
    %v994 = vunpack.c.l.b16 %v358
    %v995 = vunpack.c.l.b16 %v359
    %v996 = vunpack.c.h.b16 %v359
    %v997 = vunpack.c.l.b16 %v360
    %v998 = vunpack.c.h.b16 %v360
    %v999 = vunpack.c.l.b16 %v361
    %v1000 = vunpack.c.h.b16 %v361
    %v1001 = vunpack.c.l.b16 %v362
    %v1002 = vunpack.c.l.b16 %v363
    %v1003 = vunpack.c.h.b16 %v363
    %v1004 = vunpack.c.l.b16 %v364
    %v1005 = vunpack.c.h.b16 %v364
    %v1006 = vunpack.c.l.b16 %v365
    %v1007 = vunpack.c.h.b16 %v365
    %v1008 = vunpack.c.l.b16 %v366
    %v1009 = vunpack.c.l.b16 %v367
    %v1010 = vunpack.c.h.b16 %v367
    %v1011 = vunpack.c.l.b16 %v368
    %v1012 = vunpack.c.h.b16 %v368
    %v1013 = vunpack.c.l.b16 %v369
    %v1014 = vunpack.c.h.b16 %v369
    %v1015 = vunpack.c.l.b16 %v370
    %v1016 = vunpack.c.l.b16 %v371
    %v1017 = vunpack.c.h.b16 %v371
    %v1018 = vunpack.c.l.b16 %v372
    %v1019 = vunpack.c.h.b16 %v372
    %v1020 = vunpack.c.l.b16 %v373
    %v1021 = vunpack.c.h.b16 %v373
    %v1022 = vunpack.c.l.b16 %v374
    %v1023 = vunpack.c.l.b16 %v375
    %v1024 = vunpack.c.h.b16 %v375
    %v1025 = vunpack.c.l.b16 %v376
    %v1026 = vunpack.c.h.b16 %v376
    %v1027 = vunpack.c.l.b16 %v377
    %v1028 = vunpack.c.h.b16 %v377
    %v1029 = vunpack.c.l.b16 %v378
    %v1030 = vunpack.c.l.b16 %v379
    %v1031 = vunpack.c.h.b16 %v379
    %v1032 = vunpack.c.l.b16 %v380
    %v1033 = vunpack.c.h.b16 %v380
    %v1034 = vunpack.c.l.b16 %v381
    %v1035 = vunpack.c.h.b16 %v381
    %v1036 = vunpack.c.l.b16 %v382
    %v1037 = vunpack.c.l.b16 %v383
    %v1038 = vunpack.c.h.b16 %v383
    %v1039 = vunpack.c.l.b16 %v384
    %v1040 = vunpack.c.h.b16 %v384
    %v1041 = vunpack.c.l.b16 %v385
    %v1042 = vunpack.c.h.b16 %v385
    %v1043 = vunpack.c.l.b16 %v386
    %v1044 = vunpack.c.l.b16 %v387
    %v1045 = vunpack.c.h.b16 %v387
    %v1046 = vunpack.c.l.b16 %v388
    %v1047 = vunpack.c.h.b16 %v388
    %v1048 = vunpack.c.l.b16 %v389
    %v1049 = vunpack.c.h.b16 %v389
    %v1050 = vunpack.c.l.b16 %v390
    %v1051 = vunpack.c.l.b16 %v391
    %v1052 = vunpack.c.h.b16 %v391
    %v1053 = vunpack.c.l.b16 %v392
    %v1054 = vunpack.c.h.b16 %v392
    %v1055 = vunpack.c.l.b16 %v393
    %v1056 = vunpack.c.h.b16 %v393
    %v1057 = vunpack.c.l.b16 %v394
    %v1058 = vunpack.c.l.b16 %v395
    %v1059 = vunpack.c.h.b16 %v395
    %v1060 = vunpack.c.l.b16 %v396
    %v1061 = vunpack.c.h.b16 %v396
    %v1062 = vunpack.c.l.b16 %v397
    %v1063 = vunpack.c.h.b16 %v397
    %v1064 = vunpack.c.l.b16 %v398
    %v1065 = vunpack.c.l.b16 %v399
    %v1066 = vunpack.c.h.b16 %v399
    %v1067 = vunpack.c.l.b16 %v400
    %v1068 = vunpack.c.h.b16 %v400
    %v1069 = vunpack.c.l.b16 %v401
    %v1070 = vunpack.c.h.b16 %v401
    %v1071 = vunpack.c.l.b16 %v402
    %v1072 = vunpack.c.l.b16 %v403
    %v1073 = vunpack.c.h.b16 %v403
    %v1074 = vunpack.c.l.b16 %v404
    %v1075 = vunpack.c.h.b16 %v404
    %v1076 = vunpack.c.l.b16 %v405
    %v1077 = vunpack.c.h.b16 %v405
    %v1078 = vunpack.c.l.b16 %v406
    %v1079 = vunpack.c.l.b16 %v407
    %v1080 = vunpack.c.h.b16 %v407
    %v1081 = vunpack.c.l.b16 %v408
    %v1082 = vunpack.c.h.b16 %v408
    %v1083 = vunpack.c.l.b16 %v409
    %v1084 = vunpack.c.h.b16 %v409
    %v1085 = vunpack.c.l.b16 %v410
    %v1086 = vunpack.c.l.b16 %v411
    %v1087 = vunpack.c.h.b16 %v411
    %v1088 = vunpack.c.l.b16 %v412
    %v1089 = vunpack.c.h.b16 %v412
    %v1090 = vunpack.c.l.b16 %v413
    %v1091 = vunpack.c.h.b16 %v413
    %v1092 = vunpack.c.l.b16 %v414
    %v1093 = vunpack.c.l.b16 %v415
    %v1094 = vunpack.c.h.b16 %v415
    %v1095 = vunpack.c.l.b16 %v416
    %v1096 = vunpack.c.h.b16 %v416
    %v1097 = vunpack.c.l.b16 %v417
    %v1098 = vunpack.c.h.b16 %v417
    %v1099 = vunpack.c.l.b16 %v418
    %v1100 = vunpack.c.l.b16 %v419
    %v1101 = vunpack.c.h.b16 %v419
    %v1102 = vunpack.c.l.b16 %v420
    %v1103 = vunpack.c.h.b16 %v420
    %v1104 = vunpack.c.l.b16 %v421
    %v1105 = vunpack.c.h.b16 %v421
    %v1106 = vunpack.c.l.b16 %v422
    %v1107 = vunpack.c.l.b16 %v423
    %v1108 = vunpack.c.h.b16 %v423
    %v1109 = vunpack.c.l.b16 %v424
    %v1110 = vunpack.c.h.b16 %v424
    %v1111 = vunpack.c.l.b16 %v425
    %v1112 = vunpack.c.h.b16 %v425
    %v1113 = vunpack.c.l.b16 %v426
    %v1114 = vunpack.c.l.b16 %v427
    %v1115 = vunpack.c.h.b16 %v427
    %v1116 = vunpack.c.l.b16 %v428
    %v1117 = vunpack.c.h.b16 %v428
    %v1118 = vunpack.c.l.b16 %v429
    %v1119 = vunpack.c.h.b16 %v429
    %v1120 = vunpack.c.l.b16 %v430
    %v1121 = vunpack.c.l.b16 %v431
    %v1122 = vunpack.c.h.b16 %v431
    %v1123 = vunpack.c.l.b16 %v432
    %v1124 = vunpack.c.h.b16 %v432
    %v1125 = vunpack.c.l.b16 %v433
    %v1126 = vunpack.c.h.b16 %v433
    %v1127 = vunpack.c.l.b16 %v434
    %v1128 = vunpack.c.l.b16 %v435
    %v1129 = vunpack.c.h.b16 %v435
    %v1130 = vunpack.c.l.b16 %v436
    %v1131 = vunpack.c.h.b16 %v436
    %v1132 = vunpack.c.l.b16 %v437
    %v1133 = vunpack.c.h.b16 %v437
    %v1134 = vunpack.c.l.b16 %v438
    %v1135 = vunpack.c.l.b16 %v439
    %v1136 = vunpack.c.h.b16 %v439
    %v1137 = vunpack.c.l.b16 %v440
    %v1138 = vunpack.c.h.b16 %v440
    %v1139 = vunpack.c.l.b16 %v441
    %v1140 = vunpack.c.h.b16 %v441
    %v1141 = vunpack.c.l.b16 %v442
    %v1142 = vunpack.c.l.b16 %v443
    %v1143 = vunpack.c.h.b16 %v443
    %v1144 = vunpack.c.l.b16 %v444
    %v1145 = vunpack.c.h.b16 %v444
    %v1146 = vunpack.c.l.b16 %v445
    %v1147 = vunpack.c.h.b16 %v445
    %v1148 = vunpack.c.l.b16 %v446
    %v1149 = vunpack.c.l.b16 %v447
    %v1150 = vunpack.c.h.b16 %v447
    %v1151 = vunpack.c.l.b16 %v448
    %v1152 = vunpack.c.h.b16 %v448
    %v1153 = vunpack.c.l.b16 %v449
    %v1154 = vunpack.c.h.b16 %v449
    %v1155 = vunpack.c.l.b16 %v450
    %v1156 = vunpack.c.l.b16 %v451
    %v1157 = vunpack.c.h.b16 %v451
    %v1158 = vunpack.c.l.b16 %v452
    %v1159 = vunpack.c.h.b16 %v452
    %v1160 = vunpack.c.l.b16 %v453
    %v1161 = vunpack.c.h.b16 %v453
    %v1162 = vunpack.c.l.b16 %v454
    %v1163 = vunpack.c.l.b16 %v455
    %v1164 = vunpack.c.h.b16 %v455
    %v1165 = vunpack.c.l.b16 %v456
    %v1166 = vunpack.c.h.b16 %v456
    %v1167 = vunpack.c.l.b16 %v457
    %v1168 = vunpack.c.h.b16 %v457
    %v1169 = vunpack.c.l.b16 %v458
    %v1170 = vunpack.c.l.b16 %v459
    %v1171 = vunpack.c.h.b16 %v459
    %v1172 = vunpack.c.l.b16 %v460
    %v1173 = vunpack.c.h.b16 %v460
    %v1174 = vunpack.c.l.b16 %v461
    %v1175 = vunpack.c.h.b16 %v461
    %v1176 = vunpack.c.l.b16 %v462
    %v1177 = vunpack.c.l.b16 %v463
    %v1178 = vunpack.c.h.b16 %v463
    %v1179 = vunpack.c.l.b16 %v464
    %v1180 = vunpack.c.h.b16 %v464
    %v1181 = vunpack.c.l.b16 %v465
    %v1182 = vunpack.c.h.b16 %v465
    %v1183 = vunpack.c.l.b16 %v466
    %v1184 = vunpack.c.l.b16 %v467
    %v1185 = vunpack.c.h.b16 %v467
    %v1186 = vunpack.c.l.b16 %v468
    %v1187 = vunpack.c.h.b16 %v468
    %v1188 = vunpack.c.l.b16 %v469
    %v1189 = vunpack.c.h.b16 %v469
    %v1190 = vunpack.c.l.b16 %v470
    %v1191 = vunpack.c.l.b16 %v471
    %v1192 = vunpack.c.h.b16 %v471
    %v1193 = vunpack.c.l.b16 %v472
    %v1194 = vunpack.c.h.b16 %v472
    %v1195 = vunpack.c.l.b16 %v473
    %v1196 = vunpack.c.h.b16 %v473
    %v1197 = vunpack.c.l.b16 %v474
    %v1198 = vunpack.c.l.b16 %v475
    %v1199 = vunpack.c.h.b16 %v475
    %v1200 = vunpack.c.l.b16 %v476
    %v1201 = vunpack.c.h.b16 %v476
    %v1202 = vunpack.c.l.b16 %v477
    %v1203 = vunpack.c.h.b16 %v477
    %v1204 = vunpack.c.l.b16 %v478
    %v1205 = vunpack.c.l.b16 %v479
    %v1206 = vunpack.c.h.b16 %v479
    %v1207 = vunpack.c.l.b16 %v480
    %v1208 = vunpack.c.h.b16 %v480
    %v1209 = vunpack.c.l.b16 %v481
    %v1210 = vunpack.c.h.b16 %v481
    %v1211 = vunpack.c.l.b16 %v482
    %v1212 = vunpack.c.l.b16 %v483
    %v1213 = vunpack.c.h.b16 %v483
    %v1214 = vunpack.c.l.b16 %v484
    %v1215 = vunpack.c.h.b16 %v484
    %v1216 = vunpack.c.l.b16 %v485
    %v1217 = vunpack.c.h.b16 %v485
    %v1218 = vunpack.c.l.b16 %v486
    %v1219 = vunpack.c.l.b16 %v487
    %v1220 = vunpack.c.h.b16 %v487
    %v1221 = vunpack.c.l.b16 %v488
    %v1222 = vunpack.c.h.b16 %v488
    %v1223 = vunpack.c.l.b16 %v489
    %v1224 = vunpack.c.h.b16 %v489
    %v1225 = vunpack.c.l.b16 %v490
    %v1226 = vunpack.c.l.b16 %v491
    %v1227 = vunpack.c.h.b16 %v491
    %v1228 = vunpack.c.l.b16 %v492
    %v1229 = vunpack.c.h.b16 %v492
    %v1230 = vunpack.c.l.b16 %v493
    %v1231 = vunpack.c.h.b16 %v493
    %v1232 = vunpack.c.l.b16 %v494
    %v1233 = vunpack.c.l.b16 %v495
    %v1234 = vunpack.c.h.b16 %v495
    %v1235 = vunpack.c.l.b16 %v496
    %v1236 = vunpack.c.h.b16 %v496
    %v1237 = vunpack.c.l.b16 %v497
    %v1238 = vunpack.c.h.b16 %v497
    %v1239 = vunpack.c.l.b16 %v498
    %v1240 = vpack.c.b16 %v799, %v792
    %v1241 = vpack.c.b16 %v800, %v793
    %v1242 = vpack.c.b16 %v801, %v794
    %v1243 = vpack.c.b16 %v802, %v795
    %v1244 = vpack.c.b16 %v803, %v796
    %v1245 = vpack.c.b16 %v804, %v797
    %v1246 = vpack.c.b16 %v805, %v798
    %v1247 = vpack.c.b16 %v813, %v806
    %v1248 = vpack.c.b16 %v814, %v807
    %v1249 = vpack.c.b16 %v815, %v808
    %v1250 = vpack.c.b16 %v816, %v809
    %v1251 = vpack.c.b16 %v817, %v810
    %v1252 = vpack.c.b16 %v818, %v811
    %v1253 = vpack.c.b16 %v819, %v812
    %v1254 = vpack.c.b16 %v827, %v820
    %v1255 = vpack.c.b16 %v828, %v821
    %v1256 = vpack.c.b16 %v829, %v822
    %v1257 = vpack.c.b16 %v830, %v823
    %v1258 = vpack.c.b16 %v831, %v824
    %v1259 = vpack.c.b16 %v832, %v825
    %v1260 = vpack.c.b16 %v833, %v826
    %v1261 = vpack.c.b16 %v841, %v834
    %v1262 = vpack.c.b16 %v842, %v835
    %v1263 = vpack.c.b16 %v843, %v836
    %v1264 = vpack.c.b16 %v844, %v837
    %v1265 = vpack.c.b16 %v845, %v838
    %v1266 = vpack.c.b16 %v846, %v839
    %v1267 = vpack.c.b16 %v847, %v840
    %v1268 = vpack.c.b16 %v855, %v848
    %v1269 = vpack.c.b16 %v856, %v849
    %v1270 = vpack.c.b16 %v857, %v850
    %v1271 = vpack.c.b16 %v858, %v851
    %v1272 = vpack.c.b16 %v859, %v852
    %v1273 = vpack.c.b16 %v860, %v853
    %v1274 = vpack.c.b16 %v861, %v854
    %v1275 = vpack.c.b16 %v869, %v862
    %v1276 = vpack.c.b16 %v870, %v863
    %v1277 = vpack.c.b16 %v871, %v864
    %v1278 = vpack.c.b16 %v872, %v865
    %v1279 = vpack.c.b16 %v873, %v866
    %v1280 = vpack.c.b16 %v874, %v867
    %v1281 = vpack.c.b16 %v875, %v868
    %v1282 = vpack.c.b16 %v883, %v876
    %v1283 = vpack.c.b16 %v884, %v877
    %v1284 = vpack.c.b16 %v885, %v878
    %v1285 = vpack.c.b16 %v886, %v879
    %v1286 = vpack.c.b16 %v887, %v880
    %v1287 = vpack.c.b16 %v888, %v881
    %v1288 = vpack.c.b16 %v889, %v882
    %v1289 = vpack.c.b16 %v897, %v890
    %v1290 = vpack.c.b16 %v898, %v891
    %v1291 = vpack.c.b16 %v899, %v892
    %v1292 = vpack.c.b16 %v900, %v893
    %v1293 = vpack.c.b16 %v901, %v894
    %v1294 = vpack.c.b16 %v902, %v895
    %v1295 = vpack.c.b16 %v903, %v896
    %v1296 = vpack.c.b16 %v911, %v904
    %v1297 = vpack.c.b16 %v912, %v905
    %v1298 = vpack.c.b16 %v913, %v906
    %v1299 = vpack.c.b16 %v914, %v907
    %v1300 = vpack.c.b16 %v915, %v908
    %v1301 = vpack.c.b16 %v916, %v909
    %v1302 = vpack.c.b16 %v917, %v910
    %v1303 = vpack.c.b16 %v925, %v918
    %v1304 = vpack.c.b16 %v926, %v919
    %v1305 = vpack.c.b16 %v927, %v920
    %v1306 = vpack.c.b16 %v928, %v921
    %v1307 = vpack.c.b16 %v929, %v922
    %v1308 = vpack.c.b16 %v930, %v923
    %v1309 = vpack.c.b16 %v931, %v924
    %v1310 = vpack.c.b16 %v939, %v932
    %v1311 = vpack.c.b16 %v940, %v933
    %v1312 = vpack.c.b16 %v941, %v934
    %v1313 = vpack.c.b16 %v942, %v935
    %v1314 = vpack.c.b16 %v943, %v936
    %v1315 = vpack.c.b16 %v944, %v937
    %v1316 = vpack.c.b16 %v945, %v938
    %v1317 = vpack.c.b16 %v953, %v946
    %v1318 = vpack.c.b16 %v954, %v947
    %v1319 = vpack.c.b16 %v955, %v948
    %v1320 = vpack.c.b16 %v956, %v949
    %v1321 = vpack.c.b16 %v957, %v950
    %v1322 = vpack.c.b16 %v958, %v951
    %v1323 = vpack.c.b16 %v959, %v952
    %v1324 = vpack.c.b16 %v967, %v960
    %v1325 = vpack.c.b16 %v968, %v961
    %v1326 = vpack.c.b16 %v969, %v962
    %v1327 = vpack.c.b16 %v970, %v963
    %v1328 = vpack.c.b16 %v971, %v964
    %v1329 = vpack.c.b16 %v972, %v965
    %v1330 = vpack.c.b16 %v973, %v966
    %v1331 = vpack.c.b16 %v981, %v974
    %v1332 = vpack.c.b16 %v982, %v975
    %v1333 = vpack.c.b16 %v983, %v976
    %v1334 = vpack.c.b16 %v984, %v977
    %v1335 = vpack.c.b16 %v985, %v978
    %v1336 = vpack.c.b16 %v986, %v979
    %v1337 = vpack.c.b16 %v987, %v980
    %v1338 = vpack.c.b16 %v995, %v988
    %v1339 = vpack.c.b16 %v996, %v989
    %v1340 = vpack.c.b16 %v997, %v990
    %v1341 = vpack.c.b16 %v998, %v991
    %v1342 = vpack.c.b16 %v999, %v992
    %v1343 = vpack.c.b16 %v1000, %v993
    %v1344 = vpack.c.b16 %v1001, %v994
    %v1345 = vpack.c.b16 %v1009, %v1002
    %v1346 = vpack.c.b16 %v1010, %v1003
    %v1347 = vpack.c.b16 %v1011, %v1004
    %v1348 = vpack.c.b16 %v1012, %v1005
    %v1349 = vpack.c.b16 %v1013, %v1006
    %v1350 = vpack.c.b16 %v1014, %v1007
    %v1351 = vpack.c.b16 %v1015, %v1008
    %v1352 = vpack.c.b16 %v1023, %v1016
    %v1353 = vpack.c.b16 %v1024, %v1017
    %v1354 = vpack.c.b16 %v1025, %v1018
    %v1355 = vpack.c.b16 %v1026, %v1019
    %v1356 = vpack.c.b16 %v1027, %v1020
    %v1357 = vpack.c.b16 %v1028, %v1021
    %v1358 = vpack.c.b16 %v1029, %v1022
    %v1359 = vpack.c.b16 %v1037, %v1030
    %v1360 = vpack.c.b16 %v1038, %v1031
    %v1361 = vpack.c.b16 %v1039, %v1032
    %v1362 = vpack.c.b16 %v1040, %v1033
    %v1363 = vpack.c.b16 %v1041, %v1034
    %v1364 = vpack.c.b16 %v1042, %v1035
    %v1365 = vpack.c.b16 %v1043, %v1036
    %v1366 = vpack.c.b16 %v1051, %v1044
    %v1367 = vpack.c.b16 %v1052, %v1045
    %v1368 = vpack.c.b16 %v1053, %v1046
    %v1369 = vpack.c.b16 %v1054, %v1047
    %v1370 = vpack.c.b16 %v1055, %v1048
    %v1371 = vpack.c.b16 %v1056, %v1049
    %v1372 = vpack.c.b16 %v1057, %v1050
    %v1373 = vpack.c.b16 %v1065, %v1058
    %v1374 = vpack.c.b16 %v1066, %v1059
    %v1375 = vpack.c.b16 %v1067, %v1060
    %v1376 = vpack.c.b16 %v1068, %v1061
    %v1377 = vpack.c.b16 %v1069, %v1062
    %v1378 = vpack.c.b16 %v1070, %v1063
    %v1379 = vpack.c.b16 %v1071, %v1064
    %v1380 = vpack.c.b16 %v1079, %v1072
    %v1381 = vpack.c.b16 %v1080, %v1073
    %v1382 = vpack.c.b16 %v1081, %v1074
    %v1383 = vpack.c.b16 %v1082, %v1075
    %v1384 = vpack.c.b16 %v1083, %v1076
    %v1385 = vpack.c.b16 %v1084, %v1077
    %v1386 = vpack.c.b16 %v1085, %v1078
    %v1387 = vpack.c.b16 %v1093, %v1086
    %v1388 = vpack.c.b16 %v1094, %v1087
    %v1389 = vpack.c.b16 %v1095, %v1088
    %v1390 = vpack.c.b16 %v1096, %v1089
    %v1391 = vpack.c.b16 %v1097, %v1090
    %v1392 = vpack.c.b16 %v1098, %v1091
    %v1393 = vpack.c.b16 %v1099, %v1092
    %v1394 = vpack.c.b16 %v1107, %v1100
    %v1395 = vpack.c.b16 %v1108, %v1101
    %v1396 = vpack.c.b16 %v1109, %v1102
    %v1397 = vpack.c.b16 %v1110, %v1103
    %v1398 = vpack.c.b16 %v1111, %v1104
    %v1399 = vpack.c.b16 %v1112, %v1105
    %v1400 = vpack.c.b16 %v1113, %v1106
    %v1401 = vpack.c.b16 %v1121, %v1114
    %v1402 = vpack.c.b16 %v1122, %v1115
    %v1403 = vpack.c.b16 %v1123, %v1116
    %v1404 = vpack.c.b16 %v1124, %v1117
    %v1405 = vpack.c.b16 %v1125, %v1118
    %v1406 = vpack.c.b16 %v1126, %v1119
    %v1407 = vpack.c.b16 %v1127, %v1120
    %v1408 = vpack.c.b16 %v1135, %v1128
    %v1409 = vpack.c.b16 %v1136, %v1129
    %v1410 = vpack.c.b16 %v1137, %v1130
    %v1411 = vpack.c.b16 %v1138, %v1131
    %v1412 = vpack.c.b16 %v1139, %v1132
    %v1413 = vpack.c.b16 %v1140, %v1133
    %v1414 = vpack.c.b16 %v1141, %v1134
    %v1415 = vpack.c.b16 %v1149, %v1142
    %v1416 = vpack.c.b16 %v1150, %v1143
    %v1417 = vpack.c.b16 %v1151, %v1144
    %v1418 = vpack.c.b16 %v1152, %v1145
    %v1419 = vpack.c.b16 %v1153, %v1146
    %v1420 = vpack.c.b16 %v1154, %v1147
    %v1421 = vpack.c.b16 %v1155, %v1148
    %v1422 = vpack.c.b16 %v1163, %v1156
    %v1423 = vpack.c.b16 %v1164, %v1157
    %v1424 = vpack.c.b16 %v1165, %v1158
    %v1425 = vpack.c.b16 %v1166, %v1159
    %v1426 = vpack.c.b16 %v1167, %v1160
    %v1427 = vpack.c.b16 %v1168, %v1161
    %v1428 = vpack.c.b16 %v1169, %v1162
    %v1429 = vpack.c.b16 %v1177, %v1170
    %v1430 = vpack.c.b16 %v1178, %v1171
    %v1431 = vpack.c.b16 %v1179, %v1172
    %v1432 = vpack.c.b16 %v1180, %v1173
    %v1433 = vpack.c.b16 %v1181, %v1174
    %v1434 = vpack.c.b16 %v1182, %v1175
    %v1435 = vpack.c.b16 %v1183, %v1176
    %v1436 = vpack.c.b16 %v1191, %v1184
    %v1437 = vpack.c.b16 %v1192, %v1185
    %v1438 = vpack.c.b16 %v1193, %v1186
    %v1439 = vpack.c.b16 %v1194, %v1187
    %v1440 = vpack.c.b16 %v1195, %v1188
    %v1441 = vpack.c.b16 %v1196, %v1189
    %v1442 = vpack.c.b16 %v1197, %v1190
    %v1443 = vpack.c.b16 %v1205, %v1198
    %v1444 = vpack.c.b16 %v1206, %v1199
    %v1445 = vpack.c.b16 %v1207, %v1200
    %v1446 = vpack.c.b16 %v1208, %v1201
    %v1447 = vpack.c.b16 %v1209, %v1202
    %v1448 = vpack.c.b16 %v1210, %v1203
    %v1449 = vpack.c.b16 %v1211, %v1204
    %v1450 = vpack.c.b16 %v1219, %v1212
    %v1451 = vpack.c.b16 %v1220, %v1213
    %v1452 = vpack.c.b16 %v1221, %v1214
    %v1453 = vpack.c.b16 %v1222, %v1215
    %v1454 = vpack.c.b16 %v1223, %v1216
    %v1455 = vpack.c.b16 %v1224, %v1217
    %v1456 = vpack.c.b16 %v1225, %v1218
    %v1457 = vpack.c.b16 %v1233, %v1226
    %v1458 = vpack.c.b16 %v1234, %v1227
    %v1459 = vpack.c.b16 %v1235, %v1228
    %v1460 = vpack.c.b16 %v1236, %v1229
    %v1461 = vpack.c.b16 %v1237, %v1230
    %v1462 = vpack.c.b16 %v1238, %v1231
    %v1463 = vpack.c.b16 %v1239, %v1232
    %1688 = vmatprep.subr.bf16.mxu0 %v1241
    %1689 = vmatpush1.bf16.msra.mxu0 %v1240
    %1690 = vmatprep.subr.bf16.mxu0 %v1248
    %1691 = vmatpush1.bf16.msra.mxu0 %v1247
    %1692 = vmatprep.subr.bf16.mxu0 %v1255
    %1693 = vmatpush1.bf16.msra.mxu0 %v1254
    %1694 = vmatprep.subr.bf16.mxu0 %v1262
    %1695 = vmatpush1.bf16.msra.mxu0 %v1261
    %1696 = vmatprep.subr.bf16.mxu0 %v1269
    %1697 = vmatpush1.bf16.msra.mxu0 %v1268
    %1698 = vmatprep.subr.bf16.mxu0 %v1276
    %1699 = vmatpush1.bf16.msra.mxu0 %v1275
    %1700 = vmatprep.subr.bf16.mxu0 %v1283
    %1701 = vmatpush1.bf16.msra.mxu0 %v1282
    %1702 = vmatprep.subr.bf16.mxu0 %v1290
    %1703 = vmatpush1.bf16.msra.mxu0 %v1289
    %1704 = vmatprep.subr.bf16.mxu0 %v1297
    %1705 = vmatpush1.bf16.msra.mxu0 %v1296
    %1706 = vmatprep.subr.bf16.mxu0 %v1304
    %1707 = vmatpush1.bf16.msra.mxu0 %v1303
    %1708 = vmatprep.subr.bf16.mxu0 %v1311
    %1709 = vmatpush1.bf16.msra.mxu0 %v1310
    %1710 = vmatprep.subr.bf16.mxu0 %v1318
    %1711 = vmatpush1.bf16.msra.mxu0 %v1317
    %1712 = vmatprep.subr.bf16.mxu0 %v1325
    %1713 = vmatpush1.bf16.msra.mxu0 %v1324
    %1714 = vmatprep.subr.bf16.mxu0 %v1332
    %1715 = vmatpush1.bf16.msra.mxu0 %v1331
    %1716 = vmatprep.subr.bf16.mxu0 %v1339
    %1717 = vmatpush1.bf16.msra.mxu0 %v1338
    %1718 = vmatprep.subr.bf16.mxu0 %v1346
    %1719 = vmatpush1.bf16.msra.mxu0 %v1345
    %1720 = vmatprep.mubr.bf16.mxu0 %v240
    %1721 = vmatmul.mubr.bf16.gmra.mrb[0].mxu0 %v239
    %v1722 = vpop.f32.mrb[0].mxu0
    %v1723 = vadd.f32 %v504, %v1722
    %v1724 = vpop.f32.mrb[0].mxu0
    %v1725 = vadd.f32 %v508, %v1724
    %v1726 = vpop.f32.mrb[0].mxu0
    %v1727 = vadd.f32 %v504, %v1726
    %v1728 = vpop.f32.mrb[0].mxu0
    %v1729 = vadd.f32 %v508, %v1728
    %1730 = vdwg.mxu0
    %1731 = vmatprep.subr.bf16.mxu0 %v1353
    %1732 = vmatpush1.bf16.msra.mxu0 %v1352
    %1733 = vmatprep.subr.bf16.mxu0 %v1360
    %1734 = vmatpush1.bf16.msra.mxu0 %v1359
    %1735 = vmatprep.subr.bf16.mxu0 %v1367
    %1736 = vmatpush1.bf16.msra.mxu0 %v1366
    %1737 = vmatprep.subr.bf16.mxu0 %v1374
    %1738 = vmatpush1.bf16.msra.mxu0 %v1373
    %1739 = vmatprep.subr.bf16.mxu0 %v1381
    %1740 = vmatpush1.bf16.msra.mxu0 %v1380
    %1741 = vmatprep.subr.bf16.mxu0 %v1388
    %1742 = vmatpush1.bf16.msra.mxu0 %v1387
    %1743 = vmatprep.subr.bf16.mxu0 %v1395
    %1744 = vmatpush1.bf16.msra.mxu0 %v1394
    %1745 = vmatprep.subr.bf16.mxu0 %v1402
    %1746 = vmatpush1.bf16.msra.mxu0 %v1401
    %1747 = vmatprep.subr.bf16.mxu0 %v1409
    %1748 = vmatpush1.bf16.msra.mxu0 %v1408
    %1749 = vmatprep.subr.bf16.mxu0 %v1416
    %1750 = vmatpush1.bf16.msra.mxu0 %v1415
    %1751 = vmatprep.subr.bf16.mxu0 %v1423
    %1752 = vmatpush1.bf16.msra.mxu0 %v1422
    %1753 = vmatprep.subr.bf16.mxu0 %v1430
    %1754 = vmatpush1.bf16.msra.mxu0 %v1429
    %1755 = vmatprep.subr.bf16.mxu0 %v1437
    %1756 = vmatpush1.bf16.msra.mxu0 %v1436
    %1757 = vmatprep.subr.bf16.mxu0 %v1444
    %1758 = vmatpush1.bf16.msra.mxu0 %v1443
    %1759 = vmatprep.subr.bf16.mxu0 %v1451
    %1760 = vmatpush1.bf16.msra.mxu0 %v1450
    %1761 = vmatprep.subr.bf16.mxu0 %v1458
    %1762 = vmatpush1.bf16.msra.mxu0 %v1457
    %1763 = vmatprep.mubr.bf16.mxu0 %v242
    %1764 = vmatmul.mubr.bf16.gmra.mrb[0].mxu0 %v241
    %v1765 = vpop.f32.mrb[0].mxu0
    %v1766 = vadd.f32 %v1723, %v1765
    %v1767 = vpop.f32.mrb[0].mxu0
    %v1768 = vadd.f32 %v1725, %v1767
    %v1769 = vpop.f32.mrb[0].mxu0
    %v1770 = vadd.f32 %v1727, %v1769
    %v1771 = vpop.f32.mrb[0].mxu0
    %v1772 = vadd.f32 %v1729, %v1771
    %1773 = vdwg.mxu0
    %1774 = vmatprep.subr.bf16.mxu0 %v1243
    %1775 = vmatpush1.bf16.msra.mxu0 %v1242
    %1776 = vmatprep.subr.bf16.mxu0 %v1250
    %1777 = vmatpush1.bf16.msra.mxu0 %v1249
    %1778 = vmatprep.subr.bf16.mxu0 %v1257
    %1779 = vmatpush1.bf16.msra.mxu0 %v1256
    %1780 = vmatprep.subr.bf16.mxu0 %v1264
    %1781 = vmatpush1.bf16.msra.mxu0 %v1263
    %1782 = vmatprep.subr.bf16.mxu0 %v1271
    %1783 = vmatpush1.bf16.msra.mxu0 %v1270
    %1784 = vmatprep.subr.bf16.mxu0 %v1278
    %1785 = vmatpush1.bf16.msra.mxu0 %v1277
    %1786 = vmatprep.subr.bf16.mxu0 %v1285
    %1787 = vmatpush1.bf16.msra.mxu0 %v1284
    %1788 = vmatprep.subr.bf16.mxu0 %v1292
    %1789 = vmatpush1.bf16.msra.mxu0 %v1291
    %1790 = vmatprep.subr.bf16.mxu0 %v1299
    %1791 = vmatpush1.bf16.msra.mxu0 %v1298
    %1792 = vmatprep.subr.bf16.mxu0 %v1306
    %1793 = vmatpush1.bf16.msra.mxu0 %v1305
    %1794 = vmatprep.subr.bf16.mxu0 %v1313
    %1795 = vmatpush1.bf16.msra.mxu0 %v1312
    %1796 = vmatprep.subr.bf16.mxu0 %v1320
    %1797 = vmatpush1.bf16.msra.mxu0 %v1319
    %1798 = vmatprep.subr.bf16.mxu0 %v1327
    %1799 = vmatpush1.bf16.msra.mxu0 %v1326
    %1800 = vmatprep.subr.bf16.mxu0 %v1334
    %1801 = vmatpush1.bf16.msra.mxu0 %v1333
    %1802 = vmatprep.subr.bf16.mxu0 %v1341
    %1803 = vmatpush1.bf16.msra.mxu0 %v1340
    %1804 = vmatprep.subr.bf16.mxu0 %v1348
    %1805 = vmatpush1.bf16.msra.mxu0 %v1347
    %1806 = vmatprep.mubr.bf16.mxu0 %v240
    %1807 = vmatmul.mubr.bf16.gmra.mrb[0].mxu0 %v239
    %v1808 = vpop.f32.mrb[0].mxu0
    %v1809 = vadd.f32 %v512, %v1808
    %v1810 = vpop.f32.mrb[0].mxu0
    %v1811 = vadd.f32 %v516, %v1810
    %v1812 = vpop.f32.mrb[0].mxu0
    %v1813 = vadd.f32 %v512, %v1812
    %v1814 = vpop.f32.mrb[0].mxu0
    %v1815 = vadd.f32 %v516, %v1814
    %1816 = vdwg.mxu0
    %1817 = vmatprep.subr.bf16.mxu0 %v1355
    %1818 = vmatpush1.bf16.msra.mxu0 %v1354
    %1819 = vmatprep.subr.bf16.mxu0 %v1362
    %1820 = vmatpush1.bf16.msra.mxu0 %v1361
    %1821 = vmatprep.subr.bf16.mxu0 %v1369
    %1822 = vmatpush1.bf16.msra.mxu0 %v1368
    %1823 = vmatprep.subr.bf16.mxu0 %v1376
    %1824 = vmatpush1.bf16.msra.mxu0 %v1375
    %1825 = vmatprep.subr.bf16.mxu0 %v1383
    %1826 = vmatpush1.bf16.msra.mxu0 %v1382
    %1827 = vmatprep.subr.bf16.mxu0 %v1390
    %1828 = vmatpush1.bf16.msra.mxu0 %v1389
    %1829 = vmatprep.subr.bf16.mxu0 %v1397
    %1830 = vmatpush1.bf16.msra.mxu0 %v1396
    %1831 = vmatprep.subr.bf16.mxu0 %v1404
    %1832 = vmatpush1.bf16.msra.mxu0 %v1403
    %1833 = vmatprep.subr.bf16.mxu0 %v1411
    %1834 = vmatpush1.bf16.msra.mxu0 %v1410
    %1835 = vmatprep.subr.bf16.mxu0 %v1418
    %1836 = vmatpush1.bf16.msra.mxu0 %v1417
    %1837 = vmatprep.subr.bf16.mxu0 %v1425
    %1838 = vmatpush1.bf16.msra.mxu0 %v1424
    %1839 = vmatprep.subr.bf16.mxu0 %v1432
    %1840 = vmatpush1.bf16.msra.mxu0 %v1431
    %1841 = vmatprep.subr.bf16.mxu0 %v1439
    %1842 = vmatpush1.bf16.msra.mxu0 %v1438
    %1843 = vmatprep.subr.bf16.mxu0 %v1446
    %1844 = vmatpush1.bf16.msra.mxu0 %v1445
    %1845 = vmatprep.subr.bf16.mxu0 %v1453
    %1846 = vmatpush1.bf16.msra.mxu0 %v1452
    %1847 = vmatprep.subr.bf16.mxu0 %v1460
    %1848 = vmatpush1.bf16.msra.mxu0 %v1459
    %1849 = vmatprep.mubr.bf16.mxu0 %v242
    %1850 = vmatmul.mubr.bf16.gmra.mrb[0].mxu0 %v241
    %v1851 = vpop.f32.mrb[0].mxu0
    %v1852 = vadd.f32 %v1809, %v1851
    %v1853 = vpop.f32.mrb[0].mxu0
    %v1854 = vadd.f32 %v1811, %v1853
    %v1855 = vpop.f32.mrb[0].mxu0
    %v1856 = vadd.f32 %v1813, %v1855
    %v1857 = vpop.f32.mrb[0].mxu0
    %v1858 = vadd.f32 %v1815, %v1857
    %1859 = vdwg.mxu0
    %1860 = vmatprep.subr.bf16.mxu0 %v1245
    %1861 = vmatpush1.bf16.msra.mxu0 %v1244
    %1862 = vmatprep.subr.bf16.mxu0 %v1252
    %1863 = vmatpush1.bf16.msra.mxu0 %v1251
    %1864 = vmatprep.subr.bf16.mxu0 %v1259
    %1865 = vmatpush1.bf16.msra.mxu0 %v1258
    %1866 = vmatprep.subr.bf16.mxu0 %v1266
    %1867 = vmatpush1.bf16.msra.mxu0 %v1265
    %1868 = vmatprep.subr.bf16.mxu0 %v1273
    %1869 = vmatpush1.bf16.msra.mxu0 %v1272
    %1870 = vmatprep.subr.bf16.mxu0 %v1280
    %1871 = vmatpush1.bf16.msra.mxu0 %v1279
    %1872 = vmatprep.subr.bf16.mxu0 %v1287
    %1873 = vmatpush1.bf16.msra.mxu0 %v1286
    %1874 = vmatprep.subr.bf16.mxu0 %v1294
    %1875 = vmatpush1.bf16.msra.mxu0 %v1293
    %1876 = vmatprep.subr.bf16.mxu0 %v1301
    %1877 = vmatpush1.bf16.msra.mxu0 %v1300
    %1878 = vmatprep.subr.bf16.mxu0 %v1308
    %1879 = vmatpush1.bf16.msra.mxu0 %v1307
    %1880 = vmatprep.subr.bf16.mxu0 %v1315
    %1881 = vmatpush1.bf16.msra.mxu0 %v1314
    %1882 = vmatprep.subr.bf16.mxu0 %v1322
    %1883 = vmatpush1.bf16.msra.mxu0 %v1321
    %1884 = vmatprep.subr.bf16.mxu0 %v1329
    %1885 = vmatpush1.bf16.msra.mxu0 %v1328
    %1886 = vmatprep.subr.bf16.mxu0 %v1336
    %1887 = vmatpush1.bf16.msra.mxu0 %v1335
    %1888 = vmatprep.subr.bf16.mxu0 %v1343
    %1889 = vmatpush1.bf16.msra.mxu0 %v1342
    %1890 = vmatprep.subr.bf16.mxu0 %v1350
    %1891 = vmatpush1.bf16.msra.mxu0 %v1349
    %1892 = vmatprep.mubr.bf16.mxu0 %v240
    %1893 = vmatmul.mubr.bf16.gmra.mrb[0].mxu0 %v239
    %v1894 = vpop.f32.mrb[0].mxu0
    %v1895 = vadd.f32 %v520, %v1894
    %v1896 = vpop.f32.mrb[0].mxu0
    %v1897 = vadd.f32 %v524, %v1896
    %v1898 = vpop.f32.mrb[0].mxu0
    %v1899 = vadd.f32 %v520, %v1898
    %v1900 = vpop.f32.mrb[0].mxu0
    %v1901 = vadd.f32 %v524, %v1900
    %1902 = vdwg.mxu0
    %1903 = vmatprep.subr.bf16.mxu0 %v1357
    %1904 = vmatpush1.bf16.msra.mxu0 %v1356
    %1905 = vmatprep.subr.bf16.mxu0 %v1364
    %1906 = vmatpush1.bf16.msra.mxu0 %v1363
    %1907 = vmatprep.subr.bf16.mxu0 %v1371
    %1908 = vmatpush1.bf16.msra.mxu0 %v1370
    %1909 = vmatprep.subr.bf16.mxu0 %v1378
    %1910 = vmatpush1.bf16.msra.mxu0 %v1377
    %1911 = vmatprep.subr.bf16.mxu0 %v1385
    %1912 = vmatpush1.bf16.msra.mxu0 %v1384
    %1913 = vmatprep.subr.bf16.mxu0 %v1392
    %1914 = vmatpush1.bf16.msra.mxu0 %v1391
    %1915 = vmatprep.subr.bf16.mxu0 %v1399
    %1916 = vmatpush1.bf16.msra.mxu0 %v1398
    %1917 = vmatprep.subr.bf16.mxu0 %v1406
    %1918 = vmatpush1.bf16.msra.mxu0 %v1405
    %1919 = vmatprep.subr.bf16.mxu0 %v1413
    %1920 = vmatpush1.bf16.msra.mxu0 %v1412
    %1921 = vmatprep.subr.bf16.mxu0 %v1420
    %1922 = vmatpush1.bf16.msra.mxu0 %v1419
    %1923 = vmatprep.subr.bf16.mxu0 %v1427
    %1924 = vmatpush1.bf16.msra.mxu0 %v1426
    %1925 = vmatprep.subr.bf16.mxu0 %v1434
    %1926 = vmatpush1.bf16.msra.mxu0 %v1433
    %1927 = vmatprep.subr.bf16.mxu0 %v1441
    %1928 = vmatpush1.bf16.msra.mxu0 %v1440
    %1929 = vmatprep.subr.bf16.mxu0 %v1448
    %1930 = vmatpush1.bf16.msra.mxu0 %v1447
    %1931 = vmatprep.subr.bf16.mxu0 %v1455
    %1932 = vmatpush1.bf16.msra.mxu0 %v1454
    %1933 = vmatprep.subr.bf16.mxu0 %v1462
    %1934 = vmatpush1.bf16.msra.mxu0 %v1461
    %1935 = vmatprep.mubr.bf16.mxu0 %v242
    %1936 = vmatmul.mubr.bf16.gmra.mrb[0].mxu0 %v241
    %v1937 = vpop.f32.mrb[0].mxu0
    %v1938 = vadd.f32 %v1895, %v1937
    %v1939 = vpop.f32.mrb[0].mxu0
    %v1940 = vadd.f32 %v1897, %v1939
    %v1941 = vpop.f32.mrb[0].mxu0
    %v1942 = vadd.f32 %v1899, %v1941
    %v1943 = vpop.f32.mrb[0].mxu0
    %v1944 = vadd.f32 %v1901, %v1943
    %1945 = vdwg.mxu0
    %1946 = vmatprep.subr.bf16.mxu0 0
    %1947 = vmatpush1.bf16.msra.mxu0 %v1246
    %1948 = vmatprep.subr.bf16.mxu0 0
    %1949 = vmatpush1.bf16.msra.mxu0 %v1253
    %1950 = vmatprep.subr.bf16.mxu0 0
    %1951 = vmatpush1.bf16.msra.mxu0 %v1260
    %1952 = vmatprep.subr.bf16.mxu0 0
    %1953 = vmatpush1.bf16.msra.mxu0 %v1267
    %1954 = vmatprep.subr.bf16.mxu0 0
    %1955 = vmatpush1.bf16.msra.mxu0 %v1274
    %1956 = vmatprep.subr.bf16.mxu0 0
    %1957 = vmatpush1.bf16.msra.mxu0 %v1281
    %1958 = vmatprep.subr.bf16.mxu0 0
    %1959 = vmatpush1.bf16.msra.mxu0 %v1288
    %1960 = vmatprep.subr.bf16.mxu0 0
    %1961 = vmatpush1.bf16.msra.mxu0 %v1295
    %1962 = vmatprep.subr.bf16.mxu0 0
    %1963 = vmatpush1.bf16.msra.mxu0 %v1302
    %1964 = vmatprep.subr.bf16.mxu0 0
    %1965 = vmatpush1.bf16.msra.mxu0 %v1309
    %1966 = vmatprep.subr.bf16.mxu0 0
    %1967 = vmatpush1.bf16.msra.mxu0 %v1316
    %1968 = vmatprep.subr.bf16.mxu0 0
    %1969 = vmatpush1.bf16.msra.mxu0 %v1323
    %1970 = vmatprep.subr.bf16.mxu0 0
    %1971 = vmatpush1.bf16.msra.mxu0 %v1330
    %1972 = vmatprep.subr.bf16.mxu0 0
    %1973 = vmatpush1.bf16.msra.mxu0 %v1337
    %1974 = vmatprep.subr.bf16.mxu0 0
    %1975 = vmatpush1.bf16.msra.mxu0 %v1344
    %1976 = vmatprep.subr.bf16.mxu0 0
    %1977 = vmatpush1.bf16.msra.mxu0 %v1351
    %1978 = vmatprep.mubr.bf16.mxu0 %v240
    %1979 = vmatmul.mubr.bf16.gmra.mrb[0].mxu0 %v239
    %v1980 = vpop.f32.mrb[0].mxu0
    %v1981 = vadd.f32 %v528, %v1980
    %v1982 = vpop.f32.mrb[0].mxu0
    %v1983 = vpop.f32.mrb[0].mxu0
    %v1984 = vadd.f32 %v528, %v1983
    %v1985 = vpop.f32.mrb[0].mxu0
    %1986 = vdwg.mxu0
    %1987 = vmatprep.subr.bf16.mxu0 0
    %1988 = vmatpush1.bf16.msra.mxu0 %v1358
    %1989 = vmatprep.subr.bf16.mxu0 0
    %1990 = vmatpush1.bf16.msra.mxu0 %v1365
    %1991 = vmatprep.subr.bf16.mxu0 0
    %1992 = vmatpush1.bf16.msra.mxu0 %v1372
    %1993 = vmatprep.subr.bf16.mxu0 0
    %1994 = vmatpush1.bf16.msra.mxu0 %v1379
    %1995 = vmatprep.subr.bf16.mxu0 0
    %1996 = vmatpush1.bf16.msra.mxu0 %v1386
    %1997 = vmatprep.subr.bf16.mxu0 0
    %1998 = vmatpush1.bf16.msra.mxu0 %v1393
    %1999 = vmatprep.subr.bf16.mxu0 0
    %2000 = vmatpush1.bf16.msra.mxu0 %v1400
    %2001 = vmatprep.subr.bf16.mxu0 0
    %2002 = vmatpush1.bf16.msra.mxu0 %v1407
    %2003 = vmatprep.subr.bf16.mxu0 0
    %2004 = vmatpush1.bf16.msra.mxu0 %v1414
    %2005 = vmatprep.subr.bf16.mxu0 0
    %2006 = vmatpush1.bf16.msra.mxu0 %v1421
    %2007 = vmatprep.subr.bf16.mxu0 0
    %2008 = vmatpush1.bf16.msra.mxu0 %v1428
    %2009 = vmatprep.subr.bf16.mxu0 0
    %2010 = vmatpush1.bf16.msra.mxu0 %v1435
    %2011 = vmatprep.subr.bf16.mxu0 0
    %2012 = vmatpush1.bf16.msra.mxu0 %v1442
    %2013 = vmatprep.subr.bf16.mxu0 0
    %2014 = vmatpush1.bf16.msra.mxu0 %v1449
    %2015 = vmatprep.subr.bf16.mxu0 0
    %2016 = vmatpush1.bf16.msra.mxu0 %v1456
    %2017 = vmatprep.subr.bf16.mxu0 0
    %2018 = vmatpush1.bf16.msra.mxu0 %v1463
    %2019 = vmatprep.mubr.bf16.mxu0 %v242
    %2020 = vmatmul.mubr.bf16.gmra.mrb[0].mxu0 %v241
    %v2021 = vpop.f32.mrb[0].mxu0
    %v2022 = vadd.f32 %v1981, %v2021
    %v2023 = vpop.f32.mrb[0].mxu0
    %v2024 = vpop.f32.mrb[0].mxu0
    %v2025 = vadd.f32 %v1984, %v2024
    %v2026 = vpop.f32.mrb[0].mxu0
    %2027 = vdwg.mxu0
    %2028 = vst [vmem:[#allocation8] sm:$0xff] %v1766
    %2029 = vst [vmem:[#allocation8 + $0x8] sm:$0xff] %v1768
    %2030 = vst [vmem:[#allocation8 + $0x10] sm:$0xff] %v1852
    %2031 = vst [vmem:[#allocation8 + $0x18] sm:$0xff] %v1854
    %2032 = vst [vmem:[#allocation8 + $0x20] sm:$0xff] %v1938
    %2033 = vst [vmem:[#allocation8 + $0x28] sm:$0xff] %v1940
    %2034 = vst [vmem:[#allocation8 + $0x30] sm:$0xff] %v2022
    %2035 = vst [vmem:[#allocation8 + $0x38] sm:$0xff] %v1770
    %2036 = vst [vmem:[#allocation8 + $0x40] sm:$0xff] %v1772
    %2037 = vst [vmem:[#allocation8 + $0x48] sm:$0xff] %v1856
    %2038 = vst [vmem:[#allocation8 + $0x50] sm:$0xff] %v1858
    %2039 = vst [vmem:[#allocation8 + $0x58] sm:$0xff] %v1942
    %2040 = vst [vmem:[#allocation8 + $0x60] sm:$0xff] %v1944
    %2041 = vst [vmem:[#allocation8 + $0x68] sm:$0xff] %v2025
    // Predicated region
    $region34: #{tpu_custom_call.1} parent=1 // pred_check
      _
    $region35: #{tpu_custom_call.1} parent=1 // pred_check_branch
      %2043 = sbr.rel (0) target = $region37
    $region36: #{tpu_custom_call.1} parent=1 // pred_region
      %s2045 = ssub.s32 1792, 1792
      %2046 = vsyncadd [#allocation4], %s2045
      %s2047 = sshll.u32 [#allocation8], 4
      %s2048 = int_to_ptr.vmem [resolvable:$true] %s2047
      %2053 = dma.vmem_to_hbm [thread:$0]  %s2048, 1792, %s5, [#allocation4], 896, 896, 56
    $region37: #{tpu_custom_call.1} parent=1 // pred_fallthru
      _
    // Predicated region
    $region38: #{tpu_custom_call.1} parent=1 // pred_check
      _
    $region39: #{tpu_custom_call.1} parent=1 // pred_check_branch
      %2055 = sbr.rel (0) target = $region41
    $region40: #{tpu_custom_call.1} parent=1 // pred_region
      %2056 = dma.done [#allocation4], 1792
    $region41: #{tpu_custom_call.1} parent=1 // pred_fallthru
      _
    %2057 = vsyncpa [#allocation3], 1
    %2058 = vsyncpa [#allocation6], 1
    %2059 = vsyncpa [#allocation4], 1

</llo_original>
